<compile_context>
chip_gen: v5e
topology: v5e:2x2
jax: 0.10.0
libtpu: 0.0.40
codegen_flags: <defaults>
</compile_context>

<pallas_src>
import math
import functools

import jax
import jax.numpy as jnp
from jax import lax
from jax.experimental import pallas as pl
from jax.experimental.pallas import tpu as pltpu

NUM_HEADS = 8


# ----------------------------------------------------------------------------
# Fused Pallas kernel: one (batch, query-tile) block of the whole decoder layer
# ----------------------------------------------------------------------------
def decoder_layer_kernel(
    y_ref, en_ref, m1_ref, m2_ref,
    # self-attention params (head-major column layout prepared once in prepare_decoder_params)
    wq1_ref, bq1_ref, wk1_ref, bk1_ref, wv1_ref, bv1_ref, wo1_ref, bo1_ref,
    # cross-attention params
    wq2_ref, bq2_ref, wk2_ref, bk2_ref, wv2_ref, bv2_ref, wo2_ref, bo2_ref,
    # FFN params
    w1_ref, b1_ref, w2_ref, b2_ref,
    out_ref,
    *, num_heads, q_block, scale, npm, compute_dtype):

    f32 = jnp.float32
    H = num_heads

    def c(x):
        # cast matmul inputs to the compute dtype (bf16 on v6e/v7x at large D);
        # accumulation stays f32 via preferred_element_type. Elementwise work
        # (bias/softmax/norm) stays f32 (important on v5e: no bf16 VPU/EUP).
        return x.astype(compute_dtype)

    def norm(x):
        # add&Norm with torch-style unbiased variance; rsqrt goes to the EUP.
        # gamma=1.0 / beta=0.0 (the module's Parameter init values).
        d = x.shape[-1]
        mu = jnp.mean(x, axis=-1, keepdims=True)
        xc = x - mu
        var = jnp.sum(xc * xc, axis=-1, keepdims=True) * (1.0 / (d - 1))
        return xc * lax.rsqrt(var + 1e-8)

    def attention(de, enc, mask, wq, bq, wk, bk, wv, bv, wo, bo):
        # de: (Tq, D) queries, enc: (Lk, D) keys/values, mask: (Tq, Lk), 1.0 = masked
        # wq/wk/wv: (D, D_) with head-major columns; bq/bk/bv: (1, D_)
        # wo: (D_, D) (rows already head-major == torch concat order); bo: (1, D)
        d_ = wq.shape[1]
        dh = d_ // H

        # --- full-width projections: one MXU matmul each, N = D_ ---
        q = (jnp.dot(c(de), wq, preferred_element_type=f32) + bq) * scale   # (Tq, D_)
        k = jnp.dot(c(enc), wk, preferred_element_type=f32) + bk            # (Lk, D_)
        v = jnp.dot(c(enc), wv, preferred_element_type=f32) + bv            # (Lk, D_)

        # mask bias hoisted: computed once, reused for every head (VPU work).
        mbias = jnp.where(mask > 0.5, -1e10, 0.0)                           # (Tq, Lk)

        # --- per-head scores / softmax / AV (inherently per-head, K = dh) ---
        # head split is a static lane slice of already-projected Q/K/V
        # (XLU relayout only; the MXU-facing projections above stay full width).
        heads = []
        for h in range(H):
            sl = slice(h * dh, (h + 1) * dh)
            q_h, k_h, v_h = q[:, sl], k[:, sl], v[:, sl]
            s = jnp.einsum('qf,kf->qk', c(q_h), c(k_h),
                           preferred_element_type=f32) + mbias
            s = s - jnp.max(s, axis=-1, keepdims=True)
            p = jnp.exp(s)
            p = p * pl.reciprocal(jnp.sum(p, axis=-1, keepdims=True), approx=True)
            heads.append(jnp.einsum('qk,kf->qf', c(p), c(v_h),
                                    preferred_element_type=f32))            # (Tq, dh)

        # --- fused output projection: one matmul with K = D_ ---
        a = jnp.concatenate(heads, axis=-1)                                 # (Tq, D_)
        res = jnp.dot(c(a), wo, preferred_element_type=f32) + bo + de       # residual
        return norm(res)

    qi = pl.program_id(1)
    q0 = pl.multiple_of(qi * q_block, q_block)

    y_full = y_ref[0]                              # (Ly, D)  keys/values for self-attn
    en_full = en_ref[0]                            # (Le, D)  keys/values for cross-attn
    y_tile = y_ref[0, pl.ds(q0, q_block), :]       # (Tq, D)  query tile

    # ---- masked multi-head self attention + add&Norm ----
    out1 = attention(y_tile, y_full, m1_ref[0],
                     wq1_ref[...], bq1_ref[...], wk1_ref[...], bk1_ref[...],
                     wv1_ref[...], bv1_ref[...], wo1_ref[...], bo1_ref[...])
    if npm != 1.0:
        out1 = out1 * npm

    # ---- encoder-decoder cross attention + add&Norm ----
    out2 = attention(out1, en_full, m2_ref[0],
                     wq2_ref[...], bq2_ref[...], wk2_ref[...], bk2_ref[...],
                     wv2_ref[...], bv2_ref[...], wo2_ref[...], bo2_ref[...])
    if npm != 1.0:
        out2 = out2 * npm

    # ---- FFN (fc1 -> relu -> fc2) + add&Norm ----
    # TODO(synk): at D>=1024 on v7x additionally tile the FFN hidden dim
    # (stream w1/w2 slabs from HBM) so w1/w2 need not be fully VMEM-resident.
    h = jnp.dot(c(out2), w1_ref[...], preferred_element_type=jnp.float32) + b1_ref[...]
    h = jnp.maximum(h, 0.0)
    o3 = jnp.dot(c(h), w2_ref[...], preferred_element_type=jnp.float32) + b2_ref[...] + out2
    out3 = norm(o3)
    if npm != 1.0:
        out3 = out3 * npm

    out_ref[0] = out3.astype(out_ref.dtype)


# ----------------------------------------------------------------------------
# One-time parameter preparation (hoisted out of the per-call wrapper)
# ----------------------------------------------------------------------------
def _head_perm(d_model_, num_heads=NUM_HEADS):
    # torch: q.view(B, L, dh, H) puts the head index in the FAST axis.
    # perm[h*dh + j] = j*H + h gathers head h's features contiguously.
    dh = d_model_ // num_heads
    idx = jnp.arange(d_model_)
    return (idx % dh) * num_heads + (idx // dh)


def prepare_decoder_params(params, compute_dtype=jnp.float32):
    """Head-major column permutation (+ optional bf16 pre-cast) done ONCE at
    parameter load time. Do NOT call per forward step."""
    sa, ca, ff = params["self_attn"], params["cross_attn"], params["ffn"]
    D_ = sa["wq"].shape[1]
    perm = _head_perm(D_, NUM_HEADS)

    def wcast(x):
        return jnp.asarray(x, compute_dtype)

    def prep_attn(p):
        return (wcast(p["wq"][:, perm]), jnp.asarray(p["bq"][:, perm], jnp.float32),
                wcast(p["wk"][:, perm]), jnp.asarray(p["bk"][:, perm], jnp.float32),
                wcast(p["wv"][:, perm]), jnp.asarray(p["bv"][:, perm], jnp.float32),
                wcast(p["wo"]),          jnp.asarray(p["bo"], jnp.float32))

    return {
        "self_attn": prep_attn(sa),
        "cross_attn": prep_attn(ca),
        "ffn": (wcast(ff["w1"]), jnp.asarray(ff["b1"], jnp.float32),
                wcast(ff["w2"]), jnp.asarray(ff["b2"], jnp.float32)),
        "compute_dtype": compute_dtype,
    }


def _pick_q_block(Ly, requested=None):
    if requested is not None:
        assert Ly % requested == 0, "q_block must divide the query length"
        return int(requested)
    if Ly <= 512:          # single tile: no redundant K/V re-projection
        return Ly
    for cand in (256, 128, 64, 32, 16, 8):
        if Ly % cand == 0:
            return cand
    return Ly


# ----------------------------------------------------------------------------
# JAX wrapper: BlockSpecs + single fused pallas_call
# ----------------------------------------------------------------------------
def decoder_layer_pallas(y, en, mask1, mask2, prepped, non_pad_mask_y=1.0,
                         q_block=None, out_dtype=jnp.float32,
                         single_buffer_weights=None, vmem_limit_bytes=None):
    """dropout=False path of Decoder_layer.forward, fully fused on-chip."""
    B, Ly, D = y.shape
    Le = en.shape[1]
    sa_ops = prepped["self_attn"]
    ca_ops = prepped["cross_attn"]
    ff_ops = prepped["ffn"]
    compute_dtype = prepped["compute_dtype"]
    weights = (*sa_ops, *ca_ops, *ff_ops)

    TQ = _pick_q_block(Ly, q_block)
    NQ = Ly // TQ

    wbytes = sum(int(w.size) * w.dtype.itemsize for w in weights)
    if single_buffer_weights is None:
        # Only worth it (and only matters) once the weight set is large.
        single_buffer_weights = wbytes > (4 << 20)
    if vmem_limit_bytes is None:
        # Rough VMEM-resident estimate; bump the scoped limit only when the
        # default (16/32 MiB) would be exceeded at production dims.
        act = 4 * (Ly * D + Le * D + TQ * Ly + TQ * Le + TQ * D)
        inter = 4 * (3 * max(Ly, Le) * max(sa_ops[0].shape[1], D)
                     + TQ * max(Ly, Le) + TQ * ff_ops[0].shape[1] + 4 * TQ * D)
        est = (1 if single_buffer_weights else 2) * wbytes + 2 * act + inter
        if est > (12 << 20):
            # NOTE: on v7x keep this comfortably below the 64 MiB physical VMEM.
            vmem_limit_bytes = int(min(est + (8 << 20), 96 << 20))

    kernel = functools.partial(
        decoder_layer_kernel,
        num_heads=NUM_HEADS, q_block=TQ,
        scale=1.0 / math.sqrt(D),           # reference scales by 1/sqrt(d_model)
        npm=float(non_pad_mask_y),
        compute_dtype=compute_dtype)
    # TODO(synk): tensor-valued non_pad_mask_y would need an extra (B, Ly, 1)
    # operand; only the scalar case (the torch default) is fused here.

    def fixed(shape):
        # grid-invariant weight block: constant index map; optionally
        # single-buffered to avoid wasting a second VMEM copy.
        n = len(shape)
        idx = lambda b, q, _n=n: (0,) * _n
        if single_buffer_weights and hasattr(pl, "Buffered"):
            try:
                return pl.BlockSpec(shape, idx, pipeline_mode=pl.Buffered(buffer_count=1))
            except TypeError:   # older jax without BlockSpec.pipeline_mode
                pass
        return pl.BlockSpec(shape, idx)

    in_specs = (
        [pl.BlockSpec((1, Ly, D), lambda b, q: (b, 0, 0)),    # y (full: self-attn K/V + query tiles)
         pl.BlockSpec((1, Le, D), lambda b, q: (b, 0, 0)),    # en (full: cross-attn K/V)
         pl.BlockSpec((1, TQ, Ly), lambda b, q: (b, q, 0)),   # mask1 query tile
         pl.BlockSpec((1, TQ, Le), lambda b, q: (b, q, 0))]   # mask2 query tile
        + [fixed(w.shape) for w in weights]
    )
    # TODO(synk): for structured (causal / length-padding) masks, generate the
    # bias in-kernel from iota + prefetched lengths instead of DMA'ing
    # (B, Lq, Lk) tensors; kept as explicit inputs for module fidelity.

    cp = dict(dimension_semantics=("parallel", "parallel"))
    if vmem_limit_bytes is not None:
        cp["vmem_limit_bytes"] = int(vmem_limit_bytes)

    return pl.pallas_call(
        kernel,
        out_shape=jax.ShapeDtypeStruct((B, Ly, D), out_dtype),
        grid=(B, NQ),
        in_specs=in_specs,
        out_specs=pl.BlockSpec((1, TQ, D), lambda b, q: (b, q, 0)),
        compiler_params=pltpu.CompilerParams(**cp),
    )(y, en, mask1, mask2, *weights)


# ----------------------------------------------------------------------------
# Pure-JAX reference (mirrors the torch code, incl. interleaved head split)
# ----------------------------------------------------------------------------
def _norm_ref(x):
    mu = jnp.mean(x, axis=2, keepdims=True)
    var = jnp.var(x, axis=2, ddof=1, keepdims=True)   # torch.var is unbiased
    return (x - mu) / jnp.sqrt(var + 1e-8)


def _mha_ref(en, de, mask, p):
    B, Ld, D = de.shape
    Le = en.shape[1]
    D_ = p["wq"].shape[1]
    dh = D_ // NUM_HEADS
    q = de @ p["wq"] + p["bq"]
    k = en @ p["wk"] + p["bk"]
    v = en @ p["wv"] + p["bv"]
    q = q.reshape(B, Ld, dh, NUM_HEADS).transpose(3, 0, 1, 2)
    k = k.reshape(B, Le, dh, NUM_HEADS).transpose(3, 0, 2, 1)
    v = v.reshape(B, Le, dh, NUM_HEADS).transpose(3, 0, 1, 2)
    e = jnp.einsum("hbtd,hbds->hbts", q, k) / math.sqrt(D)
    e = jnp.where(mask[None] > 0.5, -1e10, e)
    alpha = jax.nn.softmax(e, axis=-1)
    head3 = jnp.einsum("hbts,hbsd->hbtd", alpha, v)
    a = jnp.transpose(head3, (1, 2, 0, 3)).reshape(B, Ld, D_)
    res = a @ p["wo"] + p["bo"]
    return _norm_ref(res + de)


def _ffn_ref(x, p):
    h = jnp.maximum(x @ p["w1"] + p["b1"], 0.0)
    o = h @ p["w2"] + p["b2"]
    return _norm_ref(o + x)


def decoder_layer_ref(y, en, mask1, mask2, params, non_pad_mask_y=1.0):
    out = _mha_ref(y, y, mask1, params["self_attn"]) * non_pad_mask_y
    out = _mha_ref(en, out, mask2, params["cross_attn"]) * non_pad_mask_y
    out = _ffn_ref(out, params["ffn"]) * non_pad_mask_y
    return out


# ----------------------------------------------------------------------------
# Deterministic parameter init
# ----------------------------------------------------------------------------
def init_attn_params(key, D, D_):
    ks = jax.random.split(key, 8)
    s_in = math.sqrt(2.0 / D)
    return {
        "wq": jax.random.normal(ks[0], (D, D_), jnp.float32) * s_in,
        "bq": jax.random.normal(ks[1], (1, D_), jnp.float32) * 0.01,
        "wk": jax.random.normal(ks[2], (D, D_), jnp.float32) * s_in,
        "bk": jax.random.normal(ks[3], (1, D_), jnp.float32) * 0.01,
        "wv": jax.random.normal(ks[4], (D, D_), jnp.float32) * s_in,
        "bv": jax.random.normal(ks[5], (1, D_), jnp.float32) * 0.01,
        "wo": jax.random.normal(ks[6], (D_, D), jnp.float32) * math.sqrt(2.0 / (D + D_)),
        "bo": jax.random.normal(ks[7], (1, D), jnp.float32) * 0.01,
    }


def init_ffn_params(key, D):
    ks = jax.random.split(key, 4)
    return {
        "w1": jax.random.normal(ks[0], (D, 4 * D), jnp.float32) * math.sqrt(2.0 / (5 * D)),
        "b1": jax.random.normal(ks[1], (1, 4 * D), jnp.float32) * 0.01,
        "w2": jax.random.normal(ks[2], (4 * D, D), jnp.float32) * math.sqrt(2.0 / (5 * D)),
        "b2": jax.random.normal(ks[3], (1, D), jnp.float32) * 0.01,
    }


# TODO(synk): dropout branches (dropout=True training path) are not implemented;
# only the inference (dropout=False) forward path is translated.

if __name__ == "__main__":
    # Small shapes: batch=2, seq=8, hidden_dim=32, hidden_dim_=64 (8 heads of 8)
    B, Ly, Le, D, D_ = 2, 8, 8, 32, 64

    key = jax.random.PRNGKey(0)
    k_y, k_en, k_p1, k_p2, k_p3 = jax.random.split(key, 5)

    y = jax.random.normal(k_y, (B, Ly, D), jnp.float32)
    en = jax.random.normal(k_en, (B, Le, D), jnp.float32)

    # mask1: causal self-attention mask (1.0 = masked)
    causal = (jnp.arange(Ly)[:, None] < jnp.arange(Ly)[None, :]).astype(jnp.float32)
    mask1 = jnp.broadcast_to(causal, (B, Ly, Ly))
    # mask2: cross-attention padding mask — last encoder position masked
    pad = (jnp.arange(Le)[None, :] >= Le - 1).astype(jnp.float32)
    mask2 = jnp.broadcast_to(pad[None, :, :], (B, Ly, Le))

    params = {
        "self_attn": init_attn_params(k_p1, D, D_),
        "cross_attn": init_attn_params(k_p2, D, D_),
        "ffn": init_ffn_params(k_p3, D),
    }

    # One-time weight preparation (head-major permute; bf16 pre-cast optional).
    prepped = prepare_decoder_params(params, compute_dtype=jnp.float32)

    out = decoder_layer_pallas(y, en, mask1, mask2, prepped)
    out = jax.block_until_ready(out)

    ref = jax.block_until_ready(decoder_layer_ref(y, en, mask1, mask2, params))
    assert out.shape == (B, Ly, D)
    # Slightly relaxed tolerance: softmax denominator uses the EUP approx
    # reciprocal (still far tighter than any structural/numerical bug).
    assert jnp.allclose(out, ref, atol=5e-3, rtol=5e-3), (
        f"max diff {jnp.max(jnp.abs(out - ref))}")

    print("KERNEL_OK")
</pallas_src>

<mosaic_0001>
module attributes {stable_mosaic.version = 11 : i64} {
  func.func @decoder_layer_kernel(%arg0: i32, %arg1: i32, %arg2: memref<1x8x32xf32, #tpu.memory_space<vmem>>, %arg3: memref<1x8x32xf32, #tpu.memory_space<vmem>>, %arg4: memref<1x8x8xf32, #tpu.memory_space<vmem>>, %arg5: memref<1x8x8xf32, #tpu.memory_space<vmem>>, %arg6: memref<32x64xf32, #tpu.memory_space<vmem>>, %arg7: memref<1x64xf32, #tpu.memory_space<vmem>>, %arg8: memref<32x64xf32, #tpu.memory_space<vmem>>, %arg9: memref<1x64xf32, #tpu.memory_space<vmem>>, %arg10: memref<32x64xf32, #tpu.memory_space<vmem>>, %arg11: memref<1x64xf32, #tpu.memory_space<vmem>>, %arg12: memref<64x32xf32, #tpu.memory_space<vmem>>, %arg13: memref<1x32xf32, #tpu.memory_space<vmem>>, %arg14: memref<32x64xf32, #tpu.memory_space<vmem>>, %arg15: memref<1x64xf32, #tpu.memory_space<vmem>>, %arg16: memref<32x64xf32, #tpu.memory_space<vmem>>, %arg17: memref<1x64xf32, #tpu.memory_space<vmem>>, %arg18: memref<32x64xf32, #tpu.memory_space<vmem>>, %arg19: memref<1x64xf32, #tpu.memory_space<vmem>>, %arg20: memref<64x32xf32, #tpu.memory_space<vmem>>, %arg21: memref<1x32xf32, #tpu.memory_space<vmem>>, %arg22: memref<32x128xf32, #tpu.memory_space<vmem>>, %arg23: memref<1x128xf32, #tpu.memory_space<vmem>>, %arg24: memref<128x32xf32, #tpu.memory_space<vmem>>, %arg25: memref<1x32xf32, #tpu.memory_space<vmem>>, %arg26: memref<1x8x32xf32, #tpu.memory_space<vmem>>) attributes {dimension_semantics = [#tpu.dimension_semantics<parallel>, #tpu.dimension_semantics<parallel>], iteration_bounds = array<i64: 2, 1>, scalar_prefetch = 0 : i64, scratch_operands = 0 : i64, tpu.core_type = #tpu.core_type<tc>, window_params = [{transform_indices = @transform_0, window_bounds = array<i64: 1, 8, 32>}, {transform_indices = @transform_1, window_bounds = array<i64: 1, 8, 32>}, {transform_indices = @transform_2, window_bounds = array<i64: 1, 8, 8>}, {transform_indices = @transform_3, window_bounds = array<i64: 1, 8, 8>}, {pipeline_mode = #tpu.pipeline_mode<synchronous>, transform_indices = @transform_4, window_bounds = array<i64: 32, 64>}, {pipeline_mode = #tpu.pipeline_mode<synchronous>, transform_indices = @transform_5, window_bounds = array<i64: 1, 64>}, {pipeline_mode = #tpu.pipeline_mode<synchronous>, transform_indices = @transform_6, window_bounds = array<i64: 32, 64>}, {pipeline_mode = #tpu.pipeline_mode<synchronous>, transform_indices = @transform_7, window_bounds = array<i64: 1, 64>}, {pipeline_mode = #tpu.pipeline_mode<synchronous>, transform_indices = @transform_8, window_bounds = array<i64: 32, 64>}, {pipeline_mode = #tpu.pipeline_mode<synchronous>, transform_indices = @transform_9, window_bounds = array<i64: 1, 64>}, {pipeline_mode = #tpu.pipeline_mode<synchronous>, transform_indices = @transform_10, window_bounds = array<i64: 64, 32>}, {pipeline_mode = #tpu.pipeline_mode<synchronous>, transform_indices = @transform_11, window_bounds = array<i64: 1, 32>}, {pipeline_mode = #tpu.pipeline_mode<synchronous>, transform_indices = @transform_12, window_bounds = array<i64: 32, 64>}, {pipeline_mode = #tpu.pipeline_mode<synchronous>, transform_indices = @transform_13, window_bounds = array<i64: 1, 64>}, {pipeline_mode = #tpu.pipeline_mode<synchronous>, transform_indices = @transform_14, window_bounds = array<i64: 32, 64>}, {pipeline_mode = #tpu.pipeline_mode<synchronous>, transform_indices = @transform_15, window_bounds = array<i64: 1, 64>}, {pipeline_mode = #tpu.pipeline_mode<synchronous>, transform_indices = @transform_16, window_bounds = array<i64: 32, 64>}, {pipeline_mode = #tpu.pipeline_mode<synchronous>, transform_indices = @transform_17, window_bounds = array<i64: 1, 64>}, {pipeline_mode = #tpu.pipeline_mode<synchronous>, transform_indices = @transform_18, window_bounds = array<i64: 64, 32>}, {pipeline_mode = #tpu.pipeline_mode<synchronous>, transform_indices = @transform_19, window_bounds = array<i64: 1, 32>}, {pipeline_mode = #tpu.pipeline_mode<synchronous>, transform_indices = @transform_20, window_bounds = array<i64: 32, 128>}, {pipeline_mode = #tpu.pipeline_mode<synchronous>, transform_indices = @transform_21, window_bounds = array<i64: 1, 128>}, {pipeline_mode = #tpu.pipeline_mode<synchronous>, transform_indices = @transform_22, window_bounds = array<i64: 128, 32>}, {pipeline_mode = #tpu.pipeline_mode<synchronous>, transform_indices = @transform_23, window_bounds = array<i64: 1, 32>}, {transform_indices = @transform_24, window_bounds = array<i64: 1, 8, 32>}]} {
    %c8_i32 = arith.constant 8 : i32
    %0 = arith.muli %arg1, %c8_i32 : i32
    %1 = tpu.assume_multiple %0, 8 : i32
    %c0 = arith.constant 0 : index
    %c0_0 = arith.constant 0 : index
    %c0_1 = arith.constant 0 : index
    %2 = vector.load %arg2[%c0, %c0_0, %c0_1] : memref<1x8x32xf32, #tpu.memory_space<vmem>>, vector<1x8x32xf32>
    %3 = vector.shape_cast %2 : vector<1x8x32xf32> to vector<8x32xf32>
    %c0_2 = arith.constant 0 : index
    %c0_3 = arith.constant 0 : index
    %c0_4 = arith.constant 0 : index
    %4 = vector.load %arg3[%c0_2, %c0_3, %c0_4] : memref<1x8x32xf32, #tpu.memory_space<vmem>>, vector<1x8x32xf32>
    %5 = vector.shape_cast %4 : vector<1x8x32xf32> to vector<8x32xf32>
    %c0_5 = arith.constant 0 : index
    %6 = arith.index_cast %1 : i32 to index
    %c0_6 = arith.constant 0 : index
    %7 = vector.load %arg2[%c0_5, %6, %c0_6] : memref<1x8x32xf32, #tpu.memory_space<vmem>>, vector<1x8x32xf32>
    %8 = vector.shape_cast %7 : vector<1x8x32xf32> to vector<8x32xf32>
    %c0_7 = arith.constant 0 : index
    %c0_8 = arith.constant 0 : index
    %c0_9 = arith.constant 0 : index
    %9 = vector.load %arg4[%c0_7, %c0_8, %c0_9] : memref<1x8x8xf32, #tpu.memory_space<vmem>>, vector<1x8x8xf32>
    %10 = vector.shape_cast %9 : vector<1x8x8xf32> to vector<8x8xf32>
    %c0_10 = arith.constant 0 : index
    %c0_11 = arith.constant 0 : index
    %11 = vector.load %arg6[%c0_10, %c0_11] : memref<32x64xf32, #tpu.memory_space<vmem>>, vector<32x64xf32>
    %c0_12 = arith.constant 0 : index
    %c0_13 = arith.constant 0 : index
    %12 = vector.load %arg7[%c0_12, %c0_13] : memref<1x64xf32, #tpu.memory_space<vmem>>, vector<1x64xf32>
    %c0_14 = arith.constant 0 : index
    %c0_15 = arith.constant 0 : index
    %13 = vector.load %arg8[%c0_14, %c0_15] : memref<32x64xf32, #tpu.memory_space<vmem>>, vector<32x64xf32>
    %c0_16 = arith.constant 0 : index
    %c0_17 = arith.constant 0 : index
    %14 = vector.load %arg9[%c0_16, %c0_17] : memref<1x64xf32, #tpu.memory_space<vmem>>, vector<1x64xf32>
    %c0_18 = arith.constant 0 : index
    %c0_19 = arith.constant 0 : index
    %15 = vector.load %arg10[%c0_18, %c0_19] : memref<32x64xf32, #tpu.memory_space<vmem>>, vector<32x64xf32>
    %c0_20 = arith.constant 0 : index
    %c0_21 = arith.constant 0 : index
    %16 = vector.load %arg11[%c0_20, %c0_21] : memref<1x64xf32, #tpu.memory_space<vmem>>, vector<1x64xf32>
    %c0_22 = arith.constant 0 : index
    %c0_23 = arith.constant 0 : index
    %17 = vector.load %arg12[%c0_22, %c0_23] : memref<64x32xf32, #tpu.memory_space<vmem>>, vector<64x32xf32>
    %c0_24 = arith.constant 0 : index
    %c0_25 = arith.constant 0 : index
    %18 = vector.load %arg13[%c0_24, %c0_25] : memref<1x32xf32, #tpu.memory_space<vmem>>, vector<1x32xf32>
    %cst = arith.constant dense<0.000000e+00> : vector<8x64xf32>
    %19 = tpu.matmul %8, %11, %cst {dimension_numbers = #tpu.dot_dimension_numbers<[1], [0], [0], [1], [0, 0, 1, 1], [], []>} : vector<8x32xf32>, vector<32x64xf32>, vector<8x64xf32> -> vector<8x64xf32>
    %20 = vector.broadcast %12 : vector<1x64xf32> to vector<8x64xf32>
    %21 = arith.addf %19, %20 : vector<8x64xf32>
    %cst_26 = arith.constant 0.176776692 : f32
    %22 = vector.broadcast %cst_26 : f32 to vector<8x64xf32>
    %23 = arith.mulf %21, %22 : vector<8x64xf32>
    %cst_27 = arith.constant dense<0.000000e+00> : vector<8x64xf32>
    %24 = tpu.matmul %3, %13, %cst_27 {dimension_numbers = #tpu.dot_dimension_numbers<[1], [0], [0], [1], [0, 0, 1, 1], [], []>} : vector<8x32xf32>, vector<32x64xf32>, vector<8x64xf32> -> vector<8x64xf32>
    %25 = vector.broadcast %14 : vector<1x64xf32> to vector<8x64xf32>
    %26 = arith.addf %24, %25 : vector<8x64xf32>
    %cst_28 = arith.constant dense<0.000000e+00> : vector<8x64xf32>
    %27 = tpu.matmul %3, %15, %cst_28 {dimension_numbers = #tpu.dot_dimension_numbers<[1], [0], [0], [1], [0, 0, 1, 1], [], []>} : vector<8x32xf32>, vector<32x64xf32>, vector<8x64xf32> -> vector<8x64xf32>
    %28 = vector.broadcast %16 : vector<1x64xf32> to vector<8x64xf32>
    %29 = arith.addf %27, %28 : vector<8x64xf32>
    %cst_29 = arith.constant 5.000000e-01 : f32
    %30 = vector.broadcast %cst_29 : f32 to vector<8x8xf32>
    %31 = arith.cmpf ogt, %10, %30 : vector<8x8xf32>
    %cst_30 = arith.constant -1.000000e+10 : f32
    %cst_31 = arith.constant 0.000000e+00 : f32
    %32 = vector.broadcast %cst_30 : f32 to vector<8x8xf32>
    %33 = vector.broadcast %cst_31 : f32 to vector<8x8xf32>
    %34 = arith.select %31, %32, %33 : vector<8x8xi1>, vector<8x8xf32>
    %35 = vector.extract_strided_slice %23 {offsets = [0, 0], sizes = [8, 8], strides = [1, 1]} : vector<8x64xf32> to vector<8x8xf32>
    %36 = vector.extract_strided_slice %26 {offsets = [0, 0], sizes = [8, 8], strides = [1, 1]} : vector<8x64xf32> to vector<8x8xf32>
    %37 = vector.extract_strided_slice %29 {offsets = [0, 0], sizes = [8, 8], strides = [1, 1]} : vector<8x64xf32> to vector<8x8xf32>
    "tpu.trace_start"() <{level = 10 : i32, message = "qf,kf->qk"}> : () -> ()
    %cst_32 = arith.constant dense<0.000000e+00> : vector<8x8xf32>
    %38 = tpu.matmul %35, %36, %cst_32 {dimension_numbers = #tpu.dot_dimension_numbers<[1], [1], [0], [0], [0, 0, 1, 0], [], []>} : vector<8x8xf32>, vector<8x8xf32>, vector<8x8xf32> -> vector<8x8xf32>
    "tpu.trace_stop"() : () -> ()
    %39 = arith.addf %38, %34 : vector<8x8xf32>
    %cst_33 = arith.constant dense<0xFF800000> : vector<8xf32>
    %40 = vector.multi_reduction <maximumf>, %39, %cst_33 [1] : vector<8x8xf32> to vector<8xf32>
    %41 = vector.shape_cast %40 : vector<8xf32> to vector<8x1xf32>
    %42 = vector.broadcast %41 : vector<8x1xf32> to vector<8x8xf32>
    %43 = arith.subf %39, %42 : vector<8x8xf32>
    %44 = math.exp %43 : vector<8x8xf32>
    %cst_34 = arith.constant dense<0.000000e+00> : vector<8xf32>
    %45 = vector.multi_reduction <add>, %44, %cst_34 [1] : vector<8x8xf32> to vector<8xf32>
    %46 = vector.shape_cast %45 : vector<8xf32> to vector<8x1xf32>
    %47 = tpu.reciprocal %46 {approx = true} : vector<8x1xf32> -> vector<8x1xf32>
    %48 = vector.broadcast %47 : vector<8x1xf32> to vector<8x8xf32>
    %49 = arith.mulf %44, %48 : vector<8x8xf32>
    "tpu.trace_start"() <{level = 10 : i32, message = "qk,kf->qf"}> : () -> ()
    %cst_35 = arith.constant dense<0.000000e+00> : vector<8x8xf32>
    %50 = tpu.matmul %49, %37, %cst_35 {dimension_numbers = #tpu.dot_dimension_numbers<[1], [0], [0], [1], [0, 0, 1, 1], [], []>} : vector<8x8xf32>, vector<8x8xf32>, vector<8x8xf32> -> vector<8x8xf32>
    "tpu.trace_stop"() : () -> ()
    %51 = vector.extract_strided_slice %23 {offsets = [0, 8], sizes = [8, 8], strides = [1, 1]} : vector<8x64xf32> to vector<8x8xf32>
    %52 = vector.extract_strided_slice %26 {offsets = [0, 8], sizes = [8, 8], strides = [1, 1]} : vector<8x64xf32> to vector<8x8xf32>
    %53 = vector.extract_strided_slice %29 {offsets = [0, 8], sizes = [8, 8], strides = [1, 1]} : vector<8x64xf32> to vector<8x8xf32>
    "tpu.trace_start"() <{level = 10 : i32, message = "qf,kf->qk"}> : () -> ()
    %cst_36 = arith.constant dense<0.000000e+00> : vector<8x8xf32>
    %54 = tpu.matmul %51, %52, %cst_36 {dimension_numbers = #tpu.dot_dimension_numbers<[1], [1], [0], [0], [0, 0, 1, 0], [], []>} : vector<8x8xf32>, vector<8x8xf32>, vector<8x8xf32> -> vector<8x8xf32>
    "tpu.trace_stop"() : () -> ()
    %55 = arith.addf %54, %34 : vector<8x8xf32>
    %cst_37 = arith.constant dense<0xFF800000> : vector<8xf32>
    %56 = vector.multi_reduction <maximumf>, %55, %cst_37 [1] : vector<8x8xf32> to vector<8xf32>
    %57 = vector.shape_cast %56 : vector<8xf32> to vector<8x1xf32>
    %58 = vector.broadcast %57 : vector<8x1xf32> to vector<8x8xf32>
    %59 = arith.subf %55, %58 : vector<8x8xf32>
    %60 = math.exp %59 : vector<8x8xf32>
    %cst_38 = arith.constant dense<0.000000e+00> : vector<8xf32>
    %61 = vector.multi_reduction <add>, %60, %cst_38 [1] : vector<8x8xf32> to vector<8xf32>
    %62 = vector.shape_cast %61 : vector<8xf32> to vector<8x1xf32>
    %63 = tpu.reciprocal %62 {approx = true} : vector<8x1xf32> -> vector<8x1xf32>
    %64 = vector.broadcast %63 : vector<8x1xf32> to vector<8x8xf32>
    %65 = arith.mulf %60, %64 : vector<8x8xf32>
    "tpu.trace_start"() <{level = 10 : i32, message = "qk,kf->qf"}> : () -> ()
    %cst_39 = arith.constant dense<0.000000e+00> : vector<8x8xf32>
    %66 = tpu.matmul %65, %53, %cst_39 {dimension_numbers = #tpu.dot_dimension_numbers<[1], [0], [0], [1], [0, 0, 1, 1], [], []>} : vector<8x8xf32>, vector<8x8xf32>, vector<8x8xf32> -> vector<8x8xf32>
    "tpu.trace_stop"() : () -> ()
    %67 = vector.extract_strided_slice %23 {offsets = [0, 16], sizes = [8, 8], strides = [1, 1]} : vector<8x64xf32> to vector<8x8xf32>
    %68 = vector.extract_strided_slice %26 {offsets = [0, 16], sizes = [8, 8], strides = [1, 1]} : vector<8x64xf32> to vector<8x8xf32>
    %69 = vector.extract_strided_slice %29 {offsets = [0, 16], sizes = [8, 8], strides = [1, 1]} : vector<8x64xf32> to vector<8x8xf32>
    "tpu.trace_start"() <{level = 10 : i32, message = "qf,kf->qk"}> : () -> ()
    %cst_40 = arith.constant dense<0.000000e+00> : vector<8x8xf32>
    %70 = tpu.matmul %67, %68, %cst_40 {dimension_numbers = #tpu.dot_dimension_numbers<[1], [1], [0], [0], [0, 0, 1, 0], [], []>} : vector<8x8xf32>, vector<8x8xf32>, vector<8x8xf32> -> vector<8x8xf32>
    "tpu.trace_stop"() : () -> ()
    %71 = arith.addf %70, %34 : vector<8x8xf32>
    %cst_41 = arith.constant dense<0xFF800000> : vector<8xf32>
    %72 = vector.multi_reduction <maximumf>, %71, %cst_41 [1] : vector<8x8xf32> to vector<8xf32>
    %73 = vector.shape_cast %72 : vector<8xf32> to vector<8x1xf32>
    %74 = vector.broadcast %73 : vector<8x1xf32> to vector<8x8xf32>
    %75 = arith.subf %71, %74 : vector<8x8xf32>
    %76 = math.exp %75 : vector<8x8xf32>
    %cst_42 = arith.constant dense<0.000000e+00> : vector<8xf32>
    %77 = vector.multi_reduction <add>, %76, %cst_42 [1] : vector<8x8xf32> to vector<8xf32>
    %78 = vector.shape_cast %77 : vector<8xf32> to vector<8x1xf32>
    %79 = tpu.reciprocal %78 {approx = true} : vector<8x1xf32> -> vector<8x1xf32>
    %80 = vector.broadcast %79 : vector<8x1xf32> to vector<8x8xf32>
    %81 = arith.mulf %76, %80 : vector<8x8xf32>
    "tpu.trace_start"() <{level = 10 : i32, message = "qk,kf->qf"}> : () -> ()
    %cst_43 = arith.constant dense<0.000000e+00> : vector<8x8xf32>
    %82 = tpu.matmul %81, %69, %cst_43 {dimension_numbers = #tpu.dot_dimension_numbers<[1], [0], [0], [1], [0, 0, 1, 1], [], []>} : vector<8x8xf32>, vector<8x8xf32>, vector<8x8xf32> -> vector<8x8xf32>
    "tpu.trace_stop"() : () -> ()
    %83 = vector.extract_strided_slice %23 {offsets = [0, 24], sizes = [8, 8], strides = [1, 1]} : vector<8x64xf32> to vector<8x8xf32>
    %84 = vector.extract_strided_slice %26 {offsets = [0, 24], sizes = [8, 8], strides = [1, 1]} : vector<8x64xf32> to vector<8x8xf32>
    %85 = vector.extract_strided_slice %29 {offsets = [0, 24], sizes = [8, 8], strides = [1, 1]} : vector<8x64xf32> to vector<8x8xf32>
    "tpu.trace_start"() <{level = 10 : i32, message = "qf,kf->qk"}> : () -> ()
    %cst_44 = arith.constant dense<0.000000e+00> : vector<8x8xf32>
    %86 = tpu.matmul %83, %84, %cst_44 {dimension_numbers = #tpu.dot_dimension_numbers<[1], [1], [0], [0], [0, 0, 1, 0], [], []>} : vector<8x8xf32>, vector<8x8xf32>, vector<8x8xf32> -> vector<8x8xf32>
    "tpu.trace_stop"() : () -> ()
    %87 = arith.addf %86, %34 : vector<8x8xf32>
    %cst_45 = arith.constant dense<0xFF800000> : vector<8xf32>
    %88 = vector.multi_reduction <maximumf>, %87, %cst_45 [1] : vector<8x8xf32> to vector<8xf32>
    %89 = vector.shape_cast %88 : vector<8xf32> to vector<8x1xf32>
    %90 = vector.broadcast %89 : vector<8x1xf32> to vector<8x8xf32>
    %91 = arith.subf %87, %90 : vector<8x8xf32>
    %92 = math.exp %91 : vector<8x8xf32>
    %cst_46 = arith.constant dense<0.000000e+00> : vector<8xf32>
    %93 = vector.multi_reduction <add>, %92, %cst_46 [1] : vector<8x8xf32> to vector<8xf32>
    %94 = vector.shape_cast %93 : vector<8xf32> to vector<8x1xf32>
    %95 = tpu.reciprocal %94 {approx = true} : vector<8x1xf32> -> vector<8x1xf32>
    %96 = vector.broadcast %95 : vector<8x1xf32> to vector<8x8xf32>
    %97 = arith.mulf %92, %96 : vector<8x8xf32>
    "tpu.trace_start"() <{level = 10 : i32, message = "qk,kf->qf"}> : () -> ()
    %cst_47 = arith.constant dense<0.000000e+00> : vector<8x8xf32>
    %98 = tpu.matmul %97, %85, %cst_47 {dimension_numbers = #tpu.dot_dimension_numbers<[1], [0], [0], [1], [0, 0, 1, 1], [], []>} : vector<8x8xf32>, vector<8x8xf32>, vector<8x8xf32> -> vector<8x8xf32>
    "tpu.trace_stop"() : () -> ()
    %99 = vector.extract_strided_slice %23 {offsets = [0, 32], sizes = [8, 8], strides = [1, 1]} : vector<8x64xf32> to vector<8x8xf32>
    %100 = vector.extract_strided_slice %26 {offsets = [0, 32], sizes = [8, 8], strides = [1, 1]} : vector<8x64xf32> to vector<8x8xf32>
    %101 = vector.extract_strided_slice %29 {offsets = [0, 32], sizes = [8, 8], strides = [1, 1]} : vector<8x64xf32> to vector<8x8xf32>
    "tpu.trace_start"() <{level = 10 : i32, message = "qf,kf->qk"}> : () -> ()
    %cst_48 = arith.constant dense<0.000000e+00> : vector<8x8xf32>
    %102 = tpu.matmul %99, %100, %cst_48 {dimension_numbers = #tpu.dot_dimension_numbers<[1], [1], [0], [0], [0, 0, 1, 0], [], []>} : vector<8x8xf32>, vector<8x8xf32>, vector<8x8xf32> -> vector<8x8xf32>
    "tpu.trace_stop"() : () -> ()
    %103 = arith.addf %102, %34 : vector<8x8xf32>
    %cst_49 = arith.constant dense<0xFF800000> : vector<8xf32>
    %104 = vector.multi_reduction <maximumf>, %103, %cst_49 [1] : vector<8x8xf32> to vector<8xf32>
    %105 = vector.shape_cast %104 : vector<8xf32> to vector<8x1xf32>
    %106 = vector.broadcast %105 : vector<8x1xf32> to vector<8x8xf32>
    %107 = arith.subf %103, %106 : vector<8x8xf32>
    %108 = math.exp %107 : vector<8x8xf32>
    %cst_50 = arith.constant dense<0.000000e+00> : vector<8xf32>
    %109 = vector.multi_reduction <add>, %108, %cst_50 [1] : vector<8x8xf32> to vector<8xf32>
    %110 = vector.shape_cast %109 : vector<8xf32> to vector<8x1xf32>
    %111 = tpu.reciprocal %110 {approx = true} : vector<8x1xf32> -> vector<8x1xf32>
    %112 = vector.broadcast %111 : vector<8x1xf32> to vector<8x8xf32>
    %113 = arith.mulf %108, %112 : vector<8x8xf32>
    "tpu.trace_start"() <{level = 10 : i32, message = "qk,kf->qf"}> : () -> ()
    %cst_51 = arith.constant dense<0.000000e+00> : vector<8x8xf32>
    %114 = tpu.matmul %113, %101, %cst_51 {dimension_numbers = #tpu.dot_dimension_numbers<[1], [0], [0], [1], [0, 0, 1, 1], [], []>} : vector<8x8xf32>, vector<8x8xf32>, vector<8x8xf32> -> vector<8x8xf32>
    "tpu.trace_stop"() : () -> ()
    %115 = vector.extract_strided_slice %23 {offsets = [0, 40], sizes = [8, 8], strides = [1, 1]} : vector<8x64xf32> to vector<8x8xf32>
    %116 = vector.extract_strided_slice %26 {offsets = [0, 40], sizes = [8, 8], strides = [1, 1]} : vector<8x64xf32> to vector<8x8xf32>
    %117 = vector.extract_strided_slice %29 {offsets = [0, 40], sizes = [8, 8], strides = [1, 1]} : vector<8x64xf32> to vector<8x8xf32>
    "tpu.trace_start"() <{level = 10 : i32, message = "qf,kf->qk"}> : () -> ()
    %cst_52 = arith.constant dense<0.000000e+00> : vector<8x8xf32>
    %118 = tpu.matmul %115, %116, %cst_52 {dimension_numbers = #tpu.dot_dimension_numbers<[1], [1], [0], [0], [0, 0, 1, 0], [], []>} : vector<8x8xf32>, vector<8x8xf32>, vector<8x8xf32> -> vector<8x8xf32>
    "tpu.trace_stop"() : () -> ()
    %119 = arith.addf %118, %34 : vector<8x8xf32>
    %cst_53 = arith.constant dense<0xFF800000> : vector<8xf32>
    %120 = vector.multi_reduction <maximumf>, %119, %cst_53 [1] : vector<8x8xf32> to vector<8xf32>
    %121 = vector.shape_cast %120 : vector<8xf32> to vector<8x1xf32>
    %122 = vector.broadcast %121 : vector<8x1xf32> to vector<8x8xf32>
    %123 = arith.subf %119, %122 : vector<8x8xf32>
    %124 = math.exp %123 : vector<8x8xf32>
    %cst_54 = arith.constant dense<0.000000e+00> : vector<8xf32>
    %125 = vector.multi_reduction <add>, %124, %cst_54 [1] : vector<8x8xf32> to vector<8xf32>
    %126 = vector.shape_cast %125 : vector<8xf32> to vector<8x1xf32>
    %127 = tpu.reciprocal %126 {approx = true} : vector<8x1xf32> -> vector<8x1xf32>
    %128 = vector.broadcast %127 : vector<8x1xf32> to vector<8x8xf32>
    %129 = arith.mulf %124, %128 : vector<8x8xf32>
    "tpu.trace_start"() <{level = 10 : i32, message = "qk,kf->qf"}> : () -> ()
    %cst_55 = arith.constant dense<0.000000e+00> : vector<8x8xf32>
    %130 = tpu.matmul %129, %117, %cst_55 {dimension_numbers = #tpu.dot_dimension_numbers<[1], [0], [0], [1], [0, 0, 1, 1], [], []>} : vector<8x8xf32>, vector<8x8xf32>, vector<8x8xf32> -> vector<8x8xf32>
    "tpu.trace_stop"() : () -> ()
    %131 = vector.extract_strided_slice %23 {offsets = [0, 48], sizes = [8, 8], strides = [1, 1]} : vector<8x64xf32> to vector<8x8xf32>
    %132 = vector.extract_strided_slice %26 {offsets = [0, 48], sizes = [8, 8], strides = [1, 1]} : vector<8x64xf32> to vector<8x8xf32>
    %133 = vector.extract_strided_slice %29 {offsets = [0, 48], sizes = [8, 8], strides = [1, 1]} : vector<8x64xf32> to vector<8x8xf32>
    "tpu.trace_start"() <{level = 10 : i32, message = "qf,kf->qk"}> : () -> ()
    %cst_56 = arith.constant dense<0.000000e+00> : vector<8x8xf32>
    %134 = tpu.matmul %131, %132, %cst_56 {dimension_numbers = #tpu.dot_dimension_numbers<[1], [1], [0], [0], [0, 0, 1, 0], [], []>} : vector<8x8xf32>, vector<8x8xf32>, vector<8x8xf32> -> vector<8x8xf32>
    "tpu.trace_stop"() : () -> ()
    %135 = arith.addf %134, %34 : vector<8x8xf32>
    %cst_57 = arith.constant dense<0xFF800000> : vector<8xf32>
    %136 = vector.multi_reduction <maximumf>, %135, %cst_57 [1] : vector<8x8xf32> to vector<8xf32>
    %137 = vector.shape_cast %136 : vector<8xf32> to vector<8x1xf32>
    %138 = vector.broadcast %137 : vector<8x1xf32> to vector<8x8xf32>
    %139 = arith.subf %135, %138 : vector<8x8xf32>
    %140 = math.exp %139 : vector<8x8xf32>
    %cst_58 = arith.constant dense<0.000000e+00> : vector<8xf32>
    %141 = vector.multi_reduction <add>, %140, %cst_58 [1] : vector<8x8xf32> to vector<8xf32>
    %142 = vector.shape_cast %141 : vector<8xf32> to vector<8x1xf32>
    %143 = tpu.reciprocal %142 {approx = true} : vector<8x1xf32> -> vector<8x1xf32>
    %144 = vector.broadcast %143 : vector<8x1xf32> to vector<8x8xf32>
    %145 = arith.mulf %140, %144 : vector<8x8xf32>
    "tpu.trace_start"() <{level = 10 : i32, message = "qk,kf->qf"}> : () -> ()
    %cst_59 = arith.constant dense<0.000000e+00> : vector<8x8xf32>
    %146 = tpu.matmul %145, %133, %cst_59 {dimension_numbers = #tpu.dot_dimension_numbers<[1], [0], [0], [1], [0, 0, 1, 1], [], []>} : vector<8x8xf32>, vector<8x8xf32>, vector<8x8xf32> -> vector<8x8xf32>
    "tpu.trace_stop"() : () -> ()
    %147 = vector.extract_strided_slice %23 {offsets = [0, 56], sizes = [8, 8], strides = [1, 1]} : vector<8x64xf32> to vector<8x8xf32>
    %148 = vector.extract_strided_slice %26 {offsets = [0, 56], sizes = [8, 8], strides = [1, 1]} : vector<8x64xf32> to vector<8x8xf32>
    %149 = vector.extract_strided_slice %29 {offsets = [0, 56], sizes = [8, 8], strides = [1, 1]} : vector<8x64xf32> to vector<8x8xf32>
    "tpu.trace_start"() <{level = 10 : i32, message = "qf,kf->qk"}> : () -> ()
    %cst_60 = arith.constant dense<0.000000e+00> : vector<8x8xf32>
    %150 = tpu.matmul %147, %148, %cst_60 {dimension_numbers = #tpu.dot_dimension_numbers<[1], [1], [0], [0], [0, 0, 1, 0], [], []>} : vector<8x8xf32>, vector<8x8xf32>, vector<8x8xf32> -> vector<8x8xf32>
    "tpu.trace_stop"() : () -> ()
    %151 = arith.addf %150, %34 : vector<8x8xf32>
    %cst_61 = arith.constant dense<0xFF800000> : vector<8xf32>
    %152 = vector.multi_reduction <maximumf>, %151, %cst_61 [1] : vector<8x8xf32> to vector<8xf32>
    %153 = vector.shape_cast %152 : vector<8xf32> to vector<8x1xf32>
    %154 = vector.broadcast %153 : vector<8x1xf32> to vector<8x8xf32>
    %155 = arith.subf %151, %154 : vector<8x8xf32>
    %156 = math.exp %155 : vector<8x8xf32>
    %cst_62 = arith.constant dense<0.000000e+00> : vector<8xf32>
    %157 = vector.multi_reduction <add>, %156, %cst_62 [1] : vector<8x8xf32> to vector<8xf32>
    %158 = vector.shape_cast %157 : vector<8xf32> to vector<8x1xf32>
    %159 = tpu.reciprocal %158 {approx = true} : vector<8x1xf32> -> vector<8x1xf32>
    %160 = vector.broadcast %159 : vector<8x1xf32> to vector<8x8xf32>
    %161 = arith.mulf %156, %160 : vector<8x8xf32>
    "tpu.trace_start"() <{level = 10 : i32, message = "qk,kf->qf"}> : () -> ()
    %cst_63 = arith.constant dense<0.000000e+00> : vector<8x8xf32>
    %162 = tpu.matmul %161, %149, %cst_63 {dimension_numbers = #tpu.dot_dimension_numbers<[1], [0], [0], [1], [0, 0, 1, 1], [], []>} : vector<8x8xf32>, vector<8x8xf32>, vector<8x8xf32> -> vector<8x8xf32>
    "tpu.trace_stop"() : () -> ()
    %163 = tpu.concatenate %50, %66, %82, %98, %114, %130, %146, %162 in 1 : vector<8x8xf32>, vector<8x8xf32>, vector<8x8xf32>, vector<8x8xf32>, vector<8x8xf32>, vector<8x8xf32>, vector<8x8xf32>, vector<8x8xf32> -> vector<8x64xf32>
    %cst_64 = arith.constant dense<0.000000e+00> : vector<8x32xf32>
    %164 = tpu.matmul %163, %17, %cst_64 {dimension_numbers = #tpu.dot_dimension_numbers<[1], [0], [0], [1], [0, 0, 1, 1], [], []>} : vector<8x64xf32>, vector<64x32xf32>, vector<8x32xf32> -> vector<8x32xf32>
    %165 = vector.broadcast %18 : vector<1x32xf32> to vector<8x32xf32>
    %166 = arith.addf %164, %165 : vector<8x32xf32>
    %167 = arith.addf %166, %8 : vector<8x32xf32>
    %cst_65 = arith.constant dense<0.000000e+00> : vector<8xf32>
    %168 = vector.multi_reduction <add>, %167, %cst_65 [1] : vector<8x32xf32> to vector<8xf32>
    %169 = vector.shape_cast %168 : vector<8xf32> to vector<8x1xf32>
    %cst_66 = arith.constant 3.200000e+01 : f32
    %170 = vector.broadcast %cst_66 : f32 to vector<8x1xf32>
    %171 = arith.divf %169, %170 : vector<8x1xf32>
    %172 = vector.broadcast %171 : vector<8x1xf32> to vector<8x32xf32>
    %173 = arith.subf %167, %172 : vector<8x32xf32>
    %174 = arith.mulf %173, %173 : vector<8x32xf32>
    %cst_67 = arith.constant dense<0.000000e+00> : vector<8xf32>
    %175 = vector.multi_reduction <add>, %174, %cst_67 [1] : vector<8x32xf32> to vector<8xf32>
    %176 = vector.shape_cast %175 : vector<8xf32> to vector<8x1xf32>
    %cst_68 = arith.constant 0.0322580636 : f32
    %177 = vector.broadcast %cst_68 : f32 to vector<8x1xf32>
    %178 = arith.mulf %176, %177 : vector<8x1xf32>
    %cst_69 = arith.constant 9.99999993E-9 : f32
    %179 = vector.broadcast %cst_69 : f32 to vector<8x1xf32>
    %180 = arith.addf %178, %179 : vector<8x1xf32>
    %181 = math.rsqrt %180 : vector<8x1xf32>
    %182 = vector.broadcast %181 : vector<8x1xf32> to vector<8x32xf32>
    %183 = arith.mulf %173, %182 : vector<8x32xf32>
    %c0_70 = arith.constant 0 : index
    %c0_71 = arith.constant 0 : index
    %c0_72 = arith.constant 0 : index
    %184 = vector.load %arg5[%c0_70, %c0_71, %c0_72] : memref<1x8x8xf32, #tpu.memory_space<vmem>>, vector<1x8x8xf32>
    %185 = vector.shape_cast %184 : vector<1x8x8xf32> to vector<8x8xf32>
    %c0_73 = arith.constant 0 : index
    %c0_74 = arith.constant 0 : index
    %186 = vector.load %arg14[%c0_73, %c0_74] : memref<32x64xf32, #tpu.memory_space<vmem>>, vector<32x64xf32>
    %c0_75 = arith.constant 0 : index
    %c0_76 = arith.constant 0 : index
    %187 = vector.load %arg15[%c0_75, %c0_76] : memref<1x64xf32, #tpu.memory_space<vmem>>, vector<1x64xf32>
    %c0_77 = arith.constant 0 : index
    %c0_78 = arith.constant 0 : index
    %188 = vector.load %arg16[%c0_77, %c0_78] : memref<32x64xf32, #tpu.memory_space<vmem>>, vector<32x64xf32>
    %c0_79 = arith.constant 0 : index
    %c0_80 = arith.constant 0 : index
    %189 = vector.load %arg17[%c0_79, %c0_80] : memref<1x64xf32, #tpu.memory_space<vmem>>, vector<1x64xf32>
    %c0_81 = arith.constant 0 : index
    %c0_82 = arith.constant 0 : index
    %190 = vector.load %arg18[%c0_81, %c0_82] : memref<32x64xf32, #tpu.memory_space<vmem>>, vector<32x64xf32>
    %c0_83 = arith.constant 0 : index
    %c0_84 = arith.constant 0 : index
    %191 = vector.load %arg19[%c0_83, %c0_84] : memref<1x64xf32, #tpu.memory_space<vmem>>, vector<1x64xf32>
    %c0_85 = arith.constant 0 : index
    %c0_86 = arith.constant 0 : index
    %192 = vector.load %arg20[%c0_85, %c0_86] : memref<64x32xf32, #tpu.memory_space<vmem>>, vector<64x32xf32>
    %c0_87 = arith.constant 0 : index
    %c0_88 = arith.constant 0 : index
    %193 = vector.load %arg21[%c0_87, %c0_88] : memref<1x32xf32, #tpu.memory_space<vmem>>, vector<1x32xf32>
    %cst_89 = arith.constant dense<0.000000e+00> : vector<8x64xf32>
    %194 = tpu.matmul %183, %186, %cst_89 {dimension_numbers = #tpu.dot_dimension_numbers<[1], [0], [0], [1], [0, 0, 1, 1], [], []>} : vector<8x32xf32>, vector<32x64xf32>, vector<8x64xf32> -> vector<8x64xf32>
    %195 = vector.broadcast %187 : vector<1x64xf32> to vector<8x64xf32>
    %196 = arith.addf %194, %195 : vector<8x64xf32>
    %cst_90 = arith.constant 0.176776692 : f32
    %197 = vector.broadcast %cst_90 : f32 to vector<8x64xf32>
    %198 = arith.mulf %196, %197 : vector<8x64xf32>
    %cst_91 = arith.constant dense<0.000000e+00> : vector<8x64xf32>
    %199 = tpu.matmul %5, %188, %cst_91 {dimension_numbers = #tpu.dot_dimension_numbers<[1], [0], [0], [1], [0, 0, 1, 1], [], []>} : vector<8x32xf32>, vector<32x64xf32>, vector<8x64xf32> -> vector<8x64xf32>
    %200 = vector.broadcast %189 : vector<1x64xf32> to vector<8x64xf32>
    %201 = arith.addf %199, %200 : vector<8x64xf32>
    %cst_92 = arith.constant dense<0.000000e+00> : vector<8x64xf32>
    %202 = tpu.matmul %5, %190, %cst_92 {dimension_numbers = #tpu.dot_dimension_numbers<[1], [0], [0], [1], [0, 0, 1, 1], [], []>} : vector<8x32xf32>, vector<32x64xf32>, vector<8x64xf32> -> vector<8x64xf32>
    %203 = vector.broadcast %191 : vector<1x64xf32> to vector<8x64xf32>
    %204 = arith.addf %202, %203 : vector<8x64xf32>
    %cst_93 = arith.constant 5.000000e-01 : f32
    %205 = vector.broadcast %cst_93 : f32 to vector<8x8xf32>
    %206 = arith.cmpf ogt, %185, %205 : vector<8x8xf32>
    %cst_94 = arith.constant -1.000000e+10 : f32
    %cst_95 = arith.constant 0.000000e+00 : f32
    %207 = vector.broadcast %cst_94 : f32 to vector<8x8xf32>
    %208 = vector.broadcast %cst_95 : f32 to vector<8x8xf32>
    %209 = arith.select %206, %207, %208 : vector<8x8xi1>, vector<8x8xf32>
    %210 = vector.extract_strided_slice %198 {offsets = [0, 0], sizes = [8, 8], strides = [1, 1]} : vector<8x64xf32> to vector<8x8xf32>
    %211 = vector.extract_strided_slice %201 {offsets = [0, 0], sizes = [8, 8], strides = [1, 1]} : vector<8x64xf32> to vector<8x8xf32>
    %212 = vector.extract_strided_slice %204 {offsets = [0, 0], sizes = [8, 8], strides = [1, 1]} : vector<8x64xf32> to vector<8x8xf32>
    "tpu.trace_start"() <{level = 10 : i32, message = "qf,kf->qk"}> : () -> ()
    %cst_96 = arith.constant dense<0.000000e+00> : vector<8x8xf32>
    %213 = tpu.matmul %210, %211, %cst_96 {dimension_numbers = #tpu.dot_dimension_numbers<[1], [1], [0], [0], [0, 0, 1, 0], [], []>} : vector<8x8xf32>, vector<8x8xf32>, vector<8x8xf32> -> vector<8x8xf32>
    "tpu.trace_stop"() : () -> ()
    %214 = arith.addf %213, %209 : vector<8x8xf32>
    %cst_97 = arith.constant dense<0xFF800000> : vector<8xf32>
    %215 = vector.multi_reduction <maximumf>, %214, %cst_97 [1] : vector<8x8xf32> to vector<8xf32>
    %216 = vector.shape_cast %215 : vector<8xf32> to vector<8x1xf32>
    %217 = vector.broadcast %216 : vector<8x1xf32> to vector<8x8xf32>
    %218 = arith.subf %214, %217 : vector<8x8xf32>
    %219 = math.exp %218 : vector<8x8xf32>
    %cst_98 = arith.constant dense<0.000000e+00> : vector<8xf32>
    %220 = vector.multi_reduction <add>, %219, %cst_98 [1] : vector<8x8xf32> to vector<8xf32>
    %221 = vector.shape_cast %220 : vector<8xf32> to vector<8x1xf32>
    %222 = tpu.reciprocal %221 {approx = true} : vector<8x1xf32> -> vector<8x1xf32>
    %223 = vector.broadcast %222 : vector<8x1xf32> to vector<8x8xf32>
    %224 = arith.mulf %219, %223 : vector<8x8xf32>
    "tpu.trace_start"() <{level = 10 : i32, message = "qk,kf->qf"}> : () -> ()
    %cst_99 = arith.constant dense<0.000000e+00> : vector<8x8xf32>
    %225 = tpu.matmul %224, %212, %cst_99 {dimension_numbers = #tpu.dot_dimension_numbers<[1], [0], [0], [1], [0, 0, 1, 1], [], []>} : vector<8x8xf32>, vector<8x8xf32>, vector<8x8xf32> -> vector<8x8xf32>
    "tpu.trace_stop"() : () -> ()
    %226 = vector.extract_strided_slice %198 {offsets = [0, 8], sizes = [8, 8], strides = [1, 1]} : vector<8x64xf32> to vector<8x8xf32>
    %227 = vector.extract_strided_slice %201 {offsets = [0, 8], sizes = [8, 8], strides = [1, 1]} : vector<8x64xf32> to vector<8x8xf32>
    %228 = vector.extract_strided_slice %204 {offsets = [0, 8], sizes = [8, 8], strides = [1, 1]} : vector<8x64xf32> to vector<8x8xf32>
    "tpu.trace_start"() <{level = 10 : i32, message = "qf,kf->qk"}> : () -> ()
    %cst_100 = arith.constant dense<0.000000e+00> : vector<8x8xf32>
    %229 = tpu.matmul %226, %227, %cst_100 {dimension_numbers = #tpu.dot_dimension_numbers<[1], [1], [0], [0], [0, 0, 1, 0], [], []>} : vector<8x8xf32>, vector<8x8xf32>, vector<8x8xf32> -> vector<8x8xf32>
    "tpu.trace_stop"() : () -> ()
    %230 = arith.addf %229, %209 : vector<8x8xf32>
    %cst_101 = arith.constant dense<0xFF800000> : vector<8xf32>
    %231 = vector.multi_reduction <maximumf>, %230, %cst_101 [1] : vector<8x8xf32> to vector<8xf32>
    %232 = vector.shape_cast %231 : vector<8xf32> to vector<8x1xf32>
    %233 = vector.broadcast %232 : vector<8x1xf32> to vector<8x8xf32>
    %234 = arith.subf %230, %233 : vector<8x8xf32>
    %235 = math.exp %234 : vector<8x8xf32>
    %cst_102 = arith.constant dense<0.000000e+00> : vector<8xf32>
    %236 = vector.multi_reduction <add>, %235, %cst_102 [1] : vector<8x8xf32> to vector<8xf32>
    %237 = vector.shape_cast %236 : vector<8xf32> to vector<8x1xf32>
    %238 = tpu.reciprocal %237 {approx = true} : vector<8x1xf32> -> vector<8x1xf32>
    %239 = vector.broadcast %238 : vector<8x1xf32> to vector<8x8xf32>
    %240 = arith.mulf %235, %239 : vector<8x8xf32>
    "tpu.trace_start"() <{level = 10 : i32, message = "qk,kf->qf"}> : () -> ()
    %cst_103 = arith.constant dense<0.000000e+00> : vector<8x8xf32>
    %241 = tpu.matmul %240, %228, %cst_103 {dimension_numbers = #tpu.dot_dimension_numbers<[1], [0], [0], [1], [0, 0, 1, 1], [], []>} : vector<8x8xf32>, vector<8x8xf32>, vector<8x8xf32> -> vector<8x8xf32>
    "tpu.trace_stop"() : () -> ()
    %242 = vector.extract_strided_slice %198 {offsets = [0, 16], sizes = [8, 8], strides = [1, 1]} : vector<8x64xf32> to vector<8x8xf32>
    %243 = vector.extract_strided_slice %201 {offsets = [0, 16], sizes = [8, 8], strides = [1, 1]} : vector<8x64xf32> to vector<8x8xf32>
    %244 = vector.extract_strided_slice %204 {offsets = [0, 16], sizes = [8, 8], strides = [1, 1]} : vector<8x64xf32> to vector<8x8xf32>
    "tpu.trace_start"() <{level = 10 : i32, message = "qf,kf->qk"}> : () -> ()
    %cst_104 = arith.constant dense<0.000000e+00> : vector<8x8xf32>
    %245 = tpu.matmul %242, %243, %cst_104 {dimension_numbers = #tpu.dot_dimension_numbers<[1], [1], [0], [0], [0, 0, 1, 0], [], []>} : vector<8x8xf32>, vector<8x8xf32>, vector<8x8xf32> -> vector<8x8xf32>
    "tpu.trace_stop"() : () -> ()
    %246 = arith.addf %245, %209 : vector<8x8xf32>
    %cst_105 = arith.constant dense<0xFF800000> : vector<8xf32>
    %247 = vector.multi_reduction <maximumf>, %246, %cst_105 [1] : vector<8x8xf32> to vector<8xf32>
    %248 = vector.shape_cast %247 : vector<8xf32> to vector<8x1xf32>
    %249 = vector.broadcast %248 : vector<8x1xf32> to vector<8x8xf32>
    %250 = arith.subf %246, %249 : vector<8x8xf32>
    %251 = math.exp %250 : vector<8x8xf32>
    %cst_106 = arith.constant dense<0.000000e+00> : vector<8xf32>
    %252 = vector.multi_reduction <add>, %251, %cst_106 [1] : vector<8x8xf32> to vector<8xf32>
    %253 = vector.shape_cast %252 : vector<8xf32> to vector<8x1xf32>
    %254 = tpu.reciprocal %253 {approx = true} : vector<8x1xf32> -> vector<8x1xf32>
    %255 = vector.broadcast %254 : vector<8x1xf32> to vector<8x8xf32>
    %256 = arith.mulf %251, %255 : vector<8x8xf32>
    "tpu.trace_start"() <{level = 10 : i32, message = "qk,kf->qf"}> : () -> ()
    %cst_107 = arith.constant dense<0.000000e+00> : vector<8x8xf32>
    %257 = tpu.matmul %256, %244, %cst_107 {dimension_numbers = #tpu.dot_dimension_numbers<[1], [0], [0], [1], [0, 0, 1, 1], [], []>} : vector<8x8xf32>, vector<8x8xf32>, vector<8x8xf32> -> vector<8x8xf32>
    "tpu.trace_stop"() : () -> ()
    %258 = vector.extract_strided_slice %198 {offsets = [0, 24], sizes = [8, 8], strides = [1, 1]} : vector<8x64xf32> to vector<8x8xf32>
    %259 = vector.extract_strided_slice %201 {offsets = [0, 24], sizes = [8, 8], strides = [1, 1]} : vector<8x64xf32> to vector<8x8xf32>
    %260 = vector.extract_strided_slice %204 {offsets = [0, 24], sizes = [8, 8], strides = [1, 1]} : vector<8x64xf32> to vector<8x8xf32>
    "tpu.trace_start"() <{level = 10 : i32, message = "qf,kf->qk"}> : () -> ()
    %cst_108 = arith.constant dense<0.000000e+00> : vector<8x8xf32>
    %261 = tpu.matmul %258, %259, %cst_108 {dimension_numbers = #tpu.dot_dimension_numbers<[1], [1], [0], [0], [0, 0, 1, 0], [], []>} : vector<8x8xf32>, vector<8x8xf32>, vector<8x8xf32> -> vector<8x8xf32>
    "tpu.trace_stop"() : () -> ()
    %262 = arith.addf %261, %209 : vector<8x8xf32>
    %cst_109 = arith.constant dense<0xFF800000> : vector<8xf32>
    %263 = vector.multi_reduction <maximumf>, %262, %cst_109 [1] : vector<8x8xf32> to vector<8xf32>
    %264 = vector.shape_cast %263 : vector<8xf32> to vector<8x1xf32>
    %265 = vector.broadcast %264 : vector<8x1xf32> to vector<8x8xf32>
    %266 = arith.subf %262, %265 : vector<8x8xf32>
    %267 = math.exp %266 : vector<8x8xf32>
    %cst_110 = arith.constant dense<0.000000e+00> : vector<8xf32>
    %268 = vector.multi_reduction <add>, %267, %cst_110 [1] : vector<8x8xf32> to vector<8xf32>
    %269 = vector.shape_cast %268 : vector<8xf32> to vector<8x1xf32>
    %270 = tpu.reciprocal %269 {approx = true} : vector<8x1xf32> -> vector<8x1xf32>
    %271 = vector.broadcast %270 : vector<8x1xf32> to vector<8x8xf32>
    %272 = arith.mulf %267, %271 : vector<8x8xf32>
    "tpu.trace_start"() <{level = 10 : i32, message = "qk,kf->qf"}> : () -> ()
    %cst_111 = arith.constant dense<0.000000e+00> : vector<8x8xf32>
    %273 = tpu.matmul %272, %260, %cst_111 {dimension_numbers = #tpu.dot_dimension_numbers<[1], [0], [0], [1], [0, 0, 1, 1], [], []>} : vector<8x8xf32>, vector<8x8xf32>, vector<8x8xf32> -> vector<8x8xf32>
    "tpu.trace_stop"() : () -> ()
    %274 = vector.extract_strided_slice %198 {offsets = [0, 32], sizes = [8, 8], strides = [1, 1]} : vector<8x64xf32> to vector<8x8xf32>
    %275 = vector.extract_strided_slice %201 {offsets = [0, 32], sizes = [8, 8], strides = [1, 1]} : vector<8x64xf32> to vector<8x8xf32>
    %276 = vector.extract_strided_slice %204 {offsets = [0, 32], sizes = [8, 8], strides = [1, 1]} : vector<8x64xf32> to vector<8x8xf32>
    "tpu.trace_start"() <{level = 10 : i32, message = "qf,kf->qk"}> : () -> ()
    %cst_112 = arith.constant dense<0.000000e+00> : vector<8x8xf32>
    %277 = tpu.matmul %274, %275, %cst_112 {dimension_numbers = #tpu.dot_dimension_numbers<[1], [1], [0], [0], [0, 0, 1, 0], [], []>} : vector<8x8xf32>, vector<8x8xf32>, vector<8x8xf32> -> vector<8x8xf32>
    "tpu.trace_stop"() : () -> ()
    %278 = arith.addf %277, %209 : vector<8x8xf32>
    %cst_113 = arith.constant dense<0xFF800000> : vector<8xf32>
    %279 = vector.multi_reduction <maximumf>, %278, %cst_113 [1] : vector<8x8xf32> to vector<8xf32>
    %280 = vector.shape_cast %279 : vector<8xf32> to vector<8x1xf32>
    %281 = vector.broadcast %280 : vector<8x1xf32> to vector<8x8xf32>
    %282 = arith.subf %278, %281 : vector<8x8xf32>
    %283 = math.exp %282 : vector<8x8xf32>
    %cst_114 = arith.constant dense<0.000000e+00> : vector<8xf32>
    %284 = vector.multi_reduction <add>, %283, %cst_114 [1] : vector<8x8xf32> to vector<8xf32>
    %285 = vector.shape_cast %284 : vector<8xf32> to vector<8x1xf32>
    %286 = tpu.reciprocal %285 {approx = true} : vector<8x1xf32> -> vector<8x1xf32>
    %287 = vector.broadcast %286 : vector<8x1xf32> to vector<8x8xf32>
    %288 = arith.mulf %283, %287 : vector<8x8xf32>
    "tpu.trace_start"() <{level = 10 : i32, message = "qk,kf->qf"}> : () -> ()
    %cst_115 = arith.constant dense<0.000000e+00> : vector<8x8xf32>
    %289 = tpu.matmul %288, %276, %cst_115 {dimension_numbers = #tpu.dot_dimension_numbers<[1], [0], [0], [1], [0, 0, 1, 1], [], []>} : vector<8x8xf32>, vector<8x8xf32>, vector<8x8xf32> -> vector<8x8xf32>
    "tpu.trace_stop"() : () -> ()
    %290 = vector.extract_strided_slice %198 {offsets = [0, 40], sizes = [8, 8], strides = [1, 1]} : vector<8x64xf32> to vector<8x8xf32>
    %291 = vector.extract_strided_slice %201 {offsets = [0, 40], sizes = [8, 8], strides = [1, 1]} : vector<8x64xf32> to vector<8x8xf32>
    %292 = vector.extract_strided_slice %204 {offsets = [0, 40], sizes = [8, 8], strides = [1, 1]} : vector<8x64xf32> to vector<8x8xf32>
    "tpu.trace_start"() <{level = 10 : i32, message = "qf,kf->qk"}> : () -> ()
    %cst_116 = arith.constant dense<0.000000e+00> : vector<8x8xf32>
    %293 = tpu.matmul %290, %291, %cst_116 {dimension_numbers = #tpu.dot_dimension_numbers<[1], [1], [0], [0], [0, 0, 1, 0], [], []>} : vector<8x8xf32>, vector<8x8xf32>, vector<8x8xf32> -> vector<8x8xf32>
    "tpu.trace_stop"() : () -> ()
    %294 = arith.addf %293, %209 : vector<8x8xf32>
    %cst_117 = arith.constant dense<0xFF800000> : vector<8xf32>
    %295 = vector.multi_reduction <maximumf>, %294, %cst_117 [1] : vector<8x8xf32> to vector<8xf32>
    %296 = vector.shape_cast %295 : vector<8xf32> to vector<8x1xf32>
    %297 = vector.broadcast %296 : vector<8x1xf32> to vector<8x8xf32>
    %298 = arith.subf %294, %297 : vector<8x8xf32>
    %299 = math.exp %298 : vector<8x8xf32>
    %cst_118 = arith.constant dense<0.000000e+00> : vector<8xf32>
    %300 = vector.multi_reduction <add>, %299, %cst_118 [1] : vector<8x8xf32> to vector<8xf32>
    %301 = vector.shape_cast %300 : vector<8xf32> to vector<8x1xf32>
    %302 = tpu.reciprocal %301 {approx = true} : vector<8x1xf32> -> vector<8x1xf32>
    %303 = vector.broadcast %302 : vector<8x1xf32> to vector<8x8xf32>
    %304 = arith.mulf %299, %303 : vector<8x8xf32>
    "tpu.trace_start"() <{level = 10 : i32, message = "qk,kf->qf"}> : () -> ()
    %cst_119 = arith.constant dense<0.000000e+00> : vector<8x8xf32>
    %305 = tpu.matmul %304, %292, %cst_119 {dimension_numbers = #tpu.dot_dimension_numbers<[1], [0], [0], [1], [0, 0, 1, 1], [], []>} : vector<8x8xf32>, vector<8x8xf32>, vector<8x8xf32> -> vector<8x8xf32>
    "tpu.trace_stop"() : () -> ()
    %306 = vector.extract_strided_slice %198 {offsets = [0, 48], sizes = [8, 8], strides = [1, 1]} : vector<8x64xf32> to vector<8x8xf32>
    %307 = vector.extract_strided_slice %201 {offsets = [0, 48], sizes = [8, 8], strides = [1, 1]} : vector<8x64xf32> to vector<8x8xf32>
    %308 = vector.extract_strided_slice %204 {offsets = [0, 48], sizes = [8, 8], strides = [1, 1]} : vector<8x64xf32> to vector<8x8xf32>
    "tpu.trace_start"() <{level = 10 : i32, message = "qf,kf->qk"}> : () -> ()
    %cst_120 = arith.constant dense<0.000000e+00> : vector<8x8xf32>
    %309 = tpu.matmul %306, %307, %cst_120 {dimension_numbers = #tpu.dot_dimension_numbers<[1], [1], [0], [0], [0, 0, 1, 0], [], []>} : vector<8x8xf32>, vector<8x8xf32>, vector<8x8xf32> -> vector<8x8xf32>
    "tpu.trace_stop"() : () -> ()
    %310 = arith.addf %309, %209 : vector<8x8xf32>
    %cst_121 = arith.constant dense<0xFF800000> : vector<8xf32>
    %311 = vector.multi_reduction <maximumf>, %310, %cst_121 [1] : vector<8x8xf32> to vector<8xf32>
    %312 = vector.shape_cast %311 : vector<8xf32> to vector<8x1xf32>
    %313 = vector.broadcast %312 : vector<8x1xf32> to vector<8x8xf32>
    %314 = arith.subf %310, %313 : vector<8x8xf32>
    %315 = math.exp %314 : vector<8x8xf32>
    %cst_122 = arith.constant dense<0.000000e+00> : vector<8xf32>
    %316 = vector.multi_reduction <add>, %315, %cst_122 [1] : vector<8x8xf32> to vector<8xf32>
    %317 = vector.shape_cast %316 : vector<8xf32> to vector<8x1xf32>
    %318 = tpu.reciprocal %317 {approx = true} : vector<8x1xf32> -> vector<8x1xf32>
    %319 = vector.broadcast %318 : vector<8x1xf32> to vector<8x8xf32>
    %320 = arith.mulf %315, %319 : vector<8x8xf32>
    "tpu.trace_start"() <{level = 10 : i32, message = "qk,kf->qf"}> : () -> ()
    %cst_123 = arith.constant dense<0.000000e+00> : vector<8x8xf32>
    %321 = tpu.matmul %320, %308, %cst_123 {dimension_numbers = #tpu.dot_dimension_numbers<[1], [0], [0], [1], [0, 0, 1, 1], [], []>} : vector<8x8xf32>, vector<8x8xf32>, vector<8x8xf32> -> vector<8x8xf32>
    "tpu.trace_stop"() : () -> ()
    %322 = vector.extract_strided_slice %198 {offsets = [0, 56], sizes = [8, 8], strides = [1, 1]} : vector<8x64xf32> to vector<8x8xf32>
    %323 = vector.extract_strided_slice %201 {offsets = [0, 56], sizes = [8, 8], strides = [1, 1]} : vector<8x64xf32> to vector<8x8xf32>
    %324 = vector.extract_strided_slice %204 {offsets = [0, 56], sizes = [8, 8], strides = [1, 1]} : vector<8x64xf32> to vector<8x8xf32>
    "tpu.trace_start"() <{level = 10 : i32, message = "qf,kf->qk"}> : () -> ()
    %cst_124 = arith.constant dense<0.000000e+00> : vector<8x8xf32>
    %325 = tpu.matmul %322, %323, %cst_124 {dimension_numbers = #tpu.dot_dimension_numbers<[1], [1], [0], [0], [0, 0, 1, 0], [], []>} : vector<8x8xf32>, vector<8x8xf32>, vector<8x8xf32> -> vector<8x8xf32>
    "tpu.trace_stop"() : () -> ()
    %326 = arith.addf %325, %209 : vector<8x8xf32>
    %cst_125 = arith.constant dense<0xFF800000> : vector<8xf32>
    %327 = vector.multi_reduction <maximumf>, %326, %cst_125 [1] : vector<8x8xf32> to vector<8xf32>
    %328 = vector.shape_cast %327 : vector<8xf32> to vector<8x1xf32>
    %329 = vector.broadcast %328 : vector<8x1xf32> to vector<8x8xf32>
    %330 = arith.subf %326, %329 : vector<8x8xf32>
    %331 = math.exp %330 : vector<8x8xf32>
    %cst_126 = arith.constant dense<0.000000e+00> : vector<8xf32>
    %332 = vector.multi_reduction <add>, %331, %cst_126 [1] : vector<8x8xf32> to vector<8xf32>
    %333 = vector.shape_cast %332 : vector<8xf32> to vector<8x1xf32>
    %334 = tpu.reciprocal %333 {approx = true} : vector<8x1xf32> -> vector<8x1xf32>
    %335 = vector.broadcast %334 : vector<8x1xf32> to vector<8x8xf32>
    %336 = arith.mulf %331, %335 : vector<8x8xf32>
    "tpu.trace_start"() <{level = 10 : i32, message = "qk,kf->qf"}> : () -> ()
    %cst_127 = arith.constant dense<0.000000e+00> : vector<8x8xf32>
    %337 = tpu.matmul %336, %324, %cst_127 {dimension_numbers = #tpu.dot_dimension_numbers<[1], [0], [0], [1], [0, 0, 1, 1], [], []>} : vector<8x8xf32>, vector<8x8xf32>, vector<8x8xf32> -> vector<8x8xf32>
    "tpu.trace_stop"() : () -> ()
    %338 = tpu.concatenate %225, %241, %257, %273, %289, %305, %321, %337 in 1 : vector<8x8xf32>, vector<8x8xf32>, vector<8x8xf32>, vector<8x8xf32>, vector<8x8xf32>, vector<8x8xf32>, vector<8x8xf32>, vector<8x8xf32> -> vector<8x64xf32>
    %cst_128 = arith.constant dense<0.000000e+00> : vector<8x32xf32>
    %339 = tpu.matmul %338, %192, %cst_128 {dimension_numbers = #tpu.dot_dimension_numbers<[1], [0], [0], [1], [0, 0, 1, 1], [], []>} : vector<8x64xf32>, vector<64x32xf32>, vector<8x32xf32> -> vector<8x32xf32>
    %340 = vector.broadcast %193 : vector<1x32xf32> to vector<8x32xf32>
    %341 = arith.addf %339, %340 : vector<8x32xf32>
    %342 = arith.addf %341, %183 : vector<8x32xf32>
    %cst_129 = arith.constant dense<0.000000e+00> : vector<8xf32>
    %343 = vector.multi_reduction <add>, %342, %cst_129 [1] : vector<8x32xf32> to vector<8xf32>
    %344 = vector.shape_cast %343 : vector<8xf32> to vector<8x1xf32>
    %cst_130 = arith.constant 3.200000e+01 : f32
    %345 = vector.broadcast %cst_130 : f32 to vector<8x1xf32>
    %346 = arith.divf %344, %345 : vector<8x1xf32>
    %347 = vector.broadcast %346 : vector<8x1xf32> to vector<8x32xf32>
    %348 = arith.subf %342, %347 : vector<8x32xf32>
    %349 = arith.mulf %348, %348 : vector<8x32xf32>
    %cst_131 = arith.constant dense<0.000000e+00> : vector<8xf32>
    %350 = vector.multi_reduction <add>, %349, %cst_131 [1] : vector<8x32xf32> to vector<8xf32>
    %351 = vector.shape_cast %350 : vector<8xf32> to vector<8x1xf32>
    %cst_132 = arith.constant 0.0322580636 : f32
    %352 = vector.broadcast %cst_132 : f32 to vector<8x1xf32>
    %353 = arith.mulf %351, %352 : vector<8x1xf32>
    %cst_133 = arith.constant 9.99999993E-9 : f32
    %354 = vector.broadcast %cst_133 : f32 to vector<8x1xf32>
    %355 = arith.addf %353, %354 : vector<8x1xf32>
    %356 = math.rsqrt %355 : vector<8x1xf32>
    %357 = vector.broadcast %356 : vector<8x1xf32> to vector<8x32xf32>
    %358 = arith.mulf %348, %357 : vector<8x32xf32>
    %c0_134 = arith.constant 0 : index
    %c0_135 = arith.constant 0 : index
    %359 = vector.load %arg22[%c0_134, %c0_135] : memref<32x128xf32, #tpu.memory_space<vmem>>, vector<32x128xf32>
    %cst_136 = arith.constant dense<0.000000e+00> : vector<8x128xf32>
    %360 = tpu.matmul %358, %359, %cst_136 {dimension_numbers = #tpu.dot_dimension_numbers<[1], [0], [0], [1], [0, 0, 1, 1], [], []>} : vector<8x32xf32>, vector<32x128xf32>, vector<8x128xf32> -> vector<8x128xf32>
    %c0_137 = arith.constant 0 : index
    %c0_138 = arith.constant 0 : index
    %361 = vector.load %arg23[%c0_137, %c0_138] : memref<1x128xf32, #tpu.memory_space<vmem>>, vector<1x128xf32>
    %362 = vector.broadcast %361 : vector<1x128xf32> to vector<8x128xf32>
    %363 = arith.addf %360, %362 : vector<8x128xf32>
    %cst_139 = arith.constant 0.000000e+00 : f32
    %364 = vector.broadcast %cst_139 : f32 to vector<8x128xf32>
    %365 = arith.maximumf %363, %364 : vector<8x128xf32>
    %c0_140 = arith.constant 0 : index
    %c0_141 = arith.constant 0 : index
    %366 = vector.load %arg24[%c0_140, %c0_141] : memref<128x32xf32, #tpu.memory_space<vmem>>, vector<128x32xf32>
    %cst_142 = arith.constant dense<0.000000e+00> : vector<8x32xf32>
    %367 = tpu.matmul %365, %366, %cst_142 {dimension_numbers = #tpu.dot_dimension_numbers<[1], [0], [0], [1], [0, 0, 1, 1], [], []>} : vector<8x128xf32>, vector<128x32xf32>, vector<8x32xf32> -> vector<8x32xf32>
    %c0_143 = arith.constant 0 : index
    %c0_144 = arith.constant 0 : index
    %368 = vector.load %arg25[%c0_143, %c0_144] : memref<1x32xf32, #tpu.memory_space<vmem>>, vector<1x32xf32>
    %369 = vector.broadcast %368 : vector<1x32xf32> to vector<8x32xf32>
    %370 = arith.addf %367, %369 : vector<8x32xf32>
    %371 = arith.addf %370, %358 : vector<8x32xf32>
    %cst_145 = arith.constant dense<0.000000e+00> : vector<8xf32>
    %372 = vector.multi_reduction <add>, %371, %cst_145 [1] : vector<8x32xf32> to vector<8xf32>
    %373 = vector.shape_cast %372 : vector<8xf32> to vector<8x1xf32>
    %cst_146 = arith.constant 3.200000e+01 : f32
    %374 = vector.broadcast %cst_146 : f32 to vector<8x1xf32>
    %375 = arith.divf %373, %374 : vector<8x1xf32>
    %376 = vector.broadcast %375 : vector<8x1xf32> to vector<8x32xf32>
    %377 = arith.subf %371, %376 : vector<8x32xf32>
    %378 = arith.mulf %377, %377 : vector<8x32xf32>
    %cst_147 = arith.constant dense<0.000000e+00> : vector<8xf32>
    %379 = vector.multi_reduction <add>, %378, %cst_147 [1] : vector<8x32xf32> to vector<8xf32>
    %380 = vector.shape_cast %379 : vector<8xf32> to vector<8x1xf32>
    %cst_148 = arith.constant 0.0322580636 : f32
    %381 = vector.broadcast %cst_148 : f32 to vector<8x1xf32>
    %382 = arith.mulf %380, %381 : vector<8x1xf32>
    %cst_149 = arith.constant 9.99999993E-9 : f32
    %383 = vector.broadcast %cst_149 : f32 to vector<8x1xf32>
    %384 = arith.addf %382, %383 : vector<8x1xf32>
    %385 = math.rsqrt %384 : vector<8x1xf32>
    %386 = vector.broadcast %385 : vector<8x1xf32> to vector<8x32xf32>
    %387 = arith.mulf %377, %386 : vector<8x32xf32>
    %c0_150 = arith.constant 0 : index
    %c0_151 = arith.constant 0 : index
    %c0_152 = arith.constant 0 : index
    %388 = vector.load %arg26[%c0_150, %c0_151, %c0_152] : memref<1x8x32xf32, #tpu.memory_space<vmem>>, vector<1x8x32xf32>
    %389 = vector.shape_cast %388 : vector<1x8x32xf32> to vector<8x32xf32>
    %390 = vector.shape_cast %387 : vector<8x32xf32> to vector<1x8x32xf32>
    tpu.vector_store %arg26[%c0_150, %c0_151, %c0_152], %390 {strides = array<i32>} : memref<1x8x32xf32, #tpu.memory_space<vmem>>, vector<1x8x32xf32>,
    return
  }
  func.func @transform_0(%arg0: i32, %arg1: i32) -> (i32, i32, i32) {
    %c0_i32 = arith.constant 0 : i32
    %c0_i32_0 = arith.constant 0 : i32
    %c0_i32_1 = arith.constant 0 : i32
    return %arg0, %c0_i32, %c0_i32_0 : i32, i32, i32
  }
  func.func @transform_1(%arg0: i32, %arg1: i32) -> (i32, i32, i32) {
    %c0_i32 = arith.constant 0 : i32
    %c0_i32_0 = arith.constant 0 : i32
    %c0_i32_1 = arith.constant 0 : i32
    return %arg0, %c0_i32, %c0_i32_0 : i32, i32, i32
  }
  func.func @transform_2(%arg0: i32, %arg1: i32) -> (i32, i32, i32) {
    %c0_i32 = arith.constant 0 : i32
    %c0_i32_0 = arith.constant 0 : i32
    return %arg0, %arg1, %c0_i32 : i32, i32, i32
  }
  func.func @transform_3(%arg0: i32, %arg1: i32) -> (i32, i32, i32) {
    %c0_i32 = arith.constant 0 : i32
    %c0_i32_0 = arith.constant 0 : i32
    return %arg0, %arg1, %c0_i32 : i32, i32, i32
  }
  func.func @transform_4(%arg0: i32, %arg1: i32) -> (i32, i32) {
    %c0_i32 = arith.constant 0 : i32
    %c0_i32_0 = arith.constant 0 : i32
    %c0_i32_1 = arith.constant 0 : i32
    return %c0_i32, %c0_i32_0 : i32, i32
  }
  func.func @transform_5(%arg0: i32, %arg1: i32) -> (i32, i32) {
    %c0_i32 = arith.constant 0 : i32
    %c0_i32_0 = arith.constant 0 : i32
    %c0_i32_1 = arith.constant 0 : i32
    return %c0_i32, %c0_i32_0 : i32, i32
  }
  func.func @transform_6(%arg0: i32, %arg1: i32) -> (i32, i32) {
    %c0_i32 = arith.constant 0 : i32
    %c0_i32_0 = arith.constant 0 : i32
    %c0_i32_1 = arith.constant 0 : i32
    return %c0_i32, %c0_i32_0 : i32, i32
  }
  func.func @transform_7(%arg0: i32, %arg1: i32) -> (i32, i32) {
    %c0_i32 = arith.constant 0 : i32
    %c0_i32_0 = arith.constant 0 : i32
    %c0_i32_1 = arith.constant 0 : i32
    return %c0_i32, %c0_i32_0 : i32, i32
  }
  func.func @transform_8(%arg0: i32, %arg1: i32) -> (i32, i32) {
    %c0_i32 = arith.constant 0 : i32
    %c0_i32_0 = arith.constant 0 : i32
    %c0_i32_1 = arith.constant 0 : i32
    return %c0_i32, %c0_i32_0 : i32, i32
  }
  func.func @transform_9(%arg0: i32, %arg1: i32) -> (i32, i32) {
    %c0_i32 = arith.constant 0 : i32
    %c0_i32_0 = arith.constant 0 : i32
    %c0_i32_1 = arith.constant 0 : i32
    return %c0_i32, %c0_i32_0 : i32, i32
  }
  func.func @transform_10(%arg0: i32, %arg1: i32) -> (i32, i32) {
    %c0_i32 = arith.constant 0 : i32
    %c0_i32_0 = arith.constant 0 : i32
    %c0_i32_1 = arith.constant 0 : i32
    return %c0_i32, %c0_i32_0 : i32, i32
  }
  func.func @transform_11(%arg0: i32, %arg1: i32) -> (i32, i32) {
    %c0_i32 = arith.constant 0 : i32
    %c0_i32_0 = arith.constant 0 : i32
    %c0_i32_1 = arith.constant 0 : i32
    return %c0_i32, %c0_i32_0 : i32, i32
  }
  func.func @transform_12(%arg0: i32, %arg1: i32) -> (i32, i32) {
    %c0_i32 = arith.constant 0 : i32
    %c0_i32_0 = arith.constant 0 : i32
    %c0_i32_1 = arith.constant 0 : i32
    return %c0_i32, %c0_i32_0 : i32, i32
  }
  func.func @transform_13(%arg0: i32, %arg1: i32) -> (i32, i32) {
    %c0_i32 = arith.constant 0 : i32
    %c0_i32_0 = arith.constant 0 : i32
    %c0_i32_1 = arith.constant 0 : i32
    return %c0_i32, %c0_i32_0 : i32, i32
  }
  func.func @transform_14(%arg0: i32, %arg1: i32) -> (i32, i32) {
    %c0_i32 = arith.constant 0 : i32
    %c0_i32_0 = arith.constant 0 : i32
    %c0_i32_1 = arith.constant 0 : i32
    return %c0_i32, %c0_i32_0 : i32, i32
  }
  func.func @transform_15(%arg0: i32, %arg1: i32) -> (i32, i32) {
    %c0_i32 = arith.constant 0 : i32
    %c0_i32_0 = arith.constant 0 : i32
    %c0_i32_1 = arith.constant 0 : i32
    return %c0_i32, %c0_i32_0 : i32, i32
  }
  func.func @transform_16(%arg0: i32, %arg1: i32) -> (i32, i32) {
    %c0_i32 = arith.constant 0 : i32
    %c0_i32_0 = arith.constant 0 : i32
    %c0_i32_1 = arith.constant 0 : i32
    return %c0_i32, %c0_i32_0 : i32, i32
  }
  func.func @transform_17(%arg0: i32, %arg1: i32) -> (i32, i32) {
    %c0_i32 = arith.constant 0 : i32
    %c0_i32_0 = arith.constant 0 : i32
    %c0_i32_1 = arith.constant 0 : i32
    return %c0_i32, %c0_i32_0 : i32, i32
  }
  func.func @transform_18(%arg0: i32, %arg1: i32) -> (i32, i32) {
    %c0_i32 = arith.constant 0 : i32
    %c0_i32_0 = arith.constant 0 : i32
    %c0_i32_1 = arith.constant 0 : i32
    return %c0_i32, %c0_i32_0 : i32, i32
  }
  func.func @transform_19(%arg0: i32, %arg1: i32) -> (i32, i32) {
    %c0_i32 = arith.constant 0 : i32
    %c0_i32_0 = arith.constant 0 : i32
    %c0_i32_1 = arith.constant 0 : i32
    return %c0_i32, %c0_i32_0 : i32, i32
  }
  func.func @transform_20(%arg0: i32, %arg1: i32) -> (i32, i32) {
    %c0_i32 = arith.constant 0 : i32
    %c0_i32_0 = arith.constant 0 : i32
    %c0_i32_1 = arith.constant 0 : i32
    return %c0_i32, %c0_i32_0 : i32, i32
  }
  func.func @transform_21(%arg0: i32, %arg1: i32) -> (i32, i32) {
    %c0_i32 = arith.constant 0 : i32
    %c0_i32_0 = arith.constant 0 : i32
    %c0_i32_1 = arith.constant 0 : i32
    return %c0_i32, %c0_i32_0 : i32, i32
  }
  func.func @transform_22(%arg0: i32, %arg1: i32) -> (i32, i32) {
    %c0_i32 = arith.constant 0 : i32
    %c0_i32_0 = arith.constant 0 : i32
    %c0_i32_1 = arith.constant 0 : i32
    return %c0_i32, %c0_i32_0 : i32, i32
  }
  func.func @transform_23(%arg0: i32, %arg1: i32) -> (i32, i32) {
    %c0_i32 = arith.constant 0 : i32
    %c0_i32_0 = arith.constant 0 : i32
    %c0_i32_1 = arith.constant 0 : i32
    return %c0_i32, %c0_i32_0 : i32, i32
  }
  func.func @transform_24(%arg0: i32, %arg1: i32) -> (i32, i32, i32) {
    %c0_i32 = arith.constant 0 : i32
    %c0_i32_0 = arith.constant 0 : i32
    return %arg0, %arg1, %c0_i32 : i32, i32, i32
  }
}

</mosaic_0001>

<llo_original>
// kernel: tpu_custom_call.1
$region0: #{tpu_custom_call.1}
  #allocation0 [shape = 'u32[]', space=smem, size = 0x4, offset = 0x4, fixed_abs, tag = 'smem constant byte address 0x4 - core index']
  #allocation1 [shape = 'u32[72,128]{1,0:T(1,128)}', space=vmem, size = 0x9000, scoped, tag = 'internal scratch']
  %s0 = inlined_call_operand.vmem [shape: f32[2,8,32], index: 0, kind: input, shape index: {}]
  %s1 = inlined_call_operand.vmem [shape: f32[2,8,32], index: 1, kind: input, shape index: {}]
  %s2 = inlined_call_operand.vmem [shape: f32[2,8,8], index: 2, kind: input, shape index: {}]
  %s3 = inlined_call_operand.vmem [shape: f32[2,8,8], index: 3, kind: input, shape index: {}]
  %s4 = inlined_call_operand.vmem [shape: f32[32,64], index: 4, kind: input, shape index: {}]
  %s5 = inlined_call_operand.vmem [shape: f32[1,64], index: 5, kind: input, shape index: {}]
  %s6 = inlined_call_operand.vmem [shape: f32[32,64], index: 6, kind: input, shape index: {}]
  %s7 = inlined_call_operand.vmem [shape: f32[1,64], index: 7, kind: input, shape index: {}]
  %s8 = inlined_call_operand.vmem [shape: f32[32,64], index: 8, kind: input, shape index: {}]
  %s9 = inlined_call_operand.vmem [shape: f32[1,64], index: 9, kind: input, shape index: {}]
  %s10 = inlined_call_operand.vmem [shape: f32[64,32], index: 10, kind: input, shape index: {}]
  %s11 = inlined_call_operand.vmem [shape: f32[1,32], index: 11, kind: input, shape index: {}]
  %s12 = inlined_call_operand.vmem [shape: f32[32,64], index: 12, kind: input, shape index: {}]
  %s13 = inlined_call_operand.vmem [shape: f32[1,64], index: 13, kind: input, shape index: {}]
  %s14 = inlined_call_operand.vmem [shape: f32[32,64], index: 14, kind: input, shape index: {}]
  %s15 = inlined_call_operand.vmem [shape: f32[1,64], index: 15, kind: input, shape index: {}]
  %s16 = inlined_call_operand.vmem [shape: f32[32,64], index: 16, kind: input, shape index: {}]
  %s17 = inlined_call_operand.vmem [shape: f32[1,64], index: 17, kind: input, shape index: {}]
  %s18 = inlined_call_operand.vmem [shape: f32[64,32], index: 18, kind: input, shape index: {}]
  %s19 = inlined_call_operand.vmem [shape: f32[1,32], index: 19, kind: input, shape index: {}]
  %s20 = inlined_call_operand.vmem [shape: f32[32,128], index: 20, kind: input, shape index: {}]
  %s21 = inlined_call_operand.vmem [shape: f32[1,128], index: 21, kind: input, shape index: {}]
  %s22 = inlined_call_operand.vmem [shape: f32[128,32], index: 22, kind: input, shape index: {}]
  %s23 = inlined_call_operand.vmem [shape: f32[1,32], index: 23, kind: input, shape index: {}]
  %s24 = inlined_call_operand.hbm [shape: f32[2,8,32], index: 24, kind: output, shape index: {}]
  %s25 = sld [smem:[#allocation0]]
  $region129: #{tpu_custom_call.1} parent=0
    _
  %s27 = ssub.s32 1, %s25
  %s28 = scalar_select 0, %s27, %s25
  $region1: #{tpu_custom_call.1} parent=0
    #allocation2 [shape = 'u8[8192]{0}', space=vmem, size = 0x2000, scoped, tag = 'output window, operand 0']
    #allocation3 [shape = 's32[2]{0}', space=sflag, size = 0x8, scoped, tag = 'scoped memory for tpu_custom_call.1']
    %29 = vsyncpa [#allocation3], 0
    %s30 = scalar_lea.sflag [#allocation3], 1
    %31 = vsyncpa %s30, 0
    loop: start=0, step=1, limit=4
    $region2: #{tpu_custom_call.1} parent=1 // loop_pre_header
      _
    $region3: #{tpu_custom_call.1} parent=1 // loop_header
      %s33 = sphi 0, %s37
      %p34 = scmp.ge.s32.totalorder %s33, 4
      %s40 = sphi 0, %s52
      %s41 = sphi 0, %s48
      %s42 = sphi 0, %s40
      %s43 = sphi 0, %s41
      %s44 = sphi 0, %s42
      %s45 = sphi 0, %s43
      %s55 = sphi 0, %s57
      %s58 = sphi 0, %s55
      %s59 = sphi 0, %s58
      %s75 = sphi 0, %s59
      %s81 = sphi 0, %s83
      %s84 = sphi 0, %s81
      %s85 = sphi 0, %s84
      %s101 = sphi 0, %s85
      %s109 = sphi 0, %s111
      %s112 = sphi 0, %s109
      %s113 = sphi 0, %s112
      %s129 = sphi 0, %s113
      %s137 = sphi 0, %s139
      %s140 = sphi 0, %s137
      %s141 = sphi 0, %s140
      %s157 = sphi 0, %s141
      %s161 = sphi 0, %s161
      %s163 = sphi 0, %s161
      %s164 = sphi 0, %s163
      %s178 = sphi 0, %s164
      %s182 = sphi 0, %s182
      %s184 = sphi 0, %s182
      %s185 = sphi 0, %s184
      %s199 = sphi 0, %s185
      %s203 = sphi 0, %s203
      %s205 = sphi 0, %s203
      %s206 = sphi 0, %s205
      %s220 = sphi 0, %s206
      %s224 = sphi 0, %s224
      %s226 = sphi 0, %s224
      %s227 = sphi 0, %s226
      %s241 = sphi 0, %s227
      %s245 = sphi 0, %s245
      %s247 = sphi 0, %s245
      %s248 = sphi 0, %s247
      %s262 = sphi 0, %s248
      %s266 = sphi 0, %s266
      %s268 = sphi 0, %s266
      %s269 = sphi 0, %s268
      %s283 = sphi 0, %s269
      %s287 = sphi 0, %s287
      %s289 = sphi 0, %s287
      %s290 = sphi 0, %s289
      %s304 = sphi 0, %s290
      %s308 = sphi 0, %s308
      %s310 = sphi 0, %s308
      %s311 = sphi 0, %s310
      %s325 = sphi 0, %s311
      %s329 = sphi 0, %s329
      %s331 = sphi 0, %s329
      %s332 = sphi 0, %s331
      %s346 = sphi 0, %s332
      %s350 = sphi 0, %s350
      %s352 = sphi 0, %s350
      %s353 = sphi 0, %s352
      %s367 = sphi 0, %s353
      %s371 = sphi 0, %s371
      %s373 = sphi 0, %s371
      %s374 = sphi 0, %s373
      %s388 = sphi 0, %s374
      %s392 = sphi 0, %s392
      %s394 = sphi 0, %s392
      %s395 = sphi 0, %s394
      %s409 = sphi 0, %s395
      %s413 = sphi 0, %s413
      %s415 = sphi 0, %s413
      %s416 = sphi 0, %s415
      %s430 = sphi 0, %s416
      %s434 = sphi 0, %s434
      %s436 = sphi 0, %s434
      %s437 = sphi 0, %s436
      %s451 = sphi 0, %s437
      %s455 = sphi 0, %s455
      %s457 = sphi 0, %s455
      %s458 = sphi 0, %s457
      %s472 = sphi 0, %s458
      %s476 = sphi 0, %s476
      %s478 = sphi 0, %s476
      %s479 = sphi 0, %s478
      %s493 = sphi 0, %s479
      %s497 = sphi 0, %s497
      %s499 = sphi 0, %s497
      %s500 = sphi 0, %s499
      %s514 = sphi 0, %s500
      %s518 = sphi 0, %s518
      %s520 = sphi 0, %s518
      %s521 = sphi 0, %s520
      %s535 = sphi 0, %s521
      %s539 = sphi 0, %s539
      %s541 = sphi 0, %s539
      %s542 = sphi 0, %s541
      %s556 = sphi 0, %s542
      %s560 = sphi 0, %s560
      %s562 = sphi 0, %s560
      %s563 = sphi 0, %s562
      %s577 = sphi 0, %s563
      %s585 = sphi 0, %s587
      %s588 = sphi 0, %s585
      %s589 = sphi 0, %s588
      %s605 = sphi 0, %s589
    $region4: #{tpu_custom_call.1} parent=1 // loop_header_branch
      %36 = sbr.rel (%p34) target = $region8
    $region5: #{tpu_custom_call.1} parent=1 // loop_body
      %s38 = ssub.s32 %s33, 1
      %s39 = ssub.s32 %s33, 2
      %s46 = sadd.s32 1, %s41
      %p47 = scmp.ge.s32.totalorder %s46, 1
      %s48 = scalar_select %p47, 0, %s46
      %s49 = sadd.s32 1, %s40
      %s50 = scalar_select %p47, %s49, %s40
      %p51 = scmp.ge.s32.totalorder %s50, 2
      %s52 = scalar_select %p51, 0, %s50
      %s53 = ssub.s32 %s40, %s52
      %p54 = scmp.eq.s32.totalorder %s53, 0
      %s56 = sadd.s32 %s55, 1
      %s57 = scalar_select %p54, %s55, %s56
      %p60 = pneg %p54
      %p61 = scmp.eq.s32.totalorder %s33, 1
      %p62 = por %p60, %p61
      %p63 = scmp.ne.s32.totalorder %s55, %s58
      %p64 = scmp.eq.s32.totalorder %s33, 0
      %p65 = por %p63, %p64
      %p66 = scmp.ne.s32.totalorder %s55, %s58
      %p67 = scmp.eq.s32.totalorder %s38, 1
      %p68 = por %p66, %p67
      %p69 = scmp.ne.s32.totalorder %s58, %s59
      %p70 = scmp.eq.s32.totalorder %s38, 0
      %p71 = por %p69, %p70
      %p72 = scmp.ne.s32.totalorder %s58, %s59
      %p73 = scmp.eq.s32.totalorder %s39, 1
      %p74 = por %p72, %p73
      %p76 = scmp.ne.s32.totalorder %s59, %s75
      %p77 = scmp.eq.s32.totalorder %s39, 0
      %p78 = por %p76, %p77
      %s79 = ssub.s32 %s40, %s52
      %p80 = scmp.eq.s32.totalorder %s79, 0
      %s82 = sadd.s32 %s81, 1
      %s83 = scalar_select %p80, %s81, %s82
      %p86 = pneg %p80
      %p87 = scmp.eq.s32.totalorder %s33, 1
      %p88 = por %p86, %p87
      %p89 = scmp.ne.s32.totalorder %s81, %s84
      %p90 = scmp.eq.s32.totalorder %s33, 0
      %p91 = por %p89, %p90
      %p92 = scmp.ne.s32.totalorder %s81, %s84
      %p93 = scmp.eq.s32.totalorder %s38, 1
      %p94 = por %p92, %p93
      %p95 = scmp.ne.s32.totalorder %s84, %s85
      %p96 = scmp.eq.s32.totalorder %s38, 0
      %p97 = por %p95, %p96
      %p98 = scmp.ne.s32.totalorder %s84, %s85
      %p99 = scmp.eq.s32.totalorder %s39, 1
      %p100 = por %p98, %p99
      %p102 = scmp.ne.s32.totalorder %s85, %s101
      %p103 = scmp.eq.s32.totalorder %s39, 0
      %p104 = por %p102, %p103
      %s105 = ssub.s32 %s40, %s52
      %s106 = ssub.s32 %s41, %s48
      %s107 = sor.u32 %s105, %s106
      %p108 = scmp.eq.s32.totalorder %s107, 0
      %s110 = sadd.s32 %s109, 1
      %s111 = scalar_select %p108, %s109, %s110
      %p114 = pneg %p108
      %p115 = scmp.eq.s32.totalorder %s33, 1
      %p116 = por %p114, %p115
      %p117 = scmp.ne.s32.totalorder %s109, %s112
      %p118 = scmp.eq.s32.totalorder %s33, 0
      %p119 = por %p117, %p118
      %p120 = scmp.ne.s32.totalorder %s109, %s112
      %p121 = scmp.eq.s32.totalorder %s38, 1
      %p122 = por %p120, %p121
      %p123 = scmp.ne.s32.totalorder %s112, %s113
      %p124 = scmp.eq.s32.totalorder %s38, 0
      %p125 = por %p123, %p124
      %p126 = scmp.ne.s32.totalorder %s112, %s113
      %p127 = scmp.eq.s32.totalorder %s39, 1
      %p128 = por %p126, %p127
      %p130 = scmp.ne.s32.totalorder %s113, %s129
      %p131 = scmp.eq.s32.totalorder %s39, 0
      %p132 = por %p130, %p131
      %s133 = ssub.s32 %s40, %s52
      %s134 = ssub.s32 %s41, %s48
      %s135 = sor.u32 %s133, %s134
      %p136 = scmp.eq.s32.totalorder %s135, 0
      %s138 = sadd.s32 %s137, 1
      %s139 = scalar_select %p136, %s137, %s138
      %p142 = pneg %p136
      %p143 = scmp.eq.s32.totalorder %s33, 1
      %p144 = por %p142, %p143
      %p145 = scmp.ne.s32.totalorder %s137, %s140
      %p146 = scmp.eq.s32.totalorder %s33, 0
      %p147 = por %p145, %p146
      %p148 = scmp.ne.s32.totalorder %s137, %s140
      %p149 = scmp.eq.s32.totalorder %s38, 1
      %p150 = por %p148, %p149
      %p151 = scmp.ne.s32.totalorder %s140, %s141
      %p152 = scmp.eq.s32.totalorder %s38, 0
      %p153 = por %p151, %p152
      %p154 = scmp.ne.s32.totalorder %s140, %s141
      %p155 = scmp.eq.s32.totalorder %s39, 1
      %p156 = por %p154, %p155
      %p158 = scmp.ne.s32.totalorder %s141, %s157
      %p159 = scmp.eq.s32.totalorder %s39, 0
      %p160 = por %p158, %p159
      %s162 = sadd.s32 %s161, 1
      %p165 = scmp.eq.s32.totalorder %s33, 1
      %p166 = scmp.ne.s32.totalorder %s161, %s163
      %p167 = scmp.eq.s32.totalorder %s33, 0
      %p168 = por %p166, %p167
      %p169 = scmp.ne.s32.totalorder %s161, %s163
      %p170 = scmp.eq.s32.totalorder %s38, 1
      %p171 = por %p169, %p170
      %p172 = scmp.ne.s32.totalorder %s163, %s164
      %p173 = scmp.eq.s32.totalorder %s38, 0
      %p174 = por %p172, %p173
      %p175 = scmp.ne.s32.totalorder %s163, %s164
      %p176 = scmp.eq.s32.totalorder %s39, 1
      %p177 = por %p175, %p176
      %p179 = scmp.ne.s32.totalorder %s164, %s178
      %p180 = scmp.eq.s32.totalorder %s39, 0
      %p181 = por %p179, %p180
      %s183 = sadd.s32 %s182, 1
      %p186 = scmp.eq.s32.totalorder %s33, 1
      %p187 = scmp.ne.s32.totalorder %s182, %s184
      %p188 = scmp.eq.s32.totalorder %s33, 0
      %p189 = por %p187, %p188
      %p190 = scmp.ne.s32.totalorder %s182, %s184
      %p191 = scmp.eq.s32.totalorder %s38, 1
      %p192 = por %p190, %p191
      %p193 = scmp.ne.s32.totalorder %s184, %s185
      %p194 = scmp.eq.s32.totalorder %s38, 0
      %p195 = por %p193, %p194
      %p196 = scmp.ne.s32.totalorder %s184, %s185
      %p197 = scmp.eq.s32.totalorder %s39, 1
      %p198 = por %p196, %p197
      %p200 = scmp.ne.s32.totalorder %s185, %s199
      %p201 = scmp.eq.s32.totalorder %s39, 0
      %p202 = por %p200, %p201
      %s204 = sadd.s32 %s203, 1
      %p207 = scmp.eq.s32.totalorder %s33, 1
      %p208 = scmp.ne.s32.totalorder %s203, %s205
      %p209 = scmp.eq.s32.totalorder %s33, 0
      %p210 = por %p208, %p209
      %p211 = scmp.ne.s32.totalorder %s203, %s205
      %p212 = scmp.eq.s32.totalorder %s38, 1
      %p213 = por %p211, %p212
      %p214 = scmp.ne.s32.totalorder %s205, %s206
      %p215 = scmp.eq.s32.totalorder %s38, 0
      %p216 = por %p214, %p215
      %p217 = scmp.ne.s32.totalorder %s205, %s206
      %p218 = scmp.eq.s32.totalorder %s39, 1
      %p219 = por %p217, %p218
      %p221 = scmp.ne.s32.totalorder %s206, %s220
      %p222 = scmp.eq.s32.totalorder %s39, 0
      %p223 = por %p221, %p222
      %s225 = sadd.s32 %s224, 1
      %p228 = scmp.eq.s32.totalorder %s33, 1
      %p229 = scmp.ne.s32.totalorder %s224, %s226
      %p230 = scmp.eq.s32.totalorder %s33, 0
      %p231 = por %p229, %p230
      %p232 = scmp.ne.s32.totalorder %s224, %s226
      %p233 = scmp.eq.s32.totalorder %s38, 1
      %p234 = por %p232, %p233
      %p235 = scmp.ne.s32.totalorder %s226, %s227
      %p236 = scmp.eq.s32.totalorder %s38, 0
      %p237 = por %p235, %p236
      %p238 = scmp.ne.s32.totalorder %s226, %s227
      %p239 = scmp.eq.s32.totalorder %s39, 1
      %p240 = por %p238, %p239
      %p242 = scmp.ne.s32.totalorder %s227, %s241
      %p243 = scmp.eq.s32.totalorder %s39, 0
      %p244 = por %p242, %p243
      %s246 = sadd.s32 %s245, 1
      %p249 = scmp.eq.s32.totalorder %s33, 1
      %p250 = scmp.ne.s32.totalorder %s245, %s247
      %p251 = scmp.eq.s32.totalorder %s33, 0
      %p252 = por %p250, %p251
      %p253 = scmp.ne.s32.totalorder %s245, %s247
      %p254 = scmp.eq.s32.totalorder %s38, 1
      %p255 = por %p253, %p254
      %p256 = scmp.ne.s32.totalorder %s247, %s248
      %p257 = scmp.eq.s32.totalorder %s38, 0
      %p258 = por %p256, %p257
      %p259 = scmp.ne.s32.totalorder %s247, %s248
      %p260 = scmp.eq.s32.totalorder %s39, 1
      %p261 = por %p259, %p260
      %p263 = scmp.ne.s32.totalorder %s248, %s262
      %p264 = scmp.eq.s32.totalorder %s39, 0
      %p265 = por %p263, %p264
      %s267 = sadd.s32 %s266, 1
      %p270 = scmp.eq.s32.totalorder %s33, 1
      %p271 = scmp.ne.s32.totalorder %s266, %s268
      %p272 = scmp.eq.s32.totalorder %s33, 0
      %p273 = por %p271, %p272
      %p274 = scmp.ne.s32.totalorder %s266, %s268
      %p275 = scmp.eq.s32.totalorder %s38, 1
      %p276 = por %p274, %p275
      %p277 = scmp.ne.s32.totalorder %s268, %s269
      %p278 = scmp.eq.s32.totalorder %s38, 0
      %p279 = por %p277, %p278
      %p280 = scmp.ne.s32.totalorder %s268, %s269
      %p281 = scmp.eq.s32.totalorder %s39, 1
      %p282 = por %p280, %p281
      %p284 = scmp.ne.s32.totalorder %s269, %s283
      %p285 = scmp.eq.s32.totalorder %s39, 0
      %p286 = por %p284, %p285
      %s288 = sadd.s32 %s287, 1
      %p291 = scmp.eq.s32.totalorder %s33, 1
      %p292 = scmp.ne.s32.totalorder %s287, %s289
      %p293 = scmp.eq.s32.totalorder %s33, 0
      %p294 = por %p292, %p293
      %p295 = scmp.ne.s32.totalorder %s287, %s289
      %p296 = scmp.eq.s32.totalorder %s38, 1
      %p297 = por %p295, %p296
      %p298 = scmp.ne.s32.totalorder %s289, %s290
      %p299 = scmp.eq.s32.totalorder %s38, 0
      %p300 = por %p298, %p299
      %p301 = scmp.ne.s32.totalorder %s289, %s290
      %p302 = scmp.eq.s32.totalorder %s39, 1
      %p303 = por %p301, %p302
      %p305 = scmp.ne.s32.totalorder %s290, %s304
      %p306 = scmp.eq.s32.totalorder %s39, 0
      %p307 = por %p305, %p306
      %s309 = sadd.s32 %s308, 1
      %p312 = scmp.eq.s32.totalorder %s33, 1
      %p313 = scmp.ne.s32.totalorder %s308, %s310
      %p314 = scmp.eq.s32.totalorder %s33, 0
      %p315 = por %p313, %p314
      %p316 = scmp.ne.s32.totalorder %s308, %s310
      %p317 = scmp.eq.s32.totalorder %s38, 1
      %p318 = por %p316, %p317
      %p319 = scmp.ne.s32.totalorder %s310, %s311
      %p320 = scmp.eq.s32.totalorder %s38, 0
      %p321 = por %p319, %p320
      %p322 = scmp.ne.s32.totalorder %s310, %s311
      %p323 = scmp.eq.s32.totalorder %s39, 1
      %p324 = por %p322, %p323
      %p326 = scmp.ne.s32.totalorder %s311, %s325
      %p327 = scmp.eq.s32.totalorder %s39, 0
      %p328 = por %p326, %p327
      %s330 = sadd.s32 %s329, 1
      %p333 = scmp.eq.s32.totalorder %s33, 1
      %p334 = scmp.ne.s32.totalorder %s329, %s331
      %p335 = scmp.eq.s32.totalorder %s33, 0
      %p336 = por %p334, %p335
      %p337 = scmp.ne.s32.totalorder %s329, %s331
      %p338 = scmp.eq.s32.totalorder %s38, 1
      %p339 = por %p337, %p338
      %p340 = scmp.ne.s32.totalorder %s331, %s332
      %p341 = scmp.eq.s32.totalorder %s38, 0
      %p342 = por %p340, %p341
      %p343 = scmp.ne.s32.totalorder %s331, %s332
      %p344 = scmp.eq.s32.totalorder %s39, 1
      %p345 = por %p343, %p344
      %p347 = scmp.ne.s32.totalorder %s332, %s346
      %p348 = scmp.eq.s32.totalorder %s39, 0
      %p349 = por %p347, %p348
      %s351 = sadd.s32 %s350, 1
      %p354 = scmp.eq.s32.totalorder %s33, 1
      %p355 = scmp.ne.s32.totalorder %s350, %s352
      %p356 = scmp.eq.s32.totalorder %s33, 0
      %p357 = por %p355, %p356
      %p358 = scmp.ne.s32.totalorder %s350, %s352
      %p359 = scmp.eq.s32.totalorder %s38, 1
      %p360 = por %p358, %p359
      %p361 = scmp.ne.s32.totalorder %s352, %s353
      %p362 = scmp.eq.s32.totalorder %s38, 0
      %p363 = por %p361, %p362
      %p364 = scmp.ne.s32.totalorder %s352, %s353
      %p365 = scmp.eq.s32.totalorder %s39, 1
      %p366 = por %p364, %p365
      %p368 = scmp.ne.s32.totalorder %s353, %s367
      %p369 = scmp.eq.s32.totalorder %s39, 0
      %p370 = por %p368, %p369
      %s372 = sadd.s32 %s371, 1
      %p375 = scmp.eq.s32.totalorder %s33, 1
      %p376 = scmp.ne.s32.totalorder %s371, %s373
      %p377 = scmp.eq.s32.totalorder %s33, 0
      %p378 = por %p376, %p377
      %p379 = scmp.ne.s32.totalorder %s371, %s373
      %p380 = scmp.eq.s32.totalorder %s38, 1
      %p381 = por %p379, %p380
      %p382 = scmp.ne.s32.totalorder %s373, %s374
      %p383 = scmp.eq.s32.totalorder %s38, 0
      %p384 = por %p382, %p383
      %p385 = scmp.ne.s32.totalorder %s373, %s374
      %p386 = scmp.eq.s32.totalorder %s39, 1
      %p387 = por %p385, %p386
      %p389 = scmp.ne.s32.totalorder %s374, %s388
      %p390 = scmp.eq.s32.totalorder %s39, 0
      %p391 = por %p389, %p390
      %s393 = sadd.s32 %s392, 1
      %p396 = scmp.eq.s32.totalorder %s33, 1
      %p397 = scmp.ne.s32.totalorder %s392, %s394
      %p398 = scmp.eq.s32.totalorder %s33, 0
      %p399 = por %p397, %p398
      %p400 = scmp.ne.s32.totalorder %s392, %s394
      %p401 = scmp.eq.s32.totalorder %s38, 1
      %p402 = por %p400, %p401
      %p403 = scmp.ne.s32.totalorder %s394, %s395
      %p404 = scmp.eq.s32.totalorder %s38, 0
      %p405 = por %p403, %p404
      %p406 = scmp.ne.s32.totalorder %s394, %s395
      %p407 = scmp.eq.s32.totalorder %s39, 1
      %p408 = por %p406, %p407
      %p410 = scmp.ne.s32.totalorder %s395, %s409
      %p411 = scmp.eq.s32.totalorder %s39, 0
      %p412 = por %p410, %p411
      %s414 = sadd.s32 %s413, 1
      %p417 = scmp.eq.s32.totalorder %s33, 1
      %p418 = scmp.ne.s32.totalorder %s413, %s415
      %p419 = scmp.eq.s32.totalorder %s33, 0
      %p420 = por %p418, %p419
      %p421 = scmp.ne.s32.totalorder %s413, %s415
      %p422 = scmp.eq.s32.totalorder %s38, 1
      %p423 = por %p421, %p422
      %p424 = scmp.ne.s32.totalorder %s415, %s416
      %p425 = scmp.eq.s32.totalorder %s38, 0
      %p426 = por %p424, %p425
      %p427 = scmp.ne.s32.totalorder %s415, %s416
      %p428 = scmp.eq.s32.totalorder %s39, 1
      %p429 = por %p427, %p428
      %p431 = scmp.ne.s32.totalorder %s416, %s430
      %p432 = scmp.eq.s32.totalorder %s39, 0
      %p433 = por %p431, %p432
      %s435 = sadd.s32 %s434, 1
      %p438 = scmp.eq.s32.totalorder %s33, 1
      %p439 = scmp.ne.s32.totalorder %s434, %s436
      %p440 = scmp.eq.s32.totalorder %s33, 0
      %p441 = por %p439, %p440
      %p442 = scmp.ne.s32.totalorder %s434, %s436
      %p443 = scmp.eq.s32.totalorder %s38, 1
      %p444 = por %p442, %p443
      %p445 = scmp.ne.s32.totalorder %s436, %s437
      %p446 = scmp.eq.s32.totalorder %s38, 0
      %p447 = por %p445, %p446
      %p448 = scmp.ne.s32.totalorder %s436, %s437
      %p449 = scmp.eq.s32.totalorder %s39, 1
      %p450 = por %p448, %p449
      %p452 = scmp.ne.s32.totalorder %s437, %s451
      %p453 = scmp.eq.s32.totalorder %s39, 0
      %p454 = por %p452, %p453
      %s456 = sadd.s32 %s455, 1
      %p459 = scmp.eq.s32.totalorder %s33, 1
      %p460 = scmp.ne.s32.totalorder %s455, %s457
      %p461 = scmp.eq.s32.totalorder %s33, 0
      %p462 = por %p460, %p461
      %p463 = scmp.ne.s32.totalorder %s455, %s457
      %p464 = scmp.eq.s32.totalorder %s38, 1
      %p465 = por %p463, %p464
      %p466 = scmp.ne.s32.totalorder %s457, %s458
      %p467 = scmp.eq.s32.totalorder %s38, 0
      %p468 = por %p466, %p467
      %p469 = scmp.ne.s32.totalorder %s457, %s458
      %p470 = scmp.eq.s32.totalorder %s39, 1
      %p471 = por %p469, %p470
      %p473 = scmp.ne.s32.totalorder %s458, %s472
      %p474 = scmp.eq.s32.totalorder %s39, 0
      %p475 = por %p473, %p474
      %s477 = sadd.s32 %s476, 1
      %p480 = scmp.eq.s32.totalorder %s33, 1
      %p481 = scmp.ne.s32.totalorder %s476, %s478
      %p482 = scmp.eq.s32.totalorder %s33, 0
      %p483 = por %p481, %p482
      %p484 = scmp.ne.s32.totalorder %s476, %s478
      %p485 = scmp.eq.s32.totalorder %s38, 1
      %p486 = por %p484, %p485
      %p487 = scmp.ne.s32.totalorder %s478, %s479
      %p488 = scmp.eq.s32.totalorder %s38, 0
      %p489 = por %p487, %p488
      %p490 = scmp.ne.s32.totalorder %s478, %s479
      %p491 = scmp.eq.s32.totalorder %s39, 1
      %p492 = por %p490, %p491
      %p494 = scmp.ne.s32.totalorder %s479, %s493
      %p495 = scmp.eq.s32.totalorder %s39, 0
      %p496 = por %p494, %p495
      %s498 = sadd.s32 %s497, 1
      %p501 = scmp.eq.s32.totalorder %s33, 1
      %p502 = scmp.ne.s32.totalorder %s497, %s499
      %p503 = scmp.eq.s32.totalorder %s33, 0
      %p504 = por %p502, %p503
      %p505 = scmp.ne.s32.totalorder %s497, %s499
      %p506 = scmp.eq.s32.totalorder %s38, 1
      %p507 = por %p505, %p506
      %p508 = scmp.ne.s32.totalorder %s499, %s500
      %p509 = scmp.eq.s32.totalorder %s38, 0
      %p510 = por %p508, %p509
      %p511 = scmp.ne.s32.totalorder %s499, %s500
      %p512 = scmp.eq.s32.totalorder %s39, 1
      %p513 = por %p511, %p512
      %p515 = scmp.ne.s32.totalorder %s500, %s514
      %p516 = scmp.eq.s32.totalorder %s39, 0
      %p517 = por %p515, %p516
      %s519 = sadd.s32 %s518, 1
      %p522 = scmp.eq.s32.totalorder %s33, 1
      %p523 = scmp.ne.s32.totalorder %s518, %s520
      %p524 = scmp.eq.s32.totalorder %s33, 0
      %p525 = por %p523, %p524
      %p526 = scmp.ne.s32.totalorder %s518, %s520
      %p527 = scmp.eq.s32.totalorder %s38, 1
      %p528 = por %p526, %p527
      %p529 = scmp.ne.s32.totalorder %s520, %s521
      %p530 = scmp.eq.s32.totalorder %s38, 0
      %p531 = por %p529, %p530
      %p532 = scmp.ne.s32.totalorder %s520, %s521
      %p533 = scmp.eq.s32.totalorder %s39, 1
      %p534 = por %p532, %p533
      %p536 = scmp.ne.s32.totalorder %s521, %s535
      %p537 = scmp.eq.s32.totalorder %s39, 0
      %p538 = por %p536, %p537
      %s540 = sadd.s32 %s539, 1
      %p543 = scmp.eq.s32.totalorder %s33, 1
      %p544 = scmp.ne.s32.totalorder %s539, %s541
      %p545 = scmp.eq.s32.totalorder %s33, 0
      %p546 = por %p544, %p545
      %p547 = scmp.ne.s32.totalorder %s539, %s541
      %p548 = scmp.eq.s32.totalorder %s38, 1
      %p549 = por %p547, %p548
      %p550 = scmp.ne.s32.totalorder %s541, %s542
      %p551 = scmp.eq.s32.totalorder %s38, 0
      %p552 = por %p550, %p551
      %p553 = scmp.ne.s32.totalorder %s541, %s542
      %p554 = scmp.eq.s32.totalorder %s39, 1
      %p555 = por %p553, %p554
      %p557 = scmp.ne.s32.totalorder %s542, %s556
      %p558 = scmp.eq.s32.totalorder %s39, 0
      %p559 = por %p557, %p558
      %s561 = sadd.s32 %s560, 1
      %p564 = scmp.eq.s32.totalorder %s33, 1
      %p565 = scmp.ne.s32.totalorder %s560, %s562
      %p566 = scmp.eq.s32.totalorder %s33, 0
      %p567 = por %p565, %p566
      %p568 = scmp.ne.s32.totalorder %s560, %s562
      %p569 = scmp.eq.s32.totalorder %s38, 1
      %p570 = por %p568, %p569
      %p571 = scmp.ne.s32.totalorder %s562, %s563
      %p572 = scmp.eq.s32.totalorder %s38, 0
      %p573 = por %p571, %p572
      %p574 = scmp.ne.s32.totalorder %s562, %s563
      %p575 = scmp.eq.s32.totalorder %s39, 1
      %p576 = por %p574, %p575
      %p578 = scmp.ne.s32.totalorder %s563, %s577
      %p579 = scmp.eq.s32.totalorder %s39, 0
      %p580 = por %p578, %p579
      %s581 = ssub.s32 %s40, %s52
      %s582 = ssub.s32 %s41, %s48
      %s583 = sor.u32 %s581, %s582
      %p584 = scmp.eq.s32.totalorder %s583, 0
      %s586 = sadd.s32 %s585, 1
      %s587 = scalar_select %p584, %s585, %s586
      %p590 = pneg %p584
      %p591 = scmp.eq.s32.totalorder %s33, 1
      %p592 = por %p590, %p591
      %p593 = scmp.ne.s32.totalorder %s585, %s588
      %p594 = scmp.eq.s32.totalorder %s33, 0
      %p595 = por %p593, %p594
      %p596 = scmp.ne.s32.totalorder %s585, %s588
      %p597 = scmp.eq.s32.totalorder %s38, 1
      %p598 = por %p596, %p597
      %p599 = scmp.ne.s32.totalorder %s588, %s589
      %p600 = scmp.eq.s32.totalorder %s38, 0
      %p601 = por %p599, %p600
      %p602 = scmp.ne.s32.totalorder %s588, %s589
      %p603 = scmp.eq.s32.totalorder %s39, 1
      %p604 = por %p602, %p603
      %p606 = scmp.ne.s32.totalorder %s589, %s605
      %p607 = scmp.eq.s32.totalorder %s39, 0
      %p608 = por %p606, %p607
      %p609 = scmp.le.s32.totalorder 1, %s33
      %p610 = scmp.lt.s32.totalorder %s33, 3
      %p611 = pnand %p609, %p610
      %p612 = pneg %p611
      // Predicated region
      $region9: #{tpu_custom_call.1} parent=5 // pred_check
        _
      $region10: #{tpu_custom_call.1} parent=5 // pred_check_branch
        %614 = sbr.rel (%p611) target = $region12
      $region11: #{tpu_custom_call.1} parent=5 // pred_region
        %s615 = ssub.s32 %s33, 1
        // Predicated region
        $region13: #{tpu_custom_call.1} parent=11 // pred_check
          %p616 = pneg %p174
        $region14: #{tpu_custom_call.1} parent=11 // pred_check_branch
          %618 = sbr.rel (%p616) target = $region16
        $region15: #{tpu_custom_call.1} parent=11 // pred_region
          _
        $region16: #{tpu_custom_call.1} parent=11 // pred_fallthru
          _
        // Predicated region
        $region17: #{tpu_custom_call.1} parent=11 // pred_check
          %p619 = pneg %p195
        $region18: #{tpu_custom_call.1} parent=11 // pred_check_branch
          %621 = sbr.rel (%p619) target = $region20
        $region19: #{tpu_custom_call.1} parent=11 // pred_region
          _
        $region20: #{tpu_custom_call.1} parent=11 // pred_fallthru
          _
        // Predicated region
        $region21: #{tpu_custom_call.1} parent=11 // pred_check
          %p622 = pneg %p216
        $region22: #{tpu_custom_call.1} parent=11 // pred_check_branch
          %624 = sbr.rel (%p622) target = $region24
        $region23: #{tpu_custom_call.1} parent=11 // pred_region
          _
        $region24: #{tpu_custom_call.1} parent=11 // pred_fallthru
          _
        // Predicated region
        $region25: #{tpu_custom_call.1} parent=11 // pred_check
          %p625 = pneg %p237
        $region26: #{tpu_custom_call.1} parent=11 // pred_check_branch
          %627 = sbr.rel (%p625) target = $region28
        $region27: #{tpu_custom_call.1} parent=11 // pred_region
          _
        $region28: #{tpu_custom_call.1} parent=11 // pred_fallthru
          _
        // Predicated region
        $region29: #{tpu_custom_call.1} parent=11 // pred_check
          %p628 = pneg %p258
        $region30: #{tpu_custom_call.1} parent=11 // pred_check_branch
          %630 = sbr.rel (%p628) target = $region32
        $region31: #{tpu_custom_call.1} parent=11 // pred_region
          _
        $region32: #{tpu_custom_call.1} parent=11 // pred_fallthru
          _
        // Predicated region
        $region33: #{tpu_custom_call.1} parent=11 // pred_check
          %p631 = pneg %p279
        $region34: #{tpu_custom_call.1} parent=11 // pred_check_branch
          %633 = sbr.rel (%p631) target = $region36
        $region35: #{tpu_custom_call.1} parent=11 // pred_region
          _
        $region36: #{tpu_custom_call.1} parent=11 // pred_fallthru
          _
        // Predicated region
        $region37: #{tpu_custom_call.1} parent=11 // pred_check
          %p634 = pneg %p300
        $region38: #{tpu_custom_call.1} parent=11 // pred_check_branch
          %636 = sbr.rel (%p634) target = $region40
        $region39: #{tpu_custom_call.1} parent=11 // pred_region
          _
        $region40: #{tpu_custom_call.1} parent=11 // pred_fallthru
          _
        // Predicated region
        $region41: #{tpu_custom_call.1} parent=11 // pred_check
          %p637 = pneg %p321
        $region42: #{tpu_custom_call.1} parent=11 // pred_check_branch
          %639 = sbr.rel (%p637) target = $region44
        $region43: #{tpu_custom_call.1} parent=11 // pred_region
          _
        $region44: #{tpu_custom_call.1} parent=11 // pred_fallthru
          _
        // Predicated region
        $region45: #{tpu_custom_call.1} parent=11 // pred_check
          %p640 = pneg %p342
        $region46: #{tpu_custom_call.1} parent=11 // pred_check_branch
          %642 = sbr.rel (%p640) target = $region48
        $region47: #{tpu_custom_call.1} parent=11 // pred_region
          _
        $region48: #{tpu_custom_call.1} parent=11 // pred_fallthru
          _
        // Predicated region
        $region49: #{tpu_custom_call.1} parent=11 // pred_check
          %p643 = pneg %p363
        $region50: #{tpu_custom_call.1} parent=11 // pred_check_branch
          %645 = sbr.rel (%p643) target = $region52
        $region51: #{tpu_custom_call.1} parent=11 // pred_region
          _
        $region52: #{tpu_custom_call.1} parent=11 // pred_fallthru
          _
        // Predicated region
        $region53: #{tpu_custom_call.1} parent=11 // pred_check
          %p646 = pneg %p384
        $region54: #{tpu_custom_call.1} parent=11 // pred_check_branch
          %648 = sbr.rel (%p646) target = $region56
        $region55: #{tpu_custom_call.1} parent=11 // pred_region
          _
        $region56: #{tpu_custom_call.1} parent=11 // pred_fallthru
          _
        // Predicated region
        $region57: #{tpu_custom_call.1} parent=11 // pred_check
          %p649 = pneg %p405
        $region58: #{tpu_custom_call.1} parent=11 // pred_check_branch
          %651 = sbr.rel (%p649) target = $region60
        $region59: #{tpu_custom_call.1} parent=11 // pred_region
          _
        $region60: #{tpu_custom_call.1} parent=11 // pred_fallthru
          _
        // Predicated region
        $region61: #{tpu_custom_call.1} parent=11 // pred_check
          %p652 = pneg %p426
        $region62: #{tpu_custom_call.1} parent=11 // pred_check_branch
          %654 = sbr.rel (%p652) target = $region64
        $region63: #{tpu_custom_call.1} parent=11 // pred_region
          _
        $region64: #{tpu_custom_call.1} parent=11 // pred_fallthru
          _
        // Predicated region
        $region65: #{tpu_custom_call.1} parent=11 // pred_check
          %p655 = pneg %p447
        $region66: #{tpu_custom_call.1} parent=11 // pred_check_branch
          %657 = sbr.rel (%p655) target = $region68
        $region67: #{tpu_custom_call.1} parent=11 // pred_region
          _
        $region68: #{tpu_custom_call.1} parent=11 // pred_fallthru
          _
        // Predicated region
        $region69: #{tpu_custom_call.1} parent=11 // pred_check
          %p658 = pneg %p468
        $region70: #{tpu_custom_call.1} parent=11 // pred_check_branch
          %660 = sbr.rel (%p658) target = $region72
        $region71: #{tpu_custom_call.1} parent=11 // pred_region
          _
        $region72: #{tpu_custom_call.1} parent=11 // pred_fallthru
          _
        // Predicated region
        $region73: #{tpu_custom_call.1} parent=11 // pred_check
          %p661 = pneg %p489
        $region74: #{tpu_custom_call.1} parent=11 // pred_check_branch
          %663 = sbr.rel (%p661) target = $region76
        $region75: #{tpu_custom_call.1} parent=11 // pred_region
          _
        $region76: #{tpu_custom_call.1} parent=11 // pred_fallthru
          _
        // Predicated region
        $region77: #{tpu_custom_call.1} parent=11 // pred_check
          %p664 = pneg %p510
        $region78: #{tpu_custom_call.1} parent=11 // pred_check_branch
          %666 = sbr.rel (%p664) target = $region80
        $region79: #{tpu_custom_call.1} parent=11 // pred_region
          _
        $region80: #{tpu_custom_call.1} parent=11 // pred_fallthru
          _
        // Predicated region
        $region81: #{tpu_custom_call.1} parent=11 // pred_check
          %p667 = pneg %p531
        $region82: #{tpu_custom_call.1} parent=11 // pred_check_branch
          %669 = sbr.rel (%p667) target = $region84
        $region83: #{tpu_custom_call.1} parent=11 // pred_region
          _
        $region84: #{tpu_custom_call.1} parent=11 // pred_fallthru
          _
        // Predicated region
        $region85: #{tpu_custom_call.1} parent=11 // pred_check
          %p670 = pneg %p552
        $region86: #{tpu_custom_call.1} parent=11 // pred_check_branch
          %672 = sbr.rel (%p670) target = $region88
        $region87: #{tpu_custom_call.1} parent=11 // pred_region
          _
        $region88: #{tpu_custom_call.1} parent=11 // pred_fallthru
          _
        // Predicated region
        $region89: #{tpu_custom_call.1} parent=11 // pred_check
          %p673 = pneg %p573
        $region90: #{tpu_custom_call.1} parent=11 // pred_check_branch
          %675 = sbr.rel (%p673) target = $region92
        $region91: #{tpu_custom_call.1} parent=11 // pred_region
          _
        $region92: #{tpu_custom_call.1} parent=11 // pred_fallthru
          _
      $region12: #{tpu_custom_call.1} parent=5 // pred_fallthru
        _
      %p676 = scmp.lt.s32.totalorder %s33, 2
      // Predicated region
      $region93: #{tpu_custom_call.1} parent=5 // pred_check
        %p677 = pneg %p676
      $region94: #{tpu_custom_call.1} parent=5 // pred_check_branch
        %679 = sbr.rel (%p677) target = $region96
      $region95: #{tpu_custom_call.1} parent=5 // pred_region
        // Predicated region
        $region97: #{tpu_custom_call.1} parent=95 // pred_check
          %p680 = pneg %p65
        $region98: #{tpu_custom_call.1} parent=95 // pred_check_branch
          %682 = sbr.rel (%p680) target = $region100
        $region99: #{tpu_custom_call.1} parent=95 // pred_region
          %p683 = scmp.lt.s32.totalorder %s40, 1
          %s684 = scalar_select %p683, %s40, 1
          %s685 = smul.addr %s684, 8
          %s686 = scalar_lea.vmem %s0, %s685
        $region100: #{tpu_custom_call.1} parent=95 // pred_fallthru
          _
        // Predicated region
        $region101: #{tpu_custom_call.1} parent=95 // pred_check
          %p687 = pneg %p91
        $region102: #{tpu_custom_call.1} parent=95 // pred_check_branch
          %689 = sbr.rel (%p687) target = $region104
        $region103: #{tpu_custom_call.1} parent=95 // pred_region
          %p690 = scmp.lt.s32.totalorder %s40, 1
          %s691 = scalar_select %p690, %s40, 1
          %s692 = smul.addr %s691, 8
          %s693 = scalar_lea.vmem %s1, %s692
        $region104: #{tpu_custom_call.1} parent=95 // pred_fallthru
          _
        // Predicated region
        $region105: #{tpu_custom_call.1} parent=95 // pred_check
          %p694 = pneg %p119
        $region106: #{tpu_custom_call.1} parent=95 // pred_check_branch
          %696 = sbr.rel (%p694) target = $region108
        $region107: #{tpu_custom_call.1} parent=95 // pred_region
          %p697 = scmp.lt.s32.totalorder %s40, 1
          %s698 = scalar_select %p697, %s40, 1
          %p699 = scmp.lt.s32.totalorder %s41, 0
          %s700 = scalar_select %p699, %s41, 0
          %s701 = sadd.s32 %s700, %s698
          %s702 = smul.addr %s701, 8
          %s703 = scalar_lea.vmem %s2, %s702
        $region108: #{tpu_custom_call.1} parent=95 // pred_fallthru
          _
        // Predicated region
        $region109: #{tpu_custom_call.1} parent=95 // pred_check
          %p704 = pneg %p147
        $region110: #{tpu_custom_call.1} parent=95 // pred_check_branch
          %706 = sbr.rel (%p704) target = $region112
        $region111: #{tpu_custom_call.1} parent=95 // pred_region
          %p707 = scmp.lt.s32.totalorder %s40, 1
          %s708 = scalar_select %p707, %s40, 1
          %p709 = scmp.lt.s32.totalorder %s41, 0
          %s710 = scalar_select %p709, %s41, 0
          %s711 = sadd.s32 %s710, %s708
          %s712 = smul.addr %s711, 8
          %s713 = scalar_lea.vmem %s3, %s712
        $region112: #{tpu_custom_call.1} parent=95 // pred_fallthru
          _
      $region96: #{tpu_custom_call.1} parent=5 // pred_fallthru
        _
      %p714 = scmp.le.s32.totalorder 1, %s33
      %p715 = scmp.lt.s32.totalorder %s33, 3
      %p716 = pnand %p714, %p715
      %p717 = pneg %p716
      // Predicated region
      $region113: #{tpu_custom_call.1} parent=5 // pred_check
        _
      $region114: #{tpu_custom_call.1} parent=5 // pred_check_branch
        %719 = sbr.rel (%p716) target = $region116
      $region115: #{tpu_custom_call.1} parent=5 // pred_region
        %s720 = ssub.s32 %s33, 1
        %p721 = scmp.lt.s32.totalorder %s42, 1
        %s722 = scalar_select %p721, %s42, 1
        %s723 = smul.addr %s722, 8
        %s724 = scalar_lea.vmem %s0, %s723
        %p725 = pneg %p71
        %p726 = pneg %p68
        %p727 = scmp.lt.s32.totalorder %s42, 1
        %s728 = scalar_select %p727, %s42, 1
        %s729 = smul.addr %s728, 8
        %s730 = scalar_lea.vmem %s1, %s729
        %p731 = pneg %p97
        %p732 = pneg %p94
        %p733 = scmp.lt.s32.totalorder %s42, 1
        %s734 = scalar_select %p733, %s42, 1
        %p735 = scmp.lt.s32.totalorder %s43, 0
        %s736 = scalar_select %p735, %s43, 0
        %s737 = sadd.s32 %s736, %s734
        %s738 = smul.addr %s737, 8
        %s739 = scalar_lea.vmem %s2, %s738
        %p740 = pneg %p125
        %p741 = pneg %p122
        %p742 = scmp.lt.s32.totalorder %s42, 1
        %s743 = scalar_select %p742, %s42, 1
        %p744 = scmp.lt.s32.totalorder %s43, 0
        %s745 = scalar_select %p744, %s43, 0
        %s746 = sadd.s32 %s745, %s743
        %s747 = smul.addr %s746, 8
        %s748 = scalar_lea.vmem %s3, %s747
        %p749 = pneg %p153
        %p750 = pneg %p150
        %p751 = pneg %p174
        %p752 = pneg %p171
        %p753 = pneg %p195
        %p754 = pneg %p192
        %p755 = pneg %p216
        %p756 = pneg %p213
        %p757 = pneg %p237
        %p758 = pneg %p234
        %p759 = pneg %p258
        %p760 = pneg %p255
        %p761 = pneg %p279
        %p762 = pneg %p276
        %p763 = pneg %p300
        %p764 = pneg %p297
        %p765 = pneg %p321
        %p766 = pneg %p318
        %p767 = pneg %p342
        %p768 = pneg %p339
        %p769 = pneg %p363
        %p770 = pneg %p360
        %p771 = pneg %p384
        %p772 = pneg %p381
        %p773 = pneg %p405
        %p774 = pneg %p402
        %p775 = pneg %p426
        %p776 = pneg %p423
        %p777 = pneg %p447
        %p778 = pneg %p444
        %p779 = pneg %p468
        %p780 = pneg %p465
        %p781 = pneg %p489
        %p782 = pneg %p486
        %p783 = pneg %p510
        %p784 = pneg %p507
        %p785 = pneg %p531
        %p786 = pneg %p528
        %p787 = pneg %p552
        %p788 = pneg %p549
        %p789 = pneg %p573
        %p790 = pneg %p570
        %p791 = pneg %p601
        %p792 = pneg %p598
        %s793 = sand.u32 %s588, 1
        %s794 = scalar_lea.sflag [#allocation3], %s793
        %s795 = sand.u32 %s588, 1
        %s796 = smul.addr %s795, 8
        %s797 = scalar_lea.vmem [#allocation2], %s796
        %p798 = scmp.lt.s32.totalorder %s42, 1
        %s799 = scalar_select %p798, %s42, 1
        %s800 = smul.addr %s799, 8
        %s801 = scalar_lea.vmem %s0, %s800
        %p802 = scmp.lt.s32.totalorder %s42, 1
        %s803 = scalar_select %p802, %s42, 1
        %s804 = smul.addr %s803, 8
        %s805 = scalar_lea.vmem %s1, %s804
        %p806 = scmp.lt.s32.totalorder %s42, 1
        %s807 = scalar_select %p806, %s42, 1
        %p808 = scmp.lt.s32.totalorder %s43, 0
        %s809 = scalar_select %p808, %s43, 0
        %s810 = sadd.s32 %s809, %s807
        %s811 = smul.addr %s810, 8
        %s812 = scalar_lea.vmem %s2, %s811
        %p813 = scmp.lt.s32.totalorder %s42, 1
        %s814 = scalar_select %p813, %s42, 1
        %p815 = scmp.lt.s32.totalorder %s43, 0
        %s816 = scalar_select %p815, %s43, 0
        %s817 = sadd.s32 %s816, %s814
        %s818 = smul.addr %s817, 8
        %s819 = scalar_lea.vmem %s3, %s818
        %s820 = smul.u32 %s43, 8
        %v821 = vld [vmem:[%s801] sm:$0xff]
        %v822 = vld [vmem:[%s805] sm:$0xff]
        %s823 = scalar_lea.vmem %s801, %s820
        %v824 = vld [vmem:[%s823] sm:$0xff]
        %v825 = vld [vmem:[%s812] sm:$0xff]
        %v826 = vld [vmem:[%s4] sm:$0xff]
        %v827 = vld [vmem:[%s4 + $0x8] sm:$0xff]
        %v828 = vld [vmem:[%s4 + $0x10] sm:$0xff]
        %v829 = vld [vmem:[%s4 + $0x18] sm:$0xff]
        %v830 = vld [vmem:[%s5] sm:$0x1]
        %v831 = vld [vmem:[%s6] sm:$0xff]
        %v832 = vld [vmem:[%s6 + $0x8] sm:$0xff]
        %v833 = vld [vmem:[%s6 + $0x10] sm:$0xff]
        %v834 = vld [vmem:[%s6 + $0x18] sm:$0xff]
        %v835 = vld [vmem:[%s7] sm:$0x1]
        %v836 = vld [vmem:[%s8] sm:$0xff]
        %v837 = vld [vmem:[%s8 + $0x8] sm:$0xff]
        %v838 = vld [vmem:[%s8 + $0x10] sm:$0xff]
        %v839 = vld [vmem:[%s8 + $0x18] sm:$0xff]
        %v840 = vld [vmem:[%s9] sm:$0x1]
        %v841 = vld [vmem:[%s10] sm:$0xff]
        %v842 = vld [vmem:[%s10 + $0x8] sm:$0xff]
        %v843 = vld [vmem:[%s10 + $0x10] sm:$0xff]
        %v844 = vld [vmem:[%s10 + $0x18] sm:$0xff]
        %v845 = vld [vmem:[%s10 + $0x20] sm:$0xff]
        %v846 = vld [vmem:[%s10 + $0x28] sm:$0xff]
        %v847 = vld [vmem:[%s10 + $0x30] sm:$0xff]
        %v848 = vld [vmem:[%s10 + $0x38] sm:$0xff]
        %v849 = vld [vmem:[%s11] sm:$0x1]
        %v851 = vperm.slane %v830, 0
        %vm853 = vcmask 261120
        %v855 = vsel %vm853, %v824, 0
        %857 = vmatpush.msra.mxu0 0.0
        %858 = vmatpush.msra.mxu0 0.0
        %859 = vmatpush.msra.mxu0 0.0
        %860 = vmatpush.msra.mxu0 0.0
        %861 = vmatpush.msra.mxu0 0.0
        %862 = vmatpush.msra.mxu0 0.0
        %863 = vmatpush.msra.mxu0 0.0
        %864 = vmatpush.msra.mxu0 0.0
        %865 = vmatpush.msra.mxu0 0.0
        %866 = vmatpush.msra.mxu0 0.0
        %867 = vmatpush.msra.mxu0 0.0
        %868 = vmatpush.msra.mxu0 0.0
        %869 = vmatpush.msra.mxu0 %v829
        %870 = vmatpush.msra.mxu0 %v828
        %871 = vmatpush.msra.mxu0 %v827
        %872 = vmatpush.msra.mxu0 %v826
        %873 = vmatmul.f32.gmra.mxu0 %v855
        %v874 = vpop.f32.mrf.mxu0
        %v875 = vadd.f32 %v851, %v874
        %876 = vdwg.mxu0
        %v877 = vmul.f32 %v875, 0.17677669
        %v879 = vperm.slane %v835, 0
        %v882 = vsel %vm853, %v821, 0
        %884 = vmatpush.msra.mxu0 0.0
        %885 = vmatpush.msra.mxu0 0.0
        %886 = vmatpush.msra.mxu0 0.0
        %887 = vmatpush.msra.mxu0 0.0
        %888 = vmatpush.msra.mxu0 0.0
        %889 = vmatpush.msra.mxu0 0.0
        %890 = vmatpush.msra.mxu0 0.0
        %891 = vmatpush.msra.mxu0 0.0
        %892 = vmatpush.msra.mxu0 0.0
        %893 = vmatpush.msra.mxu0 0.0
        %894 = vmatpush.msra.mxu0 0.0
        %895 = vmatpush.msra.mxu0 0.0
        %896 = vmatpush.msra.mxu0 %v834
        %897 = vmatpush.msra.mxu0 %v833
        %898 = vmatpush.msra.mxu0 %v832
        %899 = vmatpush.msra.mxu0 %v831
        %900 = vmatmul.f32.gmra.mxu0 %v882
        %v901 = vpop.f32.mrf.mxu0
        %v902 = vadd.f32 %v879, %v901
        %903 = vdwg.mxu0
        %v905 = vperm.slane %v840, 0
        %907 = vmatpush.msra.mxu0 0.0
        %908 = vmatpush.msra.mxu0 0.0
        %909 = vmatpush.msra.mxu0 0.0
        %910 = vmatpush.msra.mxu0 0.0
        %911 = vmatpush.msra.mxu0 0.0
        %912 = vmatpush.msra.mxu0 0.0
        %913 = vmatpush.msra.mxu0 0.0
        %914 = vmatpush.msra.mxu0 0.0
        %915 = vmatpush.msra.mxu0 0.0
        %916 = vmatpush.msra.mxu0 0.0
        %917 = vmatpush.msra.mxu0 0.0
        %918 = vmatpush.msra.mxu0 0.0
        %919 = vmatpush.msra.mxu0 %v839
        %920 = vmatpush.msra.mxu0 %v838
        %921 = vmatpush.msra.mxu0 %v837
        %922 = vmatpush.msra.mxu0 %v836
        %923 = vmatmul.f32.gmra.mxu0 %v882
        %v924 = vpop.f32.mrf.mxu0
        %v925 = vadd.f32 %v905, %v924
        %926 = vdwg.mxu0
        %vm927 = vcmp.gt.f32.partialorder %v825, 0.5
        %v928 = vsel %vm927, -1e+10, 0.0
        %vm929 = vcmask 64512
        %v931 = vsel %vm929, %v877, 0
        %v934 = vsel %vm929, %v902, 0
        %936 = vmatpush.xpose.msra.mxu0 0.0
        %937 = vmatpush.xpose.msra.mxu0 0.0
        %938 = vmatpush.xpose.msra.mxu0 0.0
        %939 = vmatpush.xpose.msra.mxu0 0.0
        %940 = vmatpush.xpose.msra.mxu0 0.0
        %941 = vmatpush.xpose.msra.mxu0 0.0
        %942 = vmatpush.xpose.msra.mxu0 0.0
        %943 = vmatpush.xpose.msra.mxu0 0.0
        %944 = vmatpush.xpose.msra.mxu0 0.0
        %945 = vmatpush.xpose.msra.mxu0 0.0
        %946 = vmatpush.xpose.msra.mxu0 0.0
        %947 = vmatpush.xpose.msra.mxu0 0.0
        %948 = vmatpush.xpose.msra.mxu0 0.0
        %949 = vmatpush.xpose.msra.mxu0 0.0
        %950 = vmatpush.xpose.msra.mxu0 0.0
        %951 = vmatpush.xpose.msra.mxu0 %v934
        %952 = vmatmul.f32.gmra.mxu0 %v931
        %v953 = vpop.f32.mrf.mxu0
        %v954 = vadd.f32 %v928, %v953
        %955 = vdwg.mxu0
        %v956 = vsel %vm929, %v954, -inf
        %957 = vmax.xlane.f32.xlu0 %v956
        %v958 = vpop.xlane.xlu0 %957
        %v959 = vsub.f32 %v954, %v958
        %v960 = vmul.f32 %v959, 1.442695
        %v961 = vpow.pop %v960
        %v962 = vsel %vm929, %v961, 0.0
        %963 = vadd.xlane.f32.xlu0 %v962
        %v964 = vpop.xlane.xlu0 %963
        %v965 = vrcp.pop %v964
        %v966 = vmul.f32 %v961, %v965
        %v968 = vsel %vm929, %v966, 0
        %970 = vmatpush.msra.mxu0 0.0
        %971 = vmatpush.msra.mxu0 0.0
        %972 = vmatpush.msra.mxu0 0.0
        %973 = vmatpush.msra.mxu0 0.0
        %974 = vmatpush.msra.mxu0 0.0
        %975 = vmatpush.msra.mxu0 0.0
        %976 = vmatpush.msra.mxu0 0.0
        %977 = vmatpush.msra.mxu0 0.0
        %978 = vmatpush.msra.mxu0 0.0
        %979 = vmatpush.msra.mxu0 0.0
        %980 = vmatpush.msra.mxu0 0.0
        %981 = vmatpush.msra.mxu0 0.0
        %982 = vmatpush.msra.mxu0 0.0
        %983 = vmatpush.msra.mxu0 0.0
        %984 = vmatpush.msra.mxu0 0.0
        %985 = vmatpush.msra.mxu0 %v925
        %986 = vmatmul.f32.gmra.mxu0 %v968
        %v987 = vpop.f32.mrf.mxu0
        %v988 = vadd.f32 0.0, %v987
        %989 = vdwg.mxu0
        %990 = vrot.lane.b32.xlu0 %v877, 120
        %v991 = vpop.permute.xlu0 %990
        %992 = vrot.lane.b32.xlu0 %v902, 120
        %v993 = vpop.permute.xlu0 %992
        %v994 = vsel %vm929, %v991, 0
        %v996 = vsel %vm929, %v993, 0
        %998 = vmatpush.xpose.msra.mxu0 0.0
        %999 = vmatpush.xpose.msra.mxu0 0.0
        %1000 = vmatpush.xpose.msra.mxu0 0.0
        %1001 = vmatpush.xpose.msra.mxu0 0.0
        %1002 = vmatpush.xpose.msra.mxu0 0.0
        %1003 = vmatpush.xpose.msra.mxu0 0.0
        %1004 = vmatpush.xpose.msra.mxu0 0.0
        %1005 = vmatpush.xpose.msra.mxu0 0.0
        %1006 = vmatpush.xpose.msra.mxu0 0.0
        %1007 = vmatpush.xpose.msra.mxu0 0.0
        %1008 = vmatpush.xpose.msra.mxu0 0.0
        %1009 = vmatpush.xpose.msra.mxu0 0.0
        %1010 = vmatpush.xpose.msra.mxu0 0.0
        %1011 = vmatpush.xpose.msra.mxu0 0.0
        %1012 = vmatpush.xpose.msra.mxu0 0.0
        %1013 = vmatpush.xpose.msra.mxu0 %v996
        %1014 = vmatmul.f32.gmra.mxu0 %v994
        %v1015 = vpop.f32.mrf.mxu0
        %v1016 = vadd.f32 %v928, %v1015
        %1017 = vdwg.mxu0
        %v1018 = vsel %vm929, %v1016, -inf
        %1019 = vmax.xlane.f32.xlu0 %v1018
        %v1020 = vpop.xlane.xlu0 %1019
        %v1021 = vsub.f32 %v1016, %v1020
        %v1022 = vmul.f32 %v1021, 1.442695
        %v1023 = vpow.pop %v1022
        %v1024 = vsel %vm929, %v1023, 0.0
        %1025 = vadd.xlane.f32.xlu0 %v1024
        %v1026 = vpop.xlane.xlu0 %1025
        %v1027 = vrcp.pop %v1026
        %v1028 = vmul.f32 %v1023, %v1027
        %1030 = vrot.lane.b32.xlu0 %v925, 120
        %v1031 = vpop.permute.xlu0 %1030
        %v1034 = vsel %vm929, %v1028, 0
        %1036 = vmatpush.msra.mxu0 0.0
        %1037 = vmatpush.msra.mxu0 0.0
        %1038 = vmatpush.msra.mxu0 0.0
        %1039 = vmatpush.msra.mxu0 0.0
        %1040 = vmatpush.msra.mxu0 0.0
        %1041 = vmatpush.msra.mxu0 0.0
        %1042 = vmatpush.msra.mxu0 0.0
        %1043 = vmatpush.msra.mxu0 0.0
        %1044 = vmatpush.msra.mxu0 0.0
        %1045 = vmatpush.msra.mxu0 0.0
        %1046 = vmatpush.msra.mxu0 0.0
        %1047 = vmatpush.msra.mxu0 0.0
        %1048 = vmatpush.msra.mxu0 0.0
        %1049 = vmatpush.msra.mxu0 0.0
        %1050 = vmatpush.msra.mxu0 0.0
        %1051 = vmatpush.msra.mxu0 %v1031
        %1052 = vmatmul.f32.gmra.mxu0 %v1034
        %v1053 = vpop.f32.mrf.mxu0
        %v1054 = vadd.f32 0.0, %v1053
        %1055 = vdwg.mxu0
        %1056 = vrot.lane.b32.xlu0 %v877, 112
        %v1057 = vpop.permute.xlu0 %1056
        %1058 = vrot.lane.b32.xlu0 %v902, 112
        %v1059 = vpop.permute.xlu0 %1058
        %v1060 = vsel %vm929, %v1057, 0
        %v1062 = vsel %vm929, %v1059, 0
        %1064 = vmatpush.xpose.msra.mxu0 0.0
        %1065 = vmatpush.xpose.msra.mxu0 0.0
        %1066 = vmatpush.xpose.msra.mxu0 0.0
        %1067 = vmatpush.xpose.msra.mxu0 0.0
        %1068 = vmatpush.xpose.msra.mxu0 0.0
        %1069 = vmatpush.xpose.msra.mxu0 0.0
        %1070 = vmatpush.xpose.msra.mxu0 0.0
        %1071 = vmatpush.xpose.msra.mxu0 0.0
        %1072 = vmatpush.xpose.msra.mxu0 0.0
        %1073 = vmatpush.xpose.msra.mxu0 0.0
        %1074 = vmatpush.xpose.msra.mxu0 0.0
        %1075 = vmatpush.xpose.msra.mxu0 0.0
        %1076 = vmatpush.xpose.msra.mxu0 0.0
        %1077 = vmatpush.xpose.msra.mxu0 0.0
        %1078 = vmatpush.xpose.msra.mxu0 0.0
        %1079 = vmatpush.xpose.msra.mxu0 %v1062
        %1080 = vmatmul.f32.gmra.mxu0 %v1060
        %v1081 = vpop.f32.mrf.mxu0
        %v1082 = vadd.f32 %v928, %v1081
        %1083 = vdwg.mxu0
        %v1084 = vsel %vm929, %v1082, -inf
        %1085 = vmax.xlane.f32.xlu0 %v1084
        %v1086 = vpop.xlane.xlu0 %1085
        %v1087 = vsub.f32 %v1082, %v1086
        %v1088 = vmul.f32 %v1087, 1.442695
        %v1089 = vpow.pop %v1088
        %v1090 = vsel %vm929, %v1089, 0.0
        %1091 = vadd.xlane.f32.xlu0 %v1090
        %v1092 = vpop.xlane.xlu0 %1091
        %v1093 = vrcp.pop %v1092
        %v1094 = vmul.f32 %v1089, %v1093
        %1095 = vrot.lane.b32.xlu0 %v925, 112
        %v1096 = vpop.permute.xlu0 %1095
        %v1099 = vsel %vm929, %v1094, 0
        %1101 = vmatpush.msra.mxu0 0.0
        %1102 = vmatpush.msra.mxu0 0.0
        %1103 = vmatpush.msra.mxu0 0.0
        %1104 = vmatpush.msra.mxu0 0.0
        %1105 = vmatpush.msra.mxu0 0.0
        %1106 = vmatpush.msra.mxu0 0.0
        %1107 = vmatpush.msra.mxu0 0.0
        %1108 = vmatpush.msra.mxu0 0.0
        %1109 = vmatpush.msra.mxu0 0.0
        %1110 = vmatpush.msra.mxu0 0.0
        %1111 = vmatpush.msra.mxu0 0.0
        %1112 = vmatpush.msra.mxu0 0.0
        %1113 = vmatpush.msra.mxu0 0.0
        %1114 = vmatpush.msra.mxu0 0.0
        %1115 = vmatpush.msra.mxu0 0.0
        %1116 = vmatpush.msra.mxu0 %v1096
        %1117 = vmatmul.f32.gmra.mxu0 %v1099
        %v1118 = vpop.f32.mrf.mxu0
        %v1119 = vadd.f32 0.0, %v1118
        %1120 = vdwg.mxu0
        %1121 = vrot.lane.b32.xlu0 %v877, 104
        %v1122 = vpop.permute.xlu0 %1121
        %1123 = vrot.lane.b32.xlu0 %v902, 104
        %v1124 = vpop.permute.xlu0 %1123
        %v1125 = vsel %vm929, %v1122, 0
        %v1127 = vsel %vm929, %v1124, 0
        %1129 = vmatpush.xpose.msra.mxu0 0.0
        %1130 = vmatpush.xpose.msra.mxu0 0.0
        %1131 = vmatpush.xpose.msra.mxu0 0.0
        %1132 = vmatpush.xpose.msra.mxu0 0.0
        %1133 = vmatpush.xpose.msra.mxu0 0.0
        %1134 = vmatpush.xpose.msra.mxu0 0.0
        %1135 = vmatpush.xpose.msra.mxu0 0.0
        %1136 = vmatpush.xpose.msra.mxu0 0.0
        %1137 = vmatpush.xpose.msra.mxu0 0.0
        %1138 = vmatpush.xpose.msra.mxu0 0.0
        %1139 = vmatpush.xpose.msra.mxu0 0.0
        %1140 = vmatpush.xpose.msra.mxu0 0.0
        %1141 = vmatpush.xpose.msra.mxu0 0.0
        %1142 = vmatpush.xpose.msra.mxu0 0.0
        %1143 = vmatpush.xpose.msra.mxu0 0.0
        %1144 = vmatpush.xpose.msra.mxu0 %v1127
        %1145 = vmatmul.f32.gmra.mxu0 %v1125
        %v1146 = vpop.f32.mrf.mxu0
        %v1147 = vadd.f32 %v928, %v1146
        %1148 = vdwg.mxu0
        %v1149 = vsel %vm929, %v1147, -inf
        %1150 = vmax.xlane.f32.xlu0 %v1149
        %v1151 = vpop.xlane.xlu0 %1150
        %v1152 = vsub.f32 %v1147, %v1151
        %v1153 = vmul.f32 %v1152, 1.442695
        %v1154 = vpow.pop %v1153
        %v1155 = vsel %vm929, %v1154, 0.0
        %1156 = vadd.xlane.f32.xlu0 %v1155
        %v1157 = vpop.xlane.xlu0 %1156
        %v1158 = vrcp.pop %v1157
        %v1159 = vmul.f32 %v1154, %v1158
        %1160 = vrot.lane.b32.xlu0 %v925, 104
        %v1161 = vpop.permute.xlu0 %1160
        %v1164 = vsel %vm929, %v1159, 0
        %1166 = vmatpush.msra.mxu0 0.0
        %1167 = vmatpush.msra.mxu0 0.0
        %1168 = vmatpush.msra.mxu0 0.0
        %1169 = vmatpush.msra.mxu0 0.0
        %1170 = vmatpush.msra.mxu0 0.0
        %1171 = vmatpush.msra.mxu0 0.0
        %1172 = vmatpush.msra.mxu0 0.0
        %1173 = vmatpush.msra.mxu0 0.0
        %1174 = vmatpush.msra.mxu0 0.0
        %1175 = vmatpush.msra.mxu0 0.0
        %1176 = vmatpush.msra.mxu0 0.0
        %1177 = vmatpush.msra.mxu0 0.0
        %1178 = vmatpush.msra.mxu0 0.0
        %1179 = vmatpush.msra.mxu0 0.0
        %1180 = vmatpush.msra.mxu0 0.0
        %1181 = vmatpush.msra.mxu0 %v1161
        %1182 = vmatmul.f32.gmra.mxu0 %v1164
        %v1183 = vpop.f32.mrf.mxu0
        %v1184 = vadd.f32 0.0, %v1183
        %1185 = vdwg.mxu0
        %1186 = vrot.lane.b32.xlu0 %v877, 96
        %v1187 = vpop.permute.xlu0 %1186
        %1188 = vrot.lane.b32.xlu0 %v902, 96
        %v1189 = vpop.permute.xlu0 %1188
        %v1190 = vsel %vm929, %v1187, 0
        %v1192 = vsel %vm929, %v1189, 0
        %1194 = vmatpush.xpose.msra.mxu0 0.0
        %1195 = vmatpush.xpose.msra.mxu0 0.0
        %1196 = vmatpush.xpose.msra.mxu0 0.0
        %1197 = vmatpush.xpose.msra.mxu0 0.0
        %1198 = vmatpush.xpose.msra.mxu0 0.0
        %1199 = vmatpush.xpose.msra.mxu0 0.0
        %1200 = vmatpush.xpose.msra.mxu0 0.0
        %1201 = vmatpush.xpose.msra.mxu0 0.0
        %1202 = vmatpush.xpose.msra.mxu0 0.0
        %1203 = vmatpush.xpose.msra.mxu0 0.0
        %1204 = vmatpush.xpose.msra.mxu0 0.0
        %1205 = vmatpush.xpose.msra.mxu0 0.0
        %1206 = vmatpush.xpose.msra.mxu0 0.0
        %1207 = vmatpush.xpose.msra.mxu0 0.0
        %1208 = vmatpush.xpose.msra.mxu0 0.0
        %1209 = vmatpush.xpose.msra.mxu0 %v1192
        %1210 = vmatmul.f32.gmra.mxu0 %v1190
        %v1211 = vpop.f32.mrf.mxu0
        %v1212 = vadd.f32 %v928, %v1211
        %1213 = vdwg.mxu0
        %v1214 = vsel %vm929, %v1212, -inf
        %1215 = vmax.xlane.f32.xlu0 %v1214
        %v1216 = vpop.xlane.xlu0 %1215
        %v1217 = vsub.f32 %v1212, %v1216
        %v1218 = vmul.f32 %v1217, 1.442695
        %v1219 = vpow.pop %v1218
        %v1220 = vsel %vm929, %v1219, 0.0
        %1221 = vadd.xlane.f32.xlu0 %v1220
        %v1222 = vpop.xlane.xlu0 %1221
        %v1223 = vrcp.pop %v1222
        %v1224 = vmul.f32 %v1219, %v1223
        %1225 = vrot.lane.b32.xlu0 %v925, 96
        %v1226 = vpop.permute.xlu0 %1225
        %v1229 = vsel %vm929, %v1224, 0
        %1231 = vmatpush.msra.mxu0 0.0
        %1232 = vmatpush.msra.mxu0 0.0
        %1233 = vmatpush.msra.mxu0 0.0
        %1234 = vmatpush.msra.mxu0 0.0
        %1235 = vmatpush.msra.mxu0 0.0
        %1236 = vmatpush.msra.mxu0 0.0
        %1237 = vmatpush.msra.mxu0 0.0
        %1238 = vmatpush.msra.mxu0 0.0
        %1239 = vmatpush.msra.mxu0 0.0
        %1240 = vmatpush.msra.mxu0 0.0
        %1241 = vmatpush.msra.mxu0 0.0
        %1242 = vmatpush.msra.mxu0 0.0
        %1243 = vmatpush.msra.mxu0 0.0
        %1244 = vmatpush.msra.mxu0 0.0
        %1245 = vmatpush.msra.mxu0 0.0
        %1246 = vmatpush.msra.mxu0 %v1226
        %1247 = vmatmul.f32.gmra.mxu0 %v1229
        %v1248 = vpop.f32.mrf.mxu0
        %v1249 = vadd.f32 0.0, %v1248
        %1250 = vdwg.mxu0
        %1251 = vrot.lane.b32.xlu0 %v877, 88
        %v1252 = vpop.permute.xlu0 %1251
        %1253 = vrot.lane.b32.xlu0 %v902, 88
        %v1254 = vpop.permute.xlu0 %1253
        %v1255 = vsel %vm929, %v1252, 0
        %v1257 = vsel %vm929, %v1254, 0
        %1259 = vmatpush.xpose.msra.mxu0 0.0
        %1260 = vmatpush.xpose.msra.mxu0 0.0
        %1261 = vmatpush.xpose.msra.mxu0 0.0
        %1262 = vmatpush.xpose.msra.mxu0 0.0
        %1263 = vmatpush.xpose.msra.mxu0 0.0
        %1264 = vmatpush.xpose.msra.mxu0 0.0
        %1265 = vmatpush.xpose.msra.mxu0 0.0
        %1266 = vmatpush.xpose.msra.mxu0 0.0
        %1267 = vmatpush.xpose.msra.mxu0 0.0
        %1268 = vmatpush.xpose.msra.mxu0 0.0
        %1269 = vmatpush.xpose.msra.mxu0 0.0
        %1270 = vmatpush.xpose.msra.mxu0 0.0
        %1271 = vmatpush.xpose.msra.mxu0 0.0
        %1272 = vmatpush.xpose.msra.mxu0 0.0
        %1273 = vmatpush.xpose.msra.mxu0 0.0
        %1274 = vmatpush.xpose.msra.mxu0 %v1257
        %1275 = vmatmul.f32.gmra.mxu0 %v1255
        %v1276 = vpop.f32.mrf.mxu0
        %v1277 = vadd.f32 %v928, %v1276
        %1278 = vdwg.mxu0
        %v1279 = vsel %vm929, %v1277, -inf
        %1280 = vmax.xlane.f32.xlu0 %v1279
        %v1281 = vpop.xlane.xlu0 %1280
        %v1282 = vsub.f32 %v1277, %v1281
        %v1283 = vmul.f32 %v1282, 1.442695
        %v1284 = vpow.pop %v1283
        %v1285 = vsel %vm929, %v1284, 0.0
        %1286 = vadd.xlane.f32.xlu0 %v1285
        %v1287 = vpop.xlane.xlu0 %1286
        %v1288 = vrcp.pop %v1287
        %v1289 = vmul.f32 %v1284, %v1288
        %1290 = vrot.lane.b32.xlu0 %v925, 88
        %v1291 = vpop.permute.xlu0 %1290
        %v1294 = vsel %vm929, %v1289, 0
        %1296 = vmatpush.msra.mxu0 0.0
        %1297 = vmatpush.msra.mxu0 0.0
        %1298 = vmatpush.msra.mxu0 0.0
        %1299 = vmatpush.msra.mxu0 0.0
        %1300 = vmatpush.msra.mxu0 0.0
        %1301 = vmatpush.msra.mxu0 0.0
        %1302 = vmatpush.msra.mxu0 0.0
        %1303 = vmatpush.msra.mxu0 0.0
        %1304 = vmatpush.msra.mxu0 0.0
        %1305 = vmatpush.msra.mxu0 0.0
        %1306 = vmatpush.msra.mxu0 0.0
        %1307 = vmatpush.msra.mxu0 0.0
        %1308 = vmatpush.msra.mxu0 0.0
        %1309 = vmatpush.msra.mxu0 0.0
        %1310 = vmatpush.msra.mxu0 0.0
        %1311 = vmatpush.msra.mxu0 %v1291
        %1312 = vmatmul.f32.gmra.mxu0 %v1294
        %v1313 = vpop.f32.mrf.mxu0
        %v1314 = vadd.f32 0.0, %v1313
        %1315 = vdwg.mxu0
        %1316 = vrot.lane.b32.xlu0 %v877, 80
        %v1317 = vpop.permute.xlu0 %1316
        %1318 = vrot.lane.b32.xlu0 %v902, 80
        %v1319 = vpop.permute.xlu0 %1318
        %v1320 = vsel %vm929, %v1317, 0
        %v1322 = vsel %vm929, %v1319, 0
        %1324 = vmatpush.xpose.msra.mxu0 0.0
        %1325 = vmatpush.xpose.msra.mxu0 0.0
        %1326 = vmatpush.xpose.msra.mxu0 0.0
        %1327 = vmatpush.xpose.msra.mxu0 0.0
        %1328 = vmatpush.xpose.msra.mxu0 0.0
        %1329 = vmatpush.xpose.msra.mxu0 0.0
        %1330 = vmatpush.xpose.msra.mxu0 0.0
        %1331 = vmatpush.xpose.msra.mxu0 0.0
        %1332 = vmatpush.xpose.msra.mxu0 0.0
        %1333 = vmatpush.xpose.msra.mxu0 0.0
        %1334 = vmatpush.xpose.msra.mxu0 0.0
        %1335 = vmatpush.xpose.msra.mxu0 0.0
        %1336 = vmatpush.xpose.msra.mxu0 0.0
        %1337 = vmatpush.xpose.msra.mxu0 0.0
        %1338 = vmatpush.xpose.msra.mxu0 0.0
        %1339 = vmatpush.xpose.msra.mxu0 %v1322
        %1340 = vmatmul.f32.gmra.mxu0 %v1320
        %v1341 = vpop.f32.mrf.mxu0
        %v1342 = vadd.f32 %v928, %v1341
        %1343 = vdwg.mxu0
        %v1344 = vsel %vm929, %v1342, -inf
        %1345 = vmax.xlane.f32.xlu0 %v1344
        %v1346 = vpop.xlane.xlu0 %1345
        %v1347 = vsub.f32 %v1342, %v1346
        %v1348 = vmul.f32 %v1347, 1.442695
        %v1349 = vpow.pop %v1348
        %v1350 = vsel %vm929, %v1349, 0.0
        %1351 = vadd.xlane.f32.xlu0 %v1350
        %v1352 = vpop.xlane.xlu0 %1351
        %v1353 = vrcp.pop %v1352
        %v1354 = vmul.f32 %v1349, %v1353
        %1355 = vrot.lane.b32.xlu0 %v925, 80
        %v1356 = vpop.permute.xlu0 %1355
        %v1359 = vsel %vm929, %v1354, 0
        %1361 = vmatpush.msra.mxu0 0.0
        %1362 = vmatpush.msra.mxu0 0.0
        %1363 = vmatpush.msra.mxu0 0.0
        %1364 = vmatpush.msra.mxu0 0.0
        %1365 = vmatpush.msra.mxu0 0.0
        %1366 = vmatpush.msra.mxu0 0.0
        %1367 = vmatpush.msra.mxu0 0.0
        %1368 = vmatpush.msra.mxu0 0.0
        %1369 = vmatpush.msra.mxu0 0.0
        %1370 = vmatpush.msra.mxu0 0.0
        %1371 = vmatpush.msra.mxu0 0.0
        %1372 = vmatpush.msra.mxu0 0.0
        %1373 = vmatpush.msra.mxu0 0.0
        %1374 = vmatpush.msra.mxu0 0.0
        %1375 = vmatpush.msra.mxu0 0.0
        %1376 = vmatpush.msra.mxu0 %v1356
        %1377 = vmatmul.f32.gmra.mxu0 %v1359
        %v1378 = vpop.f32.mrf.mxu0
        %v1379 = vadd.f32 0.0, %v1378
        %1380 = vdwg.mxu0
        %1381 = vrot.lane.b32.xlu0 %v877, 72
        %v1382 = vpop.permute.xlu0 %1381
        %1383 = vrot.lane.b32.xlu0 %v902, 72
        %v1384 = vpop.permute.xlu0 %1383
        %v1385 = vsel %vm929, %v1382, 0
        %v1387 = vsel %vm929, %v1384, 0
        %1389 = vmatpush.xpose.msra.mxu0 0.0
        %1390 = vmatpush.xpose.msra.mxu0 0.0
        %1391 = vmatpush.xpose.msra.mxu0 0.0
        %1392 = vmatpush.xpose.msra.mxu0 0.0
        %1393 = vmatpush.xpose.msra.mxu0 0.0
        %1394 = vmatpush.xpose.msra.mxu0 0.0
        %1395 = vmatpush.xpose.msra.mxu0 0.0
        %1396 = vmatpush.xpose.msra.mxu0 0.0
        %1397 = vmatpush.xpose.msra.mxu0 0.0
        %1398 = vmatpush.xpose.msra.mxu0 0.0
        %1399 = vmatpush.xpose.msra.mxu0 0.0
        %1400 = vmatpush.xpose.msra.mxu0 0.0
        %1401 = vmatpush.xpose.msra.mxu0 0.0
        %1402 = vmatpush.xpose.msra.mxu0 0.0
        %1403 = vmatpush.xpose.msra.mxu0 0.0
        %1404 = vmatpush.xpose.msra.mxu0 %v1387
        %1405 = vmatmul.f32.gmra.mxu0 %v1385
        %v1406 = vpop.f32.mrf.mxu0
        %v1407 = vadd.f32 %v928, %v1406
        %1408 = vdwg.mxu0
        %v1409 = vsel %vm929, %v1407, -inf
        %1410 = vmax.xlane.f32.xlu0 %v1409
        %v1411 = vpop.xlane.xlu0 %1410
        %v1412 = vsub.f32 %v1407, %v1411
        %v1413 = vmul.f32 %v1412, 1.442695
        %v1414 = vpow.pop %v1413
        %v1415 = vsel %vm929, %v1414, 0.0
        %1416 = vadd.xlane.f32.xlu0 %v1415
        %v1417 = vpop.xlane.xlu0 %1416
        %v1418 = vrcp.pop %v1417
        %v1419 = vmul.f32 %v1414, %v1418
        %1420 = vrot.lane.b32.xlu0 %v925, 72
        %v1421 = vpop.permute.xlu0 %1420
        %v1424 = vsel %vm929, %v1419, 0
        %1426 = vmatpush.msra.mxu0 0.0
        %1427 = vmatpush.msra.mxu0 0.0
        %1428 = vmatpush.msra.mxu0 0.0
        %1429 = vmatpush.msra.mxu0 0.0
        %1430 = vmatpush.msra.mxu0 0.0
        %1431 = vmatpush.msra.mxu0 0.0
        %1432 = vmatpush.msra.mxu0 0.0
        %1433 = vmatpush.msra.mxu0 0.0
        %1434 = vmatpush.msra.mxu0 0.0
        %1435 = vmatpush.msra.mxu0 0.0
        %1436 = vmatpush.msra.mxu0 0.0
        %1437 = vmatpush.msra.mxu0 0.0
        %1438 = vmatpush.msra.mxu0 0.0
        %1439 = vmatpush.msra.mxu0 0.0
        %1440 = vmatpush.msra.mxu0 0.0
        %1441 = vmatpush.msra.mxu0 %v1421
        %1442 = vmatmul.f32.gmra.mxu0 %v1424
        %v1443 = vpop.f32.mrf.mxu0
        %v1444 = vadd.f32 0.0, %v1443
        %1445 = vdwg.mxu0
        %1447 = vrot.lane.b32.xlu0 %v1054, 8
        %v1448 = vpop.permute.xlu0 %1447
        %1451 = vrot.lane.b32.xlu0 %v1119, 16
        %v1452 = vpop.permute.xlu0 %1451
        %1455 = vrot.lane.b32.xlu0 %v1184, 24
        %v1456 = vpop.permute.xlu0 %1455
        %1459 = vrot.lane.b32.xlu0 %v1249, 32
        %v1460 = vpop.permute.xlu0 %1459
        %1463 = vrot.lane.b32.xlu0 %v1314, 40
        %v1464 = vpop.permute.xlu0 %1463
        %1467 = vrot.lane.b32.xlu0 %v1379, 48
        %v1468 = vpop.permute.xlu0 %1467
        %1471 = vrot.lane.b32.xlu0 %v1444, 56
        %v1472 = vpop.permute.xlu0 %1471
        %v1474 = vsel %vm929, %v988, %v1448
        %vm1475 = vcmask 130048
        %v1476 = vsel %vm1475, %v1474, %v1452
        %vm1477 = vcmask 195584
        %v1478 = vsel %vm1477, %v1476, %v1456
        %v1479 = vsel %vm853, %v1478, %v1460
        %vm1480 = vcmask 326656
        %v1481 = vsel %vm1480, %v1479, %v1464
        %vm1482 = vcmask 392192
        %v1483 = vsel %vm1482, %v1481, %v1468
        %vm1484 = vcmask 457728
        %v1485 = vsel %vm1484, %v1483, %v1472
        %v1487 = vperm.slane %v849, 0
        %vm1489 = vcmask 523264
        %v1491 = vsel %vm1489, %v1485, 0
        %1493 = vmatpush.msra.mxu0 0.0
        %1494 = vmatpush.msra.mxu0 0.0
        %1495 = vmatpush.msra.mxu0 0.0
        %1496 = vmatpush.msra.mxu0 0.0
        %1497 = vmatpush.msra.mxu0 0.0
        %1498 = vmatpush.msra.mxu0 0.0
        %1499 = vmatpush.msra.mxu0 0.0
        %1500 = vmatpush.msra.mxu0 0.0
        %1501 = vmatpush.msra.mxu0 %v848
        %1502 = vmatpush.msra.mxu0 %v847
        %1503 = vmatpush.msra.mxu0 %v846
        %1504 = vmatpush.msra.mxu0 %v845
        %1505 = vmatpush.msra.mxu0 %v844
        %1506 = vmatpush.msra.mxu0 %v843
        %1507 = vmatpush.msra.mxu0 %v842
        %1508 = vmatpush.msra.mxu0 %v841
        %1509 = vmatmul.f32.gmra.mxu0 %v1491
        %v1510 = vpop.f32.mrf.mxu0
        %v1511 = vadd.f32 %v1487, %v1510
        %1512 = vdwg.mxu0
        %v1513 = vadd.f32 %v1511, %v824
        %v1514 = vsel %vm853, %v1513, 0.0
        %1515 = vadd.xlane.f32.xlu0 %v1514
        %v1516 = vpop.xlane.xlu0 %1515
        %v1517 = vrcp.pop 32.0
        %v1518 = vmul.f32 32.0, %v1517
        %v1519 = vsub.f32 1.0, %v1518
        %v1520 = vmul.f32 %v1517, %v1519
        %v1521 = vadd.f32 %v1517, %v1520
        %vm1522 = vweird.f32 %v1517
        %v1523 = vsel %vm1522, %v1517, %v1521
        %v1524 = vmul.f32 %v1516, %v1523
        %v1525 = vsub.f32 %v1513, %v1524
        %v1526 = vmul.f32 %v1525, %v1525
        %v1527 = vsel %vm853, %v1526, 0.0
        %1528 = vadd.xlane.f32.xlu0 %v1527
        %v1529 = vpop.xlane.xlu0 %1528
        %v1530 = vmul.f32 %v1529, 0.032258064
        %v1531 = vadd.f32 %v1530, 1e-08
        %v1532 = vrsqrt.pop %v1531
        %v1533 = vmul.f32 %v1532, %v1531
        %v1534 = vmul.f32 %v1533, %v1532
        %v1535 = vmul.f32 0.5, %v1534
        %v1536 = vsub.f32 1.5, %v1535
        %v1537 = vmul.f32 %v1532, %v1536
        %vm1538 = vweird.f32 %v1531
        %vm1539 = vweird.f32 %v1532
        %vm1540 = vmor %vm1538, %vm1539
        %v1541 = vsel %vm1540, %v1532, %v1537
        %v1542 = vmul.f32 %v1525, %v1541
        %v1543 = vld [vmem:[%s819] sm:$0xff]
        %v1544 = vld [vmem:[%s12] sm:$0xff]
        %v1545 = vld [vmem:[%s12 + $0x8] sm:$0xff]
        %v1546 = vld [vmem:[%s12 + $0x10] sm:$0xff]
        %v1547 = vld [vmem:[%s12 + $0x18] sm:$0xff]
        %v1548 = vld [vmem:[%s13] sm:$0x1]
        %v1549 = vld [vmem:[%s14] sm:$0xff]
        %v1550 = vld [vmem:[%s14 + $0x8] sm:$0xff]
        %v1551 = vld [vmem:[%s14 + $0x10] sm:$0xff]
        %v1552 = vld [vmem:[%s14 + $0x18] sm:$0xff]
        %v1553 = vld [vmem:[%s15] sm:$0x1]
        %v1554 = vld [vmem:[%s16] sm:$0xff]
        %v1555 = vld [vmem:[%s16 + $0x8] sm:$0xff]
        %v1556 = vld [vmem:[%s16 + $0x10] sm:$0xff]
        %v1557 = vld [vmem:[%s16 + $0x18] sm:$0xff]
        %v1558 = vld [vmem:[%s17] sm:$0x1]
        %v1559 = vld [vmem:[%s18] sm:$0xff]
        %v1560 = vld [vmem:[%s18 + $0x8] sm:$0xff]
        %v1561 = vld [vmem:[%s18 + $0x10] sm:$0xff]
        %v1562 = vld [vmem:[%s18 + $0x18] sm:$0xff]
        %v1563 = vld [vmem:[%s18 + $0x20] sm:$0xff]
        %v1564 = vld [vmem:[%s18 + $0x28] sm:$0xff]
        %v1565 = vld [vmem:[%s18 + $0x30] sm:$0xff]
        %v1566 = vld [vmem:[%s18 + $0x38] sm:$0xff]
        %v1567 = vld [vmem:[%s19] sm:$0x1]
        %v1569 = vperm.slane %v1548, 0
        %v1572 = vsel %vm853, %v1542, 0
        %1574 = vmatpush.msra.mxu0 0.0
        %1575 = vmatpush.msra.mxu0 0.0
        %1576 = vmatpush.msra.mxu0 0.0
        %1577 = vmatpush.msra.mxu0 0.0
        %1578 = vmatpush.msra.mxu0 0.0
        %1579 = vmatpush.msra.mxu0 0.0
        %1580 = vmatpush.msra.mxu0 0.0
        %1581 = vmatpush.msra.mxu0 0.0
        %1582 = vmatpush.msra.mxu0 0.0
        %1583 = vmatpush.msra.mxu0 0.0
        %1584 = vmatpush.msra.mxu0 0.0
        %1585 = vmatpush.msra.mxu0 0.0
        %1586 = vmatpush.msra.mxu0 %v1547
        %1587 = vmatpush.msra.mxu0 %v1546
        %1588 = vmatpush.msra.mxu0 %v1545
        %1589 = vmatpush.msra.mxu0 %v1544
        %1590 = vmatmul.f32.gmra.mxu0 %v1572
        %v1591 = vpop.f32.mrf.mxu0
        %v1592 = vadd.f32 %v1569, %v1591
        %1593 = vdwg.mxu0
        %v1594 = vmul.f32 %v1592, 0.17677669
        %v1596 = vperm.slane %v1553, 0
        %v1599 = vsel %vm853, %v822, 0
        %1601 = vmatpush.msra.mxu0 0.0
        %1602 = vmatpush.msra.mxu0 0.0
        %1603 = vmatpush.msra.mxu0 0.0
        %1604 = vmatpush.msra.mxu0 0.0
        %1605 = vmatpush.msra.mxu0 0.0
        %1606 = vmatpush.msra.mxu0 0.0
        %1607 = vmatpush.msra.mxu0 0.0
        %1608 = vmatpush.msra.mxu0 0.0
        %1609 = vmatpush.msra.mxu0 0.0
        %1610 = vmatpush.msra.mxu0 0.0
        %1611 = vmatpush.msra.mxu0 0.0
        %1612 = vmatpush.msra.mxu0 0.0
        %1613 = vmatpush.msra.mxu0 %v1552
        %1614 = vmatpush.msra.mxu0 %v1551
        %1615 = vmatpush.msra.mxu0 %v1550
        %1616 = vmatpush.msra.mxu0 %v1549
        %1617 = vmatmul.f32.gmra.mxu0 %v1599
        %v1618 = vpop.f32.mrf.mxu0
        %v1619 = vadd.f32 %v1596, %v1618
        %1620 = vdwg.mxu0
        %v1622 = vperm.slane %v1558, 0
        %1624 = vmatpush.msra.mxu0 0.0
        %1625 = vmatpush.msra.mxu0 0.0
        %1626 = vmatpush.msra.mxu0 0.0
        %1627 = vmatpush.msra.mxu0 0.0
        %1628 = vmatpush.msra.mxu0 0.0
        %1629 = vmatpush.msra.mxu0 0.0
        %1630 = vmatpush.msra.mxu0 0.0
        %1631 = vmatpush.msra.mxu0 0.0
        %1632 = vmatpush.msra.mxu0 0.0
        %1633 = vmatpush.msra.mxu0 0.0
        %1634 = vmatpush.msra.mxu0 0.0
        %1635 = vmatpush.msra.mxu0 0.0
        %1636 = vmatpush.msra.mxu0 %v1557
        %1637 = vmatpush.msra.mxu0 %v1556
        %1638 = vmatpush.msra.mxu0 %v1555
        %1639 = vmatpush.msra.mxu0 %v1554
        %1640 = vmatmul.f32.gmra.mxu0 %v1599
        %v1641 = vpop.f32.mrf.mxu0
        %v1642 = vadd.f32 %v1622, %v1641
        %1643 = vdwg.mxu0
        %vm1644 = vcmp.gt.f32.partialorder %v1543, 0.5
        %v1645 = vsel %vm1644, -1e+10, 0.0
        %v1647 = vsel %vm929, %v1594, 0
        %v1650 = vsel %vm929, %v1619, 0
        %1652 = vmatpush.xpose.msra.mxu0 0.0
        %1653 = vmatpush.xpose.msra.mxu0 0.0
        %1654 = vmatpush.xpose.msra.mxu0 0.0
        %1655 = vmatpush.xpose.msra.mxu0 0.0
        %1656 = vmatpush.xpose.msra.mxu0 0.0
        %1657 = vmatpush.xpose.msra.mxu0 0.0
        %1658 = vmatpush.xpose.msra.mxu0 0.0
        %1659 = vmatpush.xpose.msra.mxu0 0.0
        %1660 = vmatpush.xpose.msra.mxu0 0.0
        %1661 = vmatpush.xpose.msra.mxu0 0.0
        %1662 = vmatpush.xpose.msra.mxu0 0.0
        %1663 = vmatpush.xpose.msra.mxu0 0.0
        %1664 = vmatpush.xpose.msra.mxu0 0.0
        %1665 = vmatpush.xpose.msra.mxu0 0.0
        %1666 = vmatpush.xpose.msra.mxu0 0.0
        %1667 = vmatpush.xpose.msra.mxu0 %v1650
        %1668 = vmatmul.f32.gmra.mxu0 %v1647
        %v1669 = vpop.f32.mrf.mxu0
        %v1670 = vadd.f32 %v1645, %v1669
        %1671 = vdwg.mxu0
        %v1672 = vsel %vm929, %v1670, -inf
        %1673 = vmax.xlane.f32.xlu0 %v1672
        %v1674 = vpop.xlane.xlu0 %1673
        %v1675 = vsub.f32 %v1670, %v1674
        %v1676 = vmul.f32 %v1675, 1.442695
        %v1677 = vpow.pop %v1676
        %v1678 = vsel %vm929, %v1677, 0.0
        %1679 = vadd.xlane.f32.xlu0 %v1678
        %v1680 = vpop.xlane.xlu0 %1679
        %v1681 = vrcp.pop %v1680
        %v1682 = vmul.f32 %v1677, %v1681
        %v1684 = vsel %vm929, %v1682, 0
        %1686 = vmatpush.msra.mxu0 0.0
        %1687 = vmatpush.msra.mxu0 0.0
        %1688 = vmatpush.msra.mxu0 0.0
        %1689 = vmatpush.msra.mxu0 0.0
        %1690 = vmatpush.msra.mxu0 0.0
        %1691 = vmatpush.msra.mxu0 0.0
        %1692 = vmatpush.msra.mxu0 0.0
        %1693 = vmatpush.msra.mxu0 0.0
        %1694 = vmatpush.msra.mxu0 0.0
        %1695 = vmatpush.msra.mxu0 0.0
        %1696 = vmatpush.msra.mxu0 0.0
        %1697 = vmatpush.msra.mxu0 0.0
        %1698 = vmatpush.msra.mxu0 0.0
        %1699 = vmatpush.msra.mxu0 0.0
        %1700 = vmatpush.msra.mxu0 0.0
        %1701 = vmatpush.msra.mxu0 %v1642
        %1702 = vmatmul.f32.gmra.mxu0 %v1684
        %v1703 = vpop.f32.mrf.mxu0
        %v1704 = vadd.f32 0.0, %v1703
        %1705 = vdwg.mxu0
        %1706 = vrot.lane.b32.xlu0 %v1594, 120
        %v1707 = vpop.permute.xlu0 %1706
        %1708 = vrot.lane.b32.xlu0 %v1619, 120
        %v1709 = vpop.permute.xlu0 %1708
        %v1710 = vsel %vm929, %v1707, 0
        %v1712 = vsel %vm929, %v1709, 0
        %1714 = vmatpush.xpose.msra.mxu0 0.0
        %1715 = vmatpush.xpose.msra.mxu0 0.0
        %1716 = vmatpush.xpose.msra.mxu0 0.0
        %1717 = vmatpush.xpose.msra.mxu0 0.0
        %1718 = vmatpush.xpose.msra.mxu0 0.0
        %1719 = vmatpush.xpose.msra.mxu0 0.0
        %1720 = vmatpush.xpose.msra.mxu0 0.0
        %1721 = vmatpush.xpose.msra.mxu0 0.0
        %1722 = vmatpush.xpose.msra.mxu0 0.0
        %1723 = vmatpush.xpose.msra.mxu0 0.0
        %1724 = vmatpush.xpose.msra.mxu0 0.0
        %1725 = vmatpush.xpose.msra.mxu0 0.0
        %1726 = vmatpush.xpose.msra.mxu0 0.0
        %1727 = vmatpush.xpose.msra.mxu0 0.0
        %1728 = vmatpush.xpose.msra.mxu0 0.0
        %1729 = vmatpush.xpose.msra.mxu0 %v1712
        %1730 = vmatmul.f32.gmra.mxu0 %v1710
        %v1731 = vpop.f32.mrf.mxu0
        %v1732 = vadd.f32 %v1645, %v1731
        %1733 = vdwg.mxu0
        %v1734 = vsel %vm929, %v1732, -inf
        %1735 = vmax.xlane.f32.xlu0 %v1734
        %v1736 = vpop.xlane.xlu0 %1735
        %v1737 = vsub.f32 %v1732, %v1736
        %v1738 = vmul.f32 %v1737, 1.442695
        %v1739 = vpow.pop %v1738
        %v1740 = vsel %vm929, %v1739, 0.0
        %1741 = vadd.xlane.f32.xlu0 %v1740
        %v1742 = vpop.xlane.xlu0 %1741
        %v1743 = vrcp.pop %v1742
        %v1744 = vmul.f32 %v1739, %v1743
        %1746 = vrot.lane.b32.xlu0 %v1642, 120
        %v1747 = vpop.permute.xlu0 %1746
        %v1750 = vsel %vm929, %v1744, 0
        %1752 = vmatpush.msra.mxu0 0.0
        %1753 = vmatpush.msra.mxu0 0.0
        %1754 = vmatpush.msra.mxu0 0.0
        %1755 = vmatpush.msra.mxu0 0.0
        %1756 = vmatpush.msra.mxu0 0.0
        %1757 = vmatpush.msra.mxu0 0.0
        %1758 = vmatpush.msra.mxu0 0.0
        %1759 = vmatpush.msra.mxu0 0.0
        %1760 = vmatpush.msra.mxu0 0.0
        %1761 = vmatpush.msra.mxu0 0.0
        %1762 = vmatpush.msra.mxu0 0.0
        %1763 = vmatpush.msra.mxu0 0.0
        %1764 = vmatpush.msra.mxu0 0.0
        %1765 = vmatpush.msra.mxu0 0.0
        %1766 = vmatpush.msra.mxu0 0.0
        %1767 = vmatpush.msra.mxu0 %v1747
        %1768 = vmatmul.f32.gmra.mxu0 %v1750
        %v1769 = vpop.f32.mrf.mxu0
        %v1770 = vadd.f32 0.0, %v1769
        %1771 = vdwg.mxu0
        %1772 = vrot.lane.b32.xlu0 %v1594, 112
        %v1773 = vpop.permute.xlu0 %1772
        %1774 = vrot.lane.b32.xlu0 %v1619, 112
        %v1775 = vpop.permute.xlu0 %1774
        %v1776 = vsel %vm929, %v1773, 0
        %v1778 = vsel %vm929, %v1775, 0
        %1780 = vmatpush.xpose.msra.mxu0 0.0
        %1781 = vmatpush.xpose.msra.mxu0 0.0
        %1782 = vmatpush.xpose.msra.mxu0 0.0
        %1783 = vmatpush.xpose.msra.mxu0 0.0
        %1784 = vmatpush.xpose.msra.mxu0 0.0
        %1785 = vmatpush.xpose.msra.mxu0 0.0
        %1786 = vmatpush.xpose.msra.mxu0 0.0
        %1787 = vmatpush.xpose.msra.mxu0 0.0
        %1788 = vmatpush.xpose.msra.mxu0 0.0
        %1789 = vmatpush.xpose.msra.mxu0 0.0
        %1790 = vmatpush.xpose.msra.mxu0 0.0
        %1791 = vmatpush.xpose.msra.mxu0 0.0
        %1792 = vmatpush.xpose.msra.mxu0 0.0
        %1793 = vmatpush.xpose.msra.mxu0 0.0
        %1794 = vmatpush.xpose.msra.mxu0 0.0
        %1795 = vmatpush.xpose.msra.mxu0 %v1778
        %1796 = vmatmul.f32.gmra.mxu0 %v1776
        %v1797 = vpop.f32.mrf.mxu0
        %v1798 = vadd.f32 %v1645, %v1797
        %1799 = vdwg.mxu0
        %v1800 = vsel %vm929, %v1798, -inf
        %1801 = vmax.xlane.f32.xlu0 %v1800
        %v1802 = vpop.xlane.xlu0 %1801
        %v1803 = vsub.f32 %v1798, %v1802
        %v1804 = vmul.f32 %v1803, 1.442695
        %v1805 = vpow.pop %v1804
        %v1806 = vsel %vm929, %v1805, 0.0
        %1807 = vadd.xlane.f32.xlu0 %v1806
        %v1808 = vpop.xlane.xlu0 %1807
        %v1809 = vrcp.pop %v1808
        %v1810 = vmul.f32 %v1805, %v1809
        %1811 = vrot.lane.b32.xlu0 %v1642, 112
        %v1812 = vpop.permute.xlu0 %1811
        %v1815 = vsel %vm929, %v1810, 0
        %1817 = vmatpush.msra.mxu0 0.0
        %1818 = vmatpush.msra.mxu0 0.0
        %1819 = vmatpush.msra.mxu0 0.0
        %1820 = vmatpush.msra.mxu0 0.0
        %1821 = vmatpush.msra.mxu0 0.0
        %1822 = vmatpush.msra.mxu0 0.0
        %1823 = vmatpush.msra.mxu0 0.0
        %1824 = vmatpush.msra.mxu0 0.0
        %1825 = vmatpush.msra.mxu0 0.0
        %1826 = vmatpush.msra.mxu0 0.0
        %1827 = vmatpush.msra.mxu0 0.0
        %1828 = vmatpush.msra.mxu0 0.0
        %1829 = vmatpush.msra.mxu0 0.0
        %1830 = vmatpush.msra.mxu0 0.0
        %1831 = vmatpush.msra.mxu0 0.0
        %1832 = vmatpush.msra.mxu0 %v1812
        %1833 = vmatmul.f32.gmra.mxu0 %v1815
        %v1834 = vpop.f32.mrf.mxu0
        %v1835 = vadd.f32 0.0, %v1834
        %1836 = vdwg.mxu0
        %1837 = vrot.lane.b32.xlu0 %v1594, 104
        %v1838 = vpop.permute.xlu0 %1837
        %1839 = vrot.lane.b32.xlu0 %v1619, 104
        %v1840 = vpop.permute.xlu0 %1839
        %v1841 = vsel %vm929, %v1838, 0
        %v1843 = vsel %vm929, %v1840, 0
        %1845 = vmatpush.xpose.msra.mxu0 0.0
        %1846 = vmatpush.xpose.msra.mxu0 0.0
        %1847 = vmatpush.xpose.msra.mxu0 0.0
        %1848 = vmatpush.xpose.msra.mxu0 0.0
        %1849 = vmatpush.xpose.msra.mxu0 0.0
        %1850 = vmatpush.xpose.msra.mxu0 0.0
        %1851 = vmatpush.xpose.msra.mxu0 0.0
        %1852 = vmatpush.xpose.msra.mxu0 0.0
        %1853 = vmatpush.xpose.msra.mxu0 0.0
        %1854 = vmatpush.xpose.msra.mxu0 0.0
        %1855 = vmatpush.xpose.msra.mxu0 0.0
        %1856 = vmatpush.xpose.msra.mxu0 0.0
        %1857 = vmatpush.xpose.msra.mxu0 0.0
        %1858 = vmatpush.xpose.msra.mxu0 0.0
        %1859 = vmatpush.xpose.msra.mxu0 0.0
        %1860 = vmatpush.xpose.msra.mxu0 %v1843
        %1861 = vmatmul.f32.gmra.mxu0 %v1841
        %v1862 = vpop.f32.mrf.mxu0
        %v1863 = vadd.f32 %v1645, %v1862
        %1864 = vdwg.mxu0
        %v1865 = vsel %vm929, %v1863, -inf
        %1866 = vmax.xlane.f32.xlu0 %v1865
        %v1867 = vpop.xlane.xlu0 %1866
        %v1868 = vsub.f32 %v1863, %v1867
        %v1869 = vmul.f32 %v1868, 1.442695
        %v1870 = vpow.pop %v1869
        %v1871 = vsel %vm929, %v1870, 0.0
        %1872 = vadd.xlane.f32.xlu0 %v1871
        %v1873 = vpop.xlane.xlu0 %1872
        %v1874 = vrcp.pop %v1873
        %v1875 = vmul.f32 %v1870, %v1874
        %1876 = vrot.lane.b32.xlu0 %v1642, 104
        %v1877 = vpop.permute.xlu0 %1876
        %v1880 = vsel %vm929, %v1875, 0
        %1882 = vmatpush.msra.mxu0 0.0
        %1883 = vmatpush.msra.mxu0 0.0
        %1884 = vmatpush.msra.mxu0 0.0
        %1885 = vmatpush.msra.mxu0 0.0
        %1886 = vmatpush.msra.mxu0 0.0
        %1887 = vmatpush.msra.mxu0 0.0
        %1888 = vmatpush.msra.mxu0 0.0
        %1889 = vmatpush.msra.mxu0 0.0
        %1890 = vmatpush.msra.mxu0 0.0
        %1891 = vmatpush.msra.mxu0 0.0
        %1892 = vmatpush.msra.mxu0 0.0
        %1893 = vmatpush.msra.mxu0 0.0
        %1894 = vmatpush.msra.mxu0 0.0
        %1895 = vmatpush.msra.mxu0 0.0
        %1896 = vmatpush.msra.mxu0 0.0
        %1897 = vmatpush.msra.mxu0 %v1877
        %1898 = vmatmul.f32.gmra.mxu0 %v1880
        %v1899 = vpop.f32.mrf.mxu0
        %v1900 = vadd.f32 0.0, %v1899
        %1901 = vdwg.mxu0
        %1902 = vrot.lane.b32.xlu0 %v1594, 96
        %v1903 = vpop.permute.xlu0 %1902
        %1904 = vrot.lane.b32.xlu0 %v1619, 96
        %v1905 = vpop.permute.xlu0 %1904
        %v1906 = vsel %vm929, %v1903, 0
        %v1908 = vsel %vm929, %v1905, 0
        %1910 = vmatpush.xpose.msra.mxu0 0.0
        %1911 = vmatpush.xpose.msra.mxu0 0.0
        %1912 = vmatpush.xpose.msra.mxu0 0.0
        %1913 = vmatpush.xpose.msra.mxu0 0.0
        %1914 = vmatpush.xpose.msra.mxu0 0.0
        %1915 = vmatpush.xpose.msra.mxu0 0.0
        %1916 = vmatpush.xpose.msra.mxu0 0.0
        %1917 = vmatpush.xpose.msra.mxu0 0.0
        %1918 = vmatpush.xpose.msra.mxu0 0.0
        %1919 = vmatpush.xpose.msra.mxu0 0.0
        %1920 = vmatpush.xpose.msra.mxu0 0.0
        %1921 = vmatpush.xpose.msra.mxu0 0.0
        %1922 = vmatpush.xpose.msra.mxu0 0.0
        %1923 = vmatpush.xpose.msra.mxu0 0.0
        %1924 = vmatpush.xpose.msra.mxu0 0.0
        %1925 = vmatpush.xpose.msra.mxu0 %v1908
        %1926 = vmatmul.f32.gmra.mxu0 %v1906
        %v1927 = vpop.f32.mrf.mxu0
        %v1928 = vadd.f32 %v1645, %v1927
        %1929 = vdwg.mxu0
        %v1930 = vsel %vm929, %v1928, -inf
        %1931 = vmax.xlane.f32.xlu0 %v1930
        %v1932 = vpop.xlane.xlu0 %1931
        %v1933 = vsub.f32 %v1928, %v1932
        %v1934 = vmul.f32 %v1933, 1.442695
        %v1935 = vpow.pop %v1934
        %v1936 = vsel %vm929, %v1935, 0.0
        %1937 = vadd.xlane.f32.xlu0 %v1936
        %v1938 = vpop.xlane.xlu0 %1937
        %v1939 = vrcp.pop %v1938
        %v1940 = vmul.f32 %v1935, %v1939
        %1941 = vrot.lane.b32.xlu0 %v1642, 96
        %v1942 = vpop.permute.xlu0 %1941
        %v1945 = vsel %vm929, %v1940, 0
        %1947 = vmatpush.msra.mxu0 0.0
        %1948 = vmatpush.msra.mxu0 0.0
        %1949 = vmatpush.msra.mxu0 0.0
        %1950 = vmatpush.msra.mxu0 0.0
        %1951 = vmatpush.msra.mxu0 0.0
        %1952 = vmatpush.msra.mxu0 0.0
        %1953 = vmatpush.msra.mxu0 0.0
        %1954 = vmatpush.msra.mxu0 0.0
        %1955 = vmatpush.msra.mxu0 0.0
        %1956 = vmatpush.msra.mxu0 0.0
        %1957 = vmatpush.msra.mxu0 0.0
        %1958 = vmatpush.msra.mxu0 0.0
        %1959 = vmatpush.msra.mxu0 0.0
        %1960 = vmatpush.msra.mxu0 0.0
        %1961 = vmatpush.msra.mxu0 0.0
        %1962 = vmatpush.msra.mxu0 %v1942
        %1963 = vmatmul.f32.gmra.mxu0 %v1945
        %v1964 = vpop.f32.mrf.mxu0
        %v1965 = vadd.f32 0.0, %v1964
        %1966 = vdwg.mxu0
        %1967 = vrot.lane.b32.xlu0 %v1594, 88
        %v1968 = vpop.permute.xlu0 %1967
        %1969 = vrot.lane.b32.xlu0 %v1619, 88
        %v1970 = vpop.permute.xlu0 %1969
        %v1971 = vsel %vm929, %v1968, 0
        %v1973 = vsel %vm929, %v1970, 0
        %1975 = vmatpush.xpose.msra.mxu0 0.0
        %1976 = vmatpush.xpose.msra.mxu0 0.0
        %1977 = vmatpush.xpose.msra.mxu0 0.0
        %1978 = vmatpush.xpose.msra.mxu0 0.0
        %1979 = vmatpush.xpose.msra.mxu0 0.0
        %1980 = vmatpush.xpose.msra.mxu0 0.0
        %1981 = vmatpush.xpose.msra.mxu0 0.0
        %1982 = vmatpush.xpose.msra.mxu0 0.0
        %1983 = vmatpush.xpose.msra.mxu0 0.0
        %1984 = vmatpush.xpose.msra.mxu0 0.0
        %1985 = vmatpush.xpose.msra.mxu0 0.0
        %1986 = vmatpush.xpose.msra.mxu0 0.0
        %1987 = vmatpush.xpose.msra.mxu0 0.0
        %1988 = vmatpush.xpose.msra.mxu0 0.0
        %1989 = vmatpush.xpose.msra.mxu0 0.0
        %1990 = vmatpush.xpose.msra.mxu0 %v1973
        %1991 = vmatmul.f32.gmra.mxu0 %v1971
        %v1992 = vpop.f32.mrf.mxu0
        %v1993 = vadd.f32 %v1645, %v1992
        %1994 = vdwg.mxu0
        %v1995 = vsel %vm929, %v1993, -inf
        %1996 = vmax.xlane.f32.xlu0 %v1995
        %v1997 = vpop.xlane.xlu0 %1996
        %v1998 = vsub.f32 %v1993, %v1997
        %v1999 = vmul.f32 %v1998, 1.442695
        %v2000 = vpow.pop %v1999
        %v2001 = vsel %vm929, %v2000, 0.0
        %2002 = vadd.xlane.f32.xlu0 %v2001
        %v2003 = vpop.xlane.xlu0 %2002
        %v2004 = vrcp.pop %v2003
        %v2005 = vmul.f32 %v2000, %v2004
        %2006 = vrot.lane.b32.xlu0 %v1642, 88
        %v2007 = vpop.permute.xlu0 %2006
        %v2010 = vsel %vm929, %v2005, 0
        %2012 = vmatpush.msra.mxu0 0.0
        %2013 = vmatpush.msra.mxu0 0.0
        %2014 = vmatpush.msra.mxu0 0.0
        %2015 = vmatpush.msra.mxu0 0.0
        %2016 = vmatpush.msra.mxu0 0.0
        %2017 = vmatpush.msra.mxu0 0.0
        %2018 = vmatpush.msra.mxu0 0.0
        %2019 = vmatpush.msra.mxu0 0.0
        %2020 = vmatpush.msra.mxu0 0.0
        %2021 = vmatpush.msra.mxu0 0.0
        %2022 = vmatpush.msra.mxu0 0.0
        %2023 = vmatpush.msra.mxu0 0.0
        %2024 = vmatpush.msra.mxu0 0.0
        %2025 = vmatpush.msra.mxu0 0.0
        %2026 = vmatpush.msra.mxu0 0.0
        %2027 = vmatpush.msra.mxu0 %v2007
        %2028 = vmatmul.f32.gmra.mxu0 %v2010
        %v2029 = vpop.f32.mrf.mxu0
        %v2030 = vadd.f32 0.0, %v2029
        %2031 = vdwg.mxu0
        %2032 = vrot.lane.b32.xlu0 %v1594, 80
        %v2033 = vpop.permute.xlu0 %2032
        %2034 = vrot.lane.b32.xlu0 %v1619, 80
        %v2035 = vpop.permute.xlu0 %2034
        %v2036 = vsel %vm929, %v2033, 0
        %v2038 = vsel %vm929, %v2035, 0
        %2040 = vmatpush.xpose.msra.mxu0 0.0
        %2041 = vmatpush.xpose.msra.mxu0 0.0
        %2042 = vmatpush.xpose.msra.mxu0 0.0
        %2043 = vmatpush.xpose.msra.mxu0 0.0
        %2044 = vmatpush.xpose.msra.mxu0 0.0
        %2045 = vmatpush.xpose.msra.mxu0 0.0
        %2046 = vmatpush.xpose.msra.mxu0 0.0
        %2047 = vmatpush.xpose.msra.mxu0 0.0
        %2048 = vmatpush.xpose.msra.mxu0 0.0
        %2049 = vmatpush.xpose.msra.mxu0 0.0
        %2050 = vmatpush.xpose.msra.mxu0 0.0
        %2051 = vmatpush.xpose.msra.mxu0 0.0
        %2052 = vmatpush.xpose.msra.mxu0 0.0
        %2053 = vmatpush.xpose.msra.mxu0 0.0
        %2054 = vmatpush.xpose.msra.mxu0 0.0
        %2055 = vmatpush.xpose.msra.mxu0 %v2038
        %2056 = vmatmul.f32.gmra.mxu0 %v2036
        %v2057 = vpop.f32.mrf.mxu0
        %v2058 = vadd.f32 %v1645, %v2057
        %2059 = vdwg.mxu0
        %v2060 = vsel %vm929, %v2058, -inf
        %2061 = vmax.xlane.f32.xlu0 %v2060
        %v2062 = vpop.xlane.xlu0 %2061
        %v2063 = vsub.f32 %v2058, %v2062
        %v2064 = vmul.f32 %v2063, 1.442695
        %v2065 = vpow.pop %v2064
        %v2066 = vsel %vm929, %v2065, 0.0
        %2067 = vadd.xlane.f32.xlu0 %v2066
        %v2068 = vpop.xlane.xlu0 %2067
        %v2069 = vrcp.pop %v2068
        %v2070 = vmul.f32 %v2065, %v2069
        %2071 = vrot.lane.b32.xlu0 %v1642, 80
        %v2072 = vpop.permute.xlu0 %2071
        %v2075 = vsel %vm929, %v2070, 0
        %2077 = vmatpush.msra.mxu0 0.0
        %2078 = vmatpush.msra.mxu0 0.0
        %2079 = vmatpush.msra.mxu0 0.0
        %2080 = vmatpush.msra.mxu0 0.0
        %2081 = vmatpush.msra.mxu0 0.0
        %2082 = vmatpush.msra.mxu0 0.0
        %2083 = vmatpush.msra.mxu0 0.0
        %2084 = vmatpush.msra.mxu0 0.0
        %2085 = vmatpush.msra.mxu0 0.0
        %2086 = vmatpush.msra.mxu0 0.0
        %2087 = vmatpush.msra.mxu0 0.0
        %2088 = vmatpush.msra.mxu0 0.0
        %2089 = vmatpush.msra.mxu0 0.0
        %2090 = vmatpush.msra.mxu0 0.0
        %2091 = vmatpush.msra.mxu0 0.0
        %2092 = vmatpush.msra.mxu0 %v2072
        %2093 = vmatmul.f32.gmra.mxu0 %v2075
        %v2094 = vpop.f32.mrf.mxu0
        %v2095 = vadd.f32 0.0, %v2094
        %2096 = vdwg.mxu0
        %2097 = vrot.lane.b32.xlu0 %v1594, 72
        %v2098 = vpop.permute.xlu0 %2097
        %2099 = vrot.lane.b32.xlu0 %v1619, 72
        %v2100 = vpop.permute.xlu0 %2099
        %v2101 = vsel %vm929, %v2098, 0
        %v2103 = vsel %vm929, %v2100, 0
        %2105 = vmatpush.xpose.msra.mxu0 0.0
        %2106 = vmatpush.xpose.msra.mxu0 0.0
        %2107 = vmatpush.xpose.msra.mxu0 0.0
        %2108 = vmatpush.xpose.msra.mxu0 0.0
        %2109 = vmatpush.xpose.msra.mxu0 0.0
        %2110 = vmatpush.xpose.msra.mxu0 0.0
        %2111 = vmatpush.xpose.msra.mxu0 0.0
        %2112 = vmatpush.xpose.msra.mxu0 0.0
        %2113 = vmatpush.xpose.msra.mxu0 0.0
        %2114 = vmatpush.xpose.msra.mxu0 0.0
        %2115 = vmatpush.xpose.msra.mxu0 0.0
        %2116 = vmatpush.xpose.msra.mxu0 0.0
        %2117 = vmatpush.xpose.msra.mxu0 0.0
        %2118 = vmatpush.xpose.msra.mxu0 0.0
        %2119 = vmatpush.xpose.msra.mxu0 0.0
        %2120 = vmatpush.xpose.msra.mxu0 %v2103
        %2121 = vmatmul.f32.gmra.mxu0 %v2101
        %v2122 = vpop.f32.mrf.mxu0
        %v2123 = vadd.f32 %v1645, %v2122
        %2124 = vdwg.mxu0
        %v2125 = vsel %vm929, %v2123, -inf
        %2126 = vmax.xlane.f32.xlu0 %v2125
        %v2127 = vpop.xlane.xlu0 %2126
        %v2128 = vsub.f32 %v2123, %v2127
        %v2129 = vmul.f32 %v2128, 1.442695
        %v2130 = vpow.pop %v2129
        %v2131 = vsel %vm929, %v2130, 0.0
        %2132 = vadd.xlane.f32.xlu0 %v2131
        %v2133 = vpop.xlane.xlu0 %2132
        %v2134 = vrcp.pop %v2133
        %v2135 = vmul.f32 %v2130, %v2134
        %2136 = vrot.lane.b32.xlu0 %v1642, 72
        %v2137 = vpop.permute.xlu0 %2136
        %v2140 = vsel %vm929, %v2135, 0
        %2142 = vmatpush.msra.mxu0 0.0
        %2143 = vmatpush.msra.mxu0 0.0
        %2144 = vmatpush.msra.mxu0 0.0
        %2145 = vmatpush.msra.mxu0 0.0
        %2146 = vmatpush.msra.mxu0 0.0
        %2147 = vmatpush.msra.mxu0 0.0
        %2148 = vmatpush.msra.mxu0 0.0
        %2149 = vmatpush.msra.mxu0 0.0
        %2150 = vmatpush.msra.mxu0 0.0
        %2151 = vmatpush.msra.mxu0 0.0
        %2152 = vmatpush.msra.mxu0 0.0
        %2153 = vmatpush.msra.mxu0 0.0
        %2154 = vmatpush.msra.mxu0 0.0
        %2155 = vmatpush.msra.mxu0 0.0
        %2156 = vmatpush.msra.mxu0 0.0
        %2157 = vmatpush.msra.mxu0 %v2137
        %2158 = vmatmul.f32.gmra.mxu0 %v2140
        %v2159 = vpop.f32.mrf.mxu0
        %v2160 = vadd.f32 0.0, %v2159
        %2161 = vdwg.mxu0
        %2163 = vrot.lane.b32.xlu0 %v1770, 8
        %v2164 = vpop.permute.xlu0 %2163
        %2167 = vrot.lane.b32.xlu0 %v1835, 16
        %v2168 = vpop.permute.xlu0 %2167
        %2171 = vrot.lane.b32.xlu0 %v1900, 24
        %v2172 = vpop.permute.xlu0 %2171
        %2175 = vrot.lane.b32.xlu0 %v1965, 32
        %v2176 = vpop.permute.xlu0 %2175
        %2179 = vrot.lane.b32.xlu0 %v2030, 40
        %v2180 = vpop.permute.xlu0 %2179
        %2183 = vrot.lane.b32.xlu0 %v2095, 48
        %v2184 = vpop.permute.xlu0 %2183
        %2187 = vrot.lane.b32.xlu0 %v2160, 56
        %v2188 = vpop.permute.xlu0 %2187
        %v2190 = vsel %vm929, %v1704, %v2164
        %v2191 = vsel %vm1475, %v2190, %v2168
        %v2192 = vsel %vm1477, %v2191, %v2172
        %v2193 = vsel %vm853, %v2192, %v2176
        %v2194 = vsel %vm1480, %v2193, %v2180
        %v2195 = vsel %vm1482, %v2194, %v2184
        %v2196 = vsel %vm1484, %v2195, %v2188
        %v2198 = vperm.slane %v1567, 0
        %v2201 = vsel %vm1489, %v2196, 0
        %2203 = vmatpush.msra.mxu0 0.0
        %2204 = vmatpush.msra.mxu0 0.0
        %2205 = vmatpush.msra.mxu0 0.0
        %2206 = vmatpush.msra.mxu0 0.0
        %2207 = vmatpush.msra.mxu0 0.0
        %2208 = vmatpush.msra.mxu0 0.0
        %2209 = vmatpush.msra.mxu0 0.0
        %2210 = vmatpush.msra.mxu0 0.0
        %2211 = vmatpush.msra.mxu0 %v1566
        %2212 = vmatpush.msra.mxu0 %v1565
        %2213 = vmatpush.msra.mxu0 %v1564
        %2214 = vmatpush.msra.mxu0 %v1563
        %2215 = vmatpush.msra.mxu0 %v1562
        %2216 = vmatpush.msra.mxu0 %v1561
        %2217 = vmatpush.msra.mxu0 %v1560
        %2218 = vmatpush.msra.mxu0 %v1559
        %2219 = vmatmul.f32.gmra.mxu0 %v2201
        %v2220 = vpop.f32.mrf.mxu0
        %v2221 = vadd.f32 %v2198, %v2220
        %2222 = vdwg.mxu0
        %v2223 = vadd.f32 %v2221, %v1542
        %v2224 = vsel %vm853, %v2223, 0.0
        %2225 = vadd.xlane.f32.xlu0 %v2224
        %v2226 = vpop.xlane.xlu0 %2225
        %v2227 = vmul.f32 %v2226, %v1523
        %v2228 = vsub.f32 %v2223, %v2227
        %v2229 = vmul.f32 %v2228, %v2228
        %v2230 = vsel %vm853, %v2229, 0.0
        %2231 = vadd.xlane.f32.xlu0 %v2230
        %v2232 = vpop.xlane.xlu0 %2231
        %v2233 = vmul.f32 %v2232, 0.032258064
        %v2234 = vadd.f32 %v2233, 1e-08
        %v2235 = vrsqrt.pop %v2234
        %v2236 = vmul.f32 %v2235, %v2234
        %v2237 = vmul.f32 %v2236, %v2235
        %v2238 = vmul.f32 0.5, %v2237
        %v2239 = vsub.f32 1.5, %v2238
        %v2240 = vmul.f32 %v2235, %v2239
        %vm2241 = vweird.f32 %v2234
        %vm2242 = vweird.f32 %v2235
        %vm2243 = vmor %vm2241, %vm2242
        %v2244 = vsel %vm2243, %v2235, %v2240
        %v2245 = vmul.f32 %v2228, %v2244
        %v2246 = vld [vmem:[%s20] sm:$0xff]
        %v2247 = vld [vmem:[%s20 + $0x8] sm:$0xff]
        %v2248 = vld [vmem:[%s20 + $0x10] sm:$0xff]
        %v2249 = vld [vmem:[%s20 + $0x18] sm:$0xff]
        %v2250 = vld [vmem:[%s21] sm:$0x1]
        %v2252 = vperm.slane %v2250, 0
        %v2255 = vsel %vm853, %v2245, 0
        %2257 = vmatpush.msra.mxu0 0.0
        %2258 = vmatpush.msra.mxu0 0.0
        %2259 = vmatpush.msra.mxu0 0.0
        %2260 = vmatpush.msra.mxu0 0.0
        %2261 = vmatpush.msra.mxu0 0.0
        %2262 = vmatpush.msra.mxu0 0.0
        %2263 = vmatpush.msra.mxu0 0.0
        %2264 = vmatpush.msra.mxu0 0.0
        %2265 = vmatpush.msra.mxu0 0.0
        %2266 = vmatpush.msra.mxu0 0.0
        %2267 = vmatpush.msra.mxu0 0.0
        %2268 = vmatpush.msra.mxu0 0.0
        %2269 = vmatpush.msra.mxu0 %v2249
        %2270 = vmatpush.msra.mxu0 %v2248
        %2271 = vmatpush.msra.mxu0 %v2247
        %2272 = vmatpush.msra.mxu0 %v2246
        %2273 = vmatmul.f32.gmra.mxu0 %v2255
        %v2274 = vpop.f32.mrf.mxu0
        %v2275 = vadd.f32 %v2252, %v2274
        %2276 = vdwg.mxu0
        %v2277 = vmax.f32 %v2275, 0.0
        %v2278 = vld [vmem:[%s22] sm:$0xff]
        %v2279 = vld [vmem:[%s22 + $0x8] sm:$0xff]
        %v2280 = vld [vmem:[%s22 + $0x10] sm:$0xff]
        %v2281 = vld [vmem:[%s22 + $0x18] sm:$0xff]
        %v2282 = vld [vmem:[%s22 + $0x20] sm:$0xff]
        %v2283 = vld [vmem:[%s22 + $0x28] sm:$0xff]
        %v2284 = vld [vmem:[%s22 + $0x30] sm:$0xff]
        %v2285 = vld [vmem:[%s22 + $0x38] sm:$0xff]
        %v2286 = vld [vmem:[%s22 + $0x40] sm:$0xff]
        %v2287 = vld [vmem:[%s22 + $0x48] sm:$0xff]
        %v2288 = vld [vmem:[%s22 + $0x50] sm:$0xff]
        %v2289 = vld [vmem:[%s22 + $0x58] sm:$0xff]
        %v2290 = vld [vmem:[%s22 + $0x60] sm:$0xff]
        %v2291 = vld [vmem:[%s22 + $0x68] sm:$0xff]
        %v2292 = vld [vmem:[%s22 + $0x70] sm:$0xff]
        %v2293 = vld [vmem:[%s22 + $0x78] sm:$0xff]
        %v2294 = vld [vmem:[%s23] sm:$0x1]
        %v2296 = vperm.slane %v2294, 0
        %2298 = vmatpush.msra.mxu0 %v2293
        %2299 = vmatpush.msra.mxu0 %v2292
        %2300 = vmatpush.msra.mxu0 %v2291
        %2301 = vmatpush.msra.mxu0 %v2290
        %2302 = vmatpush.msra.mxu0 %v2289
        %2303 = vmatpush.msra.mxu0 %v2288
        %2304 = vmatpush.msra.mxu0 %v2287
        %2305 = vmatpush.msra.mxu0 %v2286
        %2306 = vmatpush.msra.mxu0 %v2285
        %2307 = vmatpush.msra.mxu0 %v2284
        %2308 = vmatpush.msra.mxu0 %v2283
        %2309 = vmatpush.msra.mxu0 %v2282
        %2310 = vmatpush.msra.mxu0 %v2281
        %2311 = vmatpush.msra.mxu0 %v2280
        %2312 = vmatpush.msra.mxu0 %v2279
        %2313 = vmatpush.msra.mxu0 %v2278
        %2314 = vmatmul.f32.gmra.mxu0 %v2277
        %v2315 = vpop.f32.mrf.mxu0
        %v2316 = vadd.f32 %v2296, %v2315
        %2317 = vdwg.mxu0
        %v2318 = vadd.f32 %v2316, %v2245
        %v2319 = vsel %vm853, %v2318, 0.0
        %2320 = vadd.xlane.f32.xlu0 %v2319
        %v2321 = vpop.xlane.xlu0 %2320
        %v2322 = vmul.f32 %v2321, %v1523
        %v2323 = vsub.f32 %v2318, %v2322
        %v2324 = vmul.f32 %v2323, %v2323
        %v2325 = vsel %vm853, %v2324, 0.0
        %2326 = vadd.xlane.f32.xlu0 %v2325
        %v2327 = vpop.xlane.xlu0 %2326
        %v2328 = vmul.f32 %v2327, 0.032258064
        %v2329 = vadd.f32 %v2328, 1e-08
        %v2330 = vrsqrt.pop %v2329
        %v2331 = vmul.f32 %v2330, %v2329
        %v2332 = vmul.f32 %v2331, %v2330
        %v2333 = vmul.f32 0.5, %v2332
        %v2334 = vsub.f32 1.5, %v2333
        %v2335 = vmul.f32 %v2330, %v2334
        %vm2336 = vweird.f32 %v2329
        %vm2337 = vweird.f32 %v2330
        %vm2338 = vmor %vm2336, %vm2337
        %v2339 = vsel %vm2338, %v2330, %v2335
        %v2340 = vmul.f32 %v2323, %v2339
        %2341 = vst.msk [vmem:[%s797] sm:$0xff] %vm853, %v2340
        %s2342 = sand.u32 %s588, 1
        %s2343 = scalar_lea.sflag [#allocation3], %s2342
        %s2344 = sand.u32 %s588, 1
        %s2345 = smul.addr %s2344, 8
        %s2346 = scalar_lea.vmem [#allocation2], %s2345
        // Predicated region
        $region117: #{tpu_custom_call.1} parent=115 // pred_check
          %p2347 = pneg %p598
        $region118: #{tpu_custom_call.1} parent=115 // pred_check_branch
          %2349 = sbr.rel (%p2347) target = $region120
        $region119: #{tpu_custom_call.1} parent=115 // pred_region
          %2351 = vsyncadd %s2343, 0
          %s2352 = sadd.s32 %s43, %s42
          %s2353 = smul.addr %s2352, 8
          %s2354 = scalar_lea.hbm %s24, %s2353
          %s2356 = sshll.u32 %s2346, 4
          %s2357 = int_to_ptr.vmem [resolvable:$true] %s2356
          %s2358 = sshll.u32 %s2354, 4
          %s2359 = int_to_ptr.hbm [resolvable:$true] %s2358
          %2361 = dma.vmem_to_hbm [thread:$0]  %s2357, 128, %s2359, %s2343
        $region120: #{tpu_custom_call.1} parent=115 // pred_fallthru
          _
      $region116: #{tpu_custom_call.1} parent=5 // pred_fallthru
        _
      %p2362 = scmp.le.s32.totalorder 2, %s33
      // Predicated region
      $region121: #{tpu_custom_call.1} parent=5 // pred_check
        %p2363 = pneg %p2362
      $region122: #{tpu_custom_call.1} parent=5 // pred_check_branch
        %2365 = sbr.rel (%p2363) target = $region124
      $region123: #{tpu_custom_call.1} parent=5 // pred_region
        %s2366 = ssub.s32 %s33, 2
        // Predicated region
        $region125: #{tpu_custom_call.1} parent=123 // pred_check
          %p2367 = pneg %p604
        $region126: #{tpu_custom_call.1} parent=123 // pred_check_branch
          %2369 = sbr.rel (%p2367) target = $region128
        $region127: #{tpu_custom_call.1} parent=123 // pred_region
          %s2370 = sand.u32 %s589, 1
          %s2371 = scalar_lea.sflag [#allocation3], %s2370
          %s2372 = sand.u32 %s589, 1
          %s2373 = smul.addr %s2372, 8
          %s2374 = scalar_lea.vmem [#allocation2], %s2373
          %2376 = dma.done %s2371, 128
        $region128: #{tpu_custom_call.1} parent=123 // pred_fallthru
          _
      $region124: #{tpu_custom_call.1} parent=5 // pred_fallthru
        _
    $region6: #{tpu_custom_call.1} parent=1 // loop_footer
      %s37 = sadd.s32 1, %s33
    $region7: #{tpu_custom_call.1} parent=1 // loop_footer_branch
      %32 = sbr.rel target = $region3
    $region8: #{tpu_custom_call.1} parent=1 // loop_exit
      _
    %2377 = vsyncpa [#allocation3], 1
    %s2378 = scalar_lea.sflag [#allocation3], 1
    %2379 = vsyncpa %s2378, 1

</llo_original>
